<compile_context>
chip_gen: v6e
topology: v6e:2x2x1
jax: 0.10.0
libtpu: 0.0.40
codegen_flags: <defaults>
</compile_context>

<pallas_src>
import jax
import jax.numpy as jnp
from jax.experimental import pallas as pl
from jax.experimental.pallas import tpu as pltpu


HIDDEN_DIM = 128
LANE = 128
SUBLANE_BF16 = 16  # bf16 sublane pack -> batch tile must be a multiple of 16


def ae_kernel(x_ref,
              w1_ref, b1_ref,
              w2_ref, b2_ref,
              w3_ref, b3_ref,
              w4_ref, b4_ref,
              out_ref):
    """Fused encoder+decoder: (Linear,ReLU) x3 then Linear + Sigmoid."""

    def layer(h_bf16, w_ref, b_ref):
        # bf16 x bf16 -> f32 accumulation on the MXU; bias add in f32.
        return jnp.dot(h_bf16, w_ref[...],
                       preferred_element_type=jnp.float32) + b_ref[...]

    # Cast input inside the kernel (VPU) -- keeps the HBM read as-is but feeds
    # the MXU its native bf16 path.
    x = x_ref[...].astype(jnp.bfloat16)

    # ReLU in f32, then immediately narrow to bf16 so spilled intermediates
    # are half-width.
    h1 = jnp.maximum(layer(x, w1_ref, b1_ref), 0.0).astype(jnp.bfloat16)
    z = jnp.maximum(layer(h1, w2_ref, b2_ref), 0.0).astype(jnp.bfloat16)
    h2 = jnp.maximum(layer(z, w3_ref, b3_ref), 0.0).astype(jnp.bfloat16)

    logits = layer(h2, w4_ref, b4_ref)
    # sigmoid(x) = 1 / (1 + exp(-x)); exp and reciprocal both land on the EUP.
    sig = pl.reciprocal(1.0 + jnp.exp(-logits), approx=True)
    out_ref[...] = sig.astype(out_ref.dtype)


def _choose_batch_tile(batch, requested):
    """Tile rows: multiple of 16, capped so the grid keeps >= 4 (even) steps."""
    bt = max(SUBLANE_BF16, min(int(requested), batch))
    if batch >= 4 * 256:
        # Keep at least 4 grid steps when the batch allows a decent tile:
        # pipeline overlap + megacore sharding on v7x.
        bt = min(bt, pl.cdiv(batch, 4))
    bt = max(SUBLANE_BF16, (bt // SUBLANE_BF16) * SUBLANE_BF16)
    return bt


def autoencoder_forward(x, params, *, batch_tile=1024, out_dtype=jnp.bfloat16):
    """x: [B, D]. params: w1..w4 bf16 [in, out], b1..b4 f32 [1, out]."""
    B, D = x.shape
    w1, b1 = params["w1"], params["b1"]
    w2, b2 = params["w2"], params["b2"]
    w3, b3 = params["w3"], params["b3"]
    w4, b4 = params["w4"], params["b4"]
    H = w1.shape[1]
    L = w2.shape[1]

    # Zero-pad the latent dim up to a lane multiple. Exact: padded latent
    # channels get bias 0 -> ReLU(0) = 0, and the padded rows of w3 are zero.
    Lp = max(LANE, ((L + LANE - 1) // LANE) * LANE)
    if Lp != L:
        w2 = jnp.pad(w2, ((0, 0), (0, Lp - L)))
        b2 = jnp.pad(b2, ((0, 0), (0, Lp - L)))
        w3 = jnp.pad(w3, ((0, Lp - L), (0, 0)))

    bt = _choose_batch_tile(B, batch_tile)
    n_steps = pl.cdiv(B, bt)
    B_pad = n_steps * bt
    x_in = jnp.pad(x, ((0, B_pad - B), (0, 0))) if B_pad != B else x

    weight_args = (w1, b1, w2, b2, w3, b3, w4, b4)
    weight_bytes = sum(int(a.size) * a.dtype.itemsize for a in weight_args)
    x_bytes = x_in.dtype.itemsize
    o_bytes = jnp.dtype(out_dtype).itemsize

    # Advisory cost estimate for the XLA scheduler.
    cost = pl.CostEstimate(
        flops=2 * B_pad * (D * H + H * Lp + Lp * H + H * D),
        transcendentals=B_pad * D,  # sigmoid
        bytes_accessed=B_pad * D * (x_bytes + o_bytes) + weight_bytes,
    )

    # Scoped-VMEM budget: double-buffered x/out tiles, (double-buffered)
    # resident weights, in-kernel intermediates, plus headroom.  Always pass
    # it: floor at the 32 MiB default (v5e's default is only 16 MiB), cap at
    # 48 MiB to stay well inside v7x's 64 MiB physical VMEM.
    vmem_needed = (
        2 * bt * D * x_bytes            # x tiles (double-buffered)
        + 2 * bt * D * o_bytes          # out tiles (double-buffered)
        + 2 * weight_bytes              # resident weights/biases
        + bt * (2 * H + Lp) * 2         # bf16 intermediates h1/z/h2
        + bt * D * 4                    # f32 logits
        + (8 << 20)                     # Mosaic internal scratch / headroom
    )
    vmem_limit = int(min(max(vmem_needed, 32 << 20), 48 << 20))

    const = lambda a: pl.BlockSpec(a.shape, lambda i: (0, 0))  # VMEM-resident

    out = pl.pallas_call(
        ae_kernel,
        out_shape=jax.ShapeDtypeStruct((B_pad, D), out_dtype),
        grid_spec=pltpu.PrefetchScalarGridSpec(
            num_scalar_prefetch=0,
            grid=(n_steps,),
            in_specs=[
                pl.BlockSpec((bt, D), lambda i: (i, 0)),   # x tile
                const(w1), const(b1),
                const(w2), const(b2),
                const(w3), const(b3),
                const(w4), const(b4),
            ],
            out_specs=pl.BlockSpec((bt, D), lambda i: (i, 0)),
        ),
        compiler_params=pltpu.CompilerParams(
            dimension_semantics=("parallel",),
            vmem_limit_bytes=vmem_limit,
        ),
        cost_estimate=cost,
    )(x_in, w1, b1, w2, b2, w3, b3, w4, b4)

    return out[:B] if B_pad != B else out


def init_params(key, input_dim, latent_dim=32, hidden_dim=HIDDEN_DIM):
    """Deterministic init; weights bf16 stored [in, out], biases f32 [1, out]."""
    ks = jax.random.split(key, 8)

    def lin(kw, kb, fan_in, fan_out):
        bound = 1.0 / jnp.sqrt(fan_in)
        w = jax.random.uniform(kw, (fan_in, fan_out), jnp.float32, -bound, bound)
        b = jax.random.uniform(kb, (1, fan_out), jnp.float32, -bound, bound)
        return w.astype(jnp.bfloat16), b

    w1, b1 = lin(ks[0], ks[1], input_dim, hidden_dim)
    w2, b2 = lin(ks[2], ks[3], hidden_dim, latent_dim)
    w3, b3 = lin(ks[4], ks[5], latent_dim, hidden_dim)
    w4, b4 = lin(ks[6], ks[7], hidden_dim, input_dim)
    return dict(w1=w1, b1=b1, w2=w2, b2=b2, w3=w3, b3=b3, w4=w4, b4=b4)


def reference_forward(x, p):
    """Pure-JAX reference emulating the kernel's bf16-activation / f32-accum math."""

    def layer(h, w, b):
        return jnp.dot(h.astype(jnp.bfloat16), w,
                       preferred_element_type=jnp.float32) + b

    h1 = jnp.maximum(layer(x, p["w1"], p["b1"]), 0.0).astype(jnp.bfloat16)
    z = jnp.maximum(layer(h1, p["w2"], p["b2"]), 0.0).astype(jnp.bfloat16)
    h2 = jnp.maximum(layer(z, p["w3"], p["b3"]), 0.0).astype(jnp.bfloat16)
    return jax.nn.sigmoid(layer(h2, p["w4"], p["b4"]))


if __name__ == "__main__":
    key = jax.random.PRNGKey(0)
    k_param, k_x = jax.random.split(key)

    input_dim = 256     # "perfume feature" dimension
    latent_dim = 32
    batch = 2048        # -> 4 even grid steps of 512 rows (pipelined, v7x 2-TC)

    params = init_params(k_param, input_dim, latent_dim)
    x = jax.random.uniform(k_x, (batch, input_dim), jnp.float32)

    out = jax.block_until_ready(autoencoder_forward(x, params))
    ref = reference_forward(x, params)

    assert out.shape == (batch, input_dim)
    assert out.dtype == jnp.bfloat16
    max_err = float(jnp.max(jnp.abs(out.astype(jnp.float32) - ref)))
    assert max_err < 1e-2, max_err

    print("KERNEL_OK")
</pallas_src>

<mosaic_0001>
module attributes {stable_mosaic.version = 11 : i64} {
  func.func @ae_kernel(%arg0: i32, %arg1: memref<512x256xf32, #tpu.memory_space<vmem>>, %arg2: memref<256x128xbf16, #tpu.memory_space<vmem>>, %arg3: memref<1x128xf32, #tpu.memory_space<vmem>>, %arg4: memref<128x128xbf16, #tpu.memory_space<vmem>>, %arg5: memref<1x128xf32, #tpu.memory_space<vmem>>, %arg6: memref<128x128xbf16, #tpu.memory_space<vmem>>, %arg7: memref<1x128xf32, #tpu.memory_space<vmem>>, %arg8: memref<128x256xbf16, #tpu.memory_space<vmem>>, %arg9: memref<1x256xf32, #tpu.memory_space<vmem>>, %arg10: memref<512x256xbf16, #tpu.memory_space<vmem>>) attributes {dimension_semantics = [#tpu.dimension_semantics<parallel>], iteration_bounds = array<i64: 4>, scalar_prefetch = 0 : i64, scratch_operands = 0 : i64, tpu.core_type = #tpu.core_type<tc>, window_params = [{transform_indices = @transform_0, window_bounds = array<i64: 512, 256>}, {pipeline_mode = #tpu.pipeline_mode<synchronous>, transform_indices = @transform_1, window_bounds = array<i64: 256, 128>}, {pipeline_mode = #tpu.pipeline_mode<synchronous>, transform_indices = @transform_2, window_bounds = array<i64: 1, 128>}, {pipeline_mode = #tpu.pipeline_mode<synchronous>, transform_indices = @transform_3, window_bounds = array<i64: 128, 128>}, {pipeline_mode = #tpu.pipeline_mode<synchronous>, transform_indices = @transform_4, window_bounds = array<i64: 1, 128>}, {pipeline_mode = #tpu.pipeline_mode<synchronous>, transform_indices = @transform_5, window_bounds = array<i64: 128, 128>}, {pipeline_mode = #tpu.pipeline_mode<synchronous>, transform_indices = @transform_6, window_bounds = array<i64: 1, 128>}, {pipeline_mode = #tpu.pipeline_mode<synchronous>, transform_indices = @transform_7, window_bounds = array<i64: 128, 256>}, {pipeline_mode = #tpu.pipeline_mode<synchronous>, transform_indices = @transform_8, window_bounds = array<i64: 1, 256>}, {transform_indices = @transform_9, window_bounds = array<i64: 512, 256>}]} {
    %c0 = arith.constant 0 : index
    %c0_0 = arith.constant 0 : index
    %0 = vector.load %arg1[%c0, %c0_0] : memref<512x256xf32, #tpu.memory_space<vmem>>, vector<512x256xf32>
    %1 = arith.truncf %0 : vector<512x256xf32> to vector<512x256xbf16>
    %c0_1 = arith.constant 0 : index
    %c0_2 = arith.constant 0 : index
    %2 = vector.load %arg2[%c0_1, %c0_2] : memref<256x128xbf16, #tpu.memory_space<vmem>>, vector<256x128xbf16>
    %cst = arith.constant dense<0.000000e+00> : vector<512x128xf32>
    %3 = tpu.matmul %1, %2, %cst {dimension_numbers = #tpu.dot_dimension_numbers<[1], [0], [0], [1], [0, 0, 1, 1], [], []>} : vector<512x256xbf16>, vector<256x128xbf16>, vector<512x128xf32> -> vector<512x128xf32>
    %c0_3 = arith.constant 0 : index
    %c0_4 = arith.constant 0 : index
    %4 = vector.load %arg3[%c0_3, %c0_4] : memref<1x128xf32, #tpu.memory_space<vmem>>, vector<1x128xf32>
    %5 = vector.broadcast %4 : vector<1x128xf32> to vector<512x128xf32>
    %6 = arith.addf %3, %5 : vector<512x128xf32>
    %cst_5 = arith.constant 0.000000e+00 : f32
    %7 = vector.broadcast %cst_5 : f32 to vector<512x128xf32>
    %8 = arith.maximumf %6, %7 : vector<512x128xf32>
    %9 = arith.truncf %8 : vector<512x128xf32> to vector<512x128xbf16>
    %c0_6 = arith.constant 0 : index
    %c0_7 = arith.constant 0 : index
    %10 = vector.load %arg4[%c0_6, %c0_7] : memref<128x128xbf16, #tpu.memory_space<vmem>>, vector<128x128xbf16>
    %cst_8 = arith.constant dense<0.000000e+00> : vector<512x128xf32>
    %11 = tpu.matmul %9, %10, %cst_8 {dimension_numbers = #tpu.dot_dimension_numbers<[1], [0], [0], [1], [0, 0, 1, 1], [], []>} : vector<512x128xbf16>, vector<128x128xbf16>, vector<512x128xf32> -> vector<512x128xf32>
    %c0_9 = arith.constant 0 : index
    %c0_10 = arith.constant 0 : index
    %12 = vector.load %arg5[%c0_9, %c0_10] : memref<1x128xf32, #tpu.memory_space<vmem>>, vector<1x128xf32>
    %13 = vector.broadcast %12 : vector<1x128xf32> to vector<512x128xf32>
    %14 = arith.addf %11, %13 : vector<512x128xf32>
    %cst_11 = arith.constant 0.000000e+00 : f32
    %15 = vector.broadcast %cst_11 : f32 to vector<512x128xf32>
    %16 = arith.maximumf %14, %15 : vector<512x128xf32>
    %17 = arith.truncf %16 : vector<512x128xf32> to vector<512x128xbf16>
    %c0_12 = arith.constant 0 : index
    %c0_13 = arith.constant 0 : index
    %18 = vector.load %arg6[%c0_12, %c0_13] : memref<128x128xbf16, #tpu.memory_space<vmem>>, vector<128x128xbf16>
    %cst_14 = arith.constant dense<0.000000e+00> : vector<512x128xf32>
    %19 = tpu.matmul %17, %18, %cst_14 {dimension_numbers = #tpu.dot_dimension_numbers<[1], [0], [0], [1], [0, 0, 1, 1], [], []>} : vector<512x128xbf16>, vector<128x128xbf16>, vector<512x128xf32> -> vector<512x128xf32>
    %c0_15 = arith.constant 0 : index
    %c0_16 = arith.constant 0 : index
    %20 = vector.load %arg7[%c0_15, %c0_16] : memref<1x128xf32, #tpu.memory_space<vmem>>, vector<1x128xf32>
    %21 = vector.broadcast %20 : vector<1x128xf32> to vector<512x128xf32>
    %22 = arith.addf %19, %21 : vector<512x128xf32>
    %cst_17 = arith.constant 0.000000e+00 : f32
    %23 = vector.broadcast %cst_17 : f32 to vector<512x128xf32>
    %24 = arith.maximumf %22, %23 : vector<512x128xf32>
    %25 = arith.truncf %24 : vector<512x128xf32> to vector<512x128xbf16>
    %c0_18 = arith.constant 0 : index
    %c0_19 = arith.constant 0 : index
    %26 = vector.load %arg8[%c0_18, %c0_19] : memref<128x256xbf16, #tpu.memory_space<vmem>>, vector<128x256xbf16>
    %cst_20 = arith.constant dense<0.000000e+00> : vector<512x256xf32>
    %27 = tpu.matmul %25, %26, %cst_20 {dimension_numbers = #tpu.dot_dimension_numbers<[1], [0], [0], [1], [0, 0, 1, 1], [], []>} : vector<512x128xbf16>, vector<128x256xbf16>, vector<512x256xf32> -> vector<512x256xf32>
    %c0_21 = arith.constant 0 : index
    %c0_22 = arith.constant 0 : index
    %28 = vector.load %arg9[%c0_21, %c0_22] : memref<1x256xf32, #tpu.memory_space<vmem>>, vector<1x256xf32>
    %29 = vector.broadcast %28 : vector<1x256xf32> to vector<512x256xf32>
    %30 = arith.addf %27, %29 : vector<512x256xf32>
    %cst_23 = arith.constant 0.000000e+00 : f32
    %31 = vector.broadcast %cst_23 : f32 to vector<512x256xf32>
    %32 = arith.subf %31, %30 : vector<512x256xf32>
    %33 = math.exp %32 : vector<512x256xf32>
    %cst_24 = arith.constant 1.000000e+00 : f32
    %34 = vector.broadcast %cst_24 : f32 to vector<512x256xf32>
    %35 = arith.addf %34, %33 : vector<512x256xf32>
    %36 = tpu.reciprocal %35 {approx = true} : vector<512x256xf32> -> vector<512x256xf32>
    %37 = arith.truncf %36 : vector<512x256xf32> to vector<512x256xbf16>
    %c0_25 = arith.constant 0 : index
    %c0_26 = arith.constant 0 : index
    %38 = vector.load %arg10[%c0_25, %c0_26] : memref<512x256xbf16, #tpu.memory_space<vmem>>, vector<512x256xbf16>
    tpu.vector_store %arg10[%c0_25, %c0_26], %37 {strides = array<i32>} : memref<512x256xbf16, #tpu.memory_space<vmem>>, vector<512x256xbf16>,
    return
  }
  func.func @transform_0(%arg0: i32) -> (i32, i32) {
    %c0_i32 = arith.constant 0 : i32
    %c0_i32_0 = arith.constant 0 : i32
    return %arg0, %c0_i32 : i32, i32
  }
  func.func @transform_1(%arg0: i32) -> (i32, i32) {
    %c0_i32 = arith.constant 0 : i32
    %c0_i32_0 = arith.constant 0 : i32
    %c0_i32_1 = arith.constant 0 : i32
    return %c0_i32, %c0_i32_0 : i32, i32
  }
  func.func @transform_2(%arg0: i32) -> (i32, i32) {
    %c0_i32 = arith.constant 0 : i32
    %c0_i32_0 = arith.constant 0 : i32
    %c0_i32_1 = arith.constant 0 : i32
    return %c0_i32, %c0_i32_0 : i32, i32
  }
  func.func @transform_3(%arg0: i32) -> (i32, i32) {
    %c0_i32 = arith.constant 0 : i32
    %c0_i32_0 = arith.constant 0 : i32
    %c0_i32_1 = arith.constant 0 : i32
    return %c0_i32, %c0_i32_0 : i32, i32
  }
  func.func @transform_4(%arg0: i32) -> (i32, i32) {
    %c0_i32 = arith.constant 0 : i32
    %c0_i32_0 = arith.constant 0 : i32
    %c0_i32_1 = arith.constant 0 : i32
    return %c0_i32, %c0_i32_0 : i32, i32
  }
  func.func @transform_5(%arg0: i32) -> (i32, i32) {
    %c0_i32 = arith.constant 0 : i32
    %c0_i32_0 = arith.constant 0 : i32
    %c0_i32_1 = arith.constant 0 : i32
    return %c0_i32, %c0_i32_0 : i32, i32
  }
  func.func @transform_6(%arg0: i32) -> (i32, i32) {
    %c0_i32 = arith.constant 0 : i32
    %c0_i32_0 = arith.constant 0 : i32
    %c0_i32_1 = arith.constant 0 : i32
    return %c0_i32, %c0_i32_0 : i32, i32
  }
  func.func @transform_7(%arg0: i32) -> (i32, i32) {
    %c0_i32 = arith.constant 0 : i32
    %c0_i32_0 = arith.constant 0 : i32
    %c0_i32_1 = arith.constant 0 : i32
    return %c0_i32, %c0_i32_0 : i32, i32
  }
  func.func @transform_8(%arg0: i32) -> (i32, i32) {
    %c0_i32 = arith.constant 0 : i32
    %c0_i32_0 = arith.constant 0 : i32
    %c0_i32_1 = arith.constant 0 : i32
    return %c0_i32, %c0_i32_0 : i32, i32
  }
  func.func @transform_9(%arg0: i32) -> (i32, i32) {
    %c0_i32 = arith.constant 0 : i32
    %c0_i32_0 = arith.constant 0 : i32
    return %arg0, %c0_i32 : i32, i32
  }
}

</mosaic_0001>

<llo_original>
// kernel: tpu_custom_call.1
$region0: #{tpu_custom_call.1}
  #allocation0 [shape = 'u32[]', space=smem, size = 0x4, offset = 0x4, fixed_abs, tag = 'smem constant byte address 0x4 - core index']
  #allocation1 [shape = 'u32[144,128]{1,0:T(1,128)}', space=vmem, size = 0x12000, scoped, tag = 'internal scratch']
  %s0 = inlined_call_operand.hbm [shape: f32[2048,256], index: 0, kind: input, shape index: {}]
  %s1 = inlined_call_operand.hbm [shape: bf16[256,128], index: 1, kind: input, shape index: {}]
  %s2 = inlined_call_operand.hbm [shape: f32[1,128], index: 2, kind: input, shape index: {}]
  %s3 = inlined_call_operand.hbm [shape: bf16[128,128], index: 3, kind: input, shape index: {}]
  %s4 = inlined_call_operand.hbm [shape: f32[1,128], index: 4, kind: input, shape index: {}]
  %s5 = inlined_call_operand.hbm [shape: bf16[128,128], index: 5, kind: input, shape index: {}]
  %s6 = inlined_call_operand.hbm [shape: f32[1,128], index: 6, kind: input, shape index: {}]
  %s7 = inlined_call_operand.hbm [shape: bf16[128,256], index: 7, kind: input, shape index: {}]
  %s8 = inlined_call_operand.hbm [shape: f32[1,256], index: 8, kind: input, shape index: {}]
  %s9 = inlined_call_operand.hbm [shape: bf16[2048,256], index: 9, kind: output, shape index: {}]
  %s10 = sld [smem:[#allocation0]]
  $region105: #{tpu_custom_call.1} parent=0
    _
  %s12 = ssub.s32 1, %s10
  %s13 = scalar_select 0, %s12, %s10
  $region1: #{tpu_custom_call.1} parent=0
    #allocation2 [shape = 'u8[1048576]{0}', space=vmem, size = 0x100000, scoped, tag = 'input window, operand 0']
    #allocation3 [shape = 's32[2]{0}', space=sflag, size = 0x8, scoped, tag = 'scoped memory for tpu_custom_call.1']
    #allocation4 [shape = 's32[2]{0}', space=sflag, size = 0x8, scoped, tag = 'scoped memory for tpu_custom_call.1']
    #allocation5 [shape = 'u8[65536]{0}', space=vmem, size = 0x10000, scoped, tag = 'input window, operand 1, single buffered']
    #allocation6 [shape = 's32[1]{0}', space=sflag, size = 0x4, scoped, tag = 'scoped memory for tpu_custom_call.1']
    #allocation7 [shape = 'u8[512]{0}', space=vmem, size = 0x400, scoped, tag = 'input window, operand 2, single buffered']
    #allocation8 [shape = 'u8[32768]{0}', space=vmem, size = 0x8000, scoped, tag = 'input window, operand 3, single buffered']
    #allocation9 [shape = 's32[1]{0}', space=sflag, size = 0x4, scoped, tag = 'scoped memory for tpu_custom_call.1']
    #allocation10 [shape = 'u8[512]{0}', space=vmem, size = 0x400, scoped, tag = 'input window, operand 4, single buffered']
    #allocation11 [shape = 'u8[32768]{0}', space=vmem, size = 0x8000, scoped, tag = 'input window, operand 5, single buffered']
    #allocation12 [shape = 's32[1]{0}', space=sflag, size = 0x4, scoped, tag = 'scoped memory for tpu_custom_call.1']
    #allocation13 [shape = 'u8[512]{0}', space=vmem, size = 0x400, scoped, tag = 'input window, operand 6, single buffered']
    #allocation14 [shape = 'u8[65536]{0}', space=vmem, size = 0x10000, scoped, tag = 'input window, operand 7, single buffered']
    #allocation15 [shape = 's32[1]{0}', space=sflag, size = 0x4, scoped, tag = 'scoped memory for tpu_custom_call.1']
    #allocation16 [shape = 'u8[1024]{0}', space=vmem, size = 0x400, scoped, tag = 'input window, operand 8, single buffered']
    #allocation17 [shape = 'u8[524288]{0}', space=vmem, size = 0x80000, scoped, tag = 'output window, operand 0']
    %14 = vsyncpa [#allocation3], 0
    %s15 = scalar_lea.sflag [#allocation3], 1
    %16 = vsyncpa %s15, 0
    %17 = vsyncpa [#allocation6], 0
    %18 = vsyncpa [#allocation9], 0
    %19 = vsyncpa [#allocation12], 0
    %20 = vsyncpa [#allocation15], 0
    %21 = vsyncpa [#allocation4], 0
    %s22 = scalar_lea.sflag [#allocation4], 1
    %23 = vsyncpa %s22, 0
    loop: start=0, step=1, limit=6
    $region2: #{tpu_custom_call.1} parent=1 // loop_pre_header
      _
    $region3: #{tpu_custom_call.1} parent=1 // loop_header
      %s25 = sphi 0, %s29
      %p26 = scmp.ge.s32.totalorder %s25, 6
      %s35 = sphi 0, %s37
      %s38 = sphi 0, %s35
      %s39 = sphi 0, %s38
      %s55 = sphi 0, %s39
      %s59 = sphi 0, %s59
      %s61 = sphi 0, %s59
      %s62 = sphi 0, %s61
      %s76 = sphi 0, %s62
      %s80 = sphi 0, %s80
      %s82 = sphi 0, %s80
      %s83 = sphi 0, %s82
      %s97 = sphi 0, %s83
      %s101 = sphi 0, %s101
      %s103 = sphi 0, %s101
      %s104 = sphi 0, %s103
      %s118 = sphi 0, %s104
      %s122 = sphi 0, %s122
      %s124 = sphi 0, %s122
      %s125 = sphi 0, %s124
      %s139 = sphi 0, %s125
      %s143 = sphi 0, %s143
      %s145 = sphi 0, %s143
      %s146 = sphi 0, %s145
      %s160 = sphi 0, %s146
      %s164 = sphi 0, %s164
      %s166 = sphi 0, %s164
      %s167 = sphi 0, %s166
      %s181 = sphi 0, %s167
      %s185 = sphi 0, %s185
      %s187 = sphi 0, %s185
      %s188 = sphi 0, %s187
      %s202 = sphi 0, %s188
      %s206 = sphi 0, %s206
      %s208 = sphi 0, %s206
      %s209 = sphi 0, %s208
      %s223 = sphi 0, %s209
      %s229 = sphi 0, %s231
      %s232 = sphi 0, %s229
      %s233 = sphi 0, %s232
      %s249 = sphi 0, %s233
    $region4: #{tpu_custom_call.1} parent=1 // loop_header_branch
      %28 = sbr.rel (%p26) target = $region8
    $region5: #{tpu_custom_call.1} parent=1 // loop_body
      %s30 = ssub.s32 %s25, 1
      %s31 = ssub.s32 %s25, 2
      %s32 = sadd.s32 %s25, 1
      %s33 = ssub.s32 %s25, %s32
      %p34 = scmp.eq.s32.totalorder %s33, 0
      %s36 = sadd.s32 %s35, 1
      %s37 = scalar_select %p34, %s35, %s36
      %p40 = pneg %p34
      %p41 = scmp.eq.s32.totalorder %s25, 3
      %p42 = por %p40, %p41
      %p43 = scmp.ne.s32.totalorder %s35, %s38
      %p44 = scmp.eq.s32.totalorder %s25, 0
      %p45 = por %p43, %p44
      %p46 = scmp.ne.s32.totalorder %s35, %s38
      %p47 = scmp.eq.s32.totalorder %s30, 3
      %p48 = por %p46, %p47
      %p49 = scmp.ne.s32.totalorder %s38, %s39
      %p50 = scmp.eq.s32.totalorder %s30, 0
      %p51 = por %p49, %p50
      %p52 = scmp.ne.s32.totalorder %s38, %s39
      %p53 = scmp.eq.s32.totalorder %s31, 3
      %p54 = por %p52, %p53
      %p56 = scmp.ne.s32.totalorder %s39, %s55
      %p57 = scmp.eq.s32.totalorder %s31, 0
      %p58 = por %p56, %p57
      %s60 = sadd.s32 %s59, 1
      %p63 = scmp.eq.s32.totalorder %s25, 3
      %p64 = scmp.ne.s32.totalorder %s59, %s61
      %p65 = scmp.eq.s32.totalorder %s25, 0
      %p66 = por %p64, %p65
      %p67 = scmp.ne.s32.totalorder %s59, %s61
      %p68 = scmp.eq.s32.totalorder %s30, 3
      %p69 = por %p67, %p68
      %p70 = scmp.ne.s32.totalorder %s61, %s62
      %p71 = scmp.eq.s32.totalorder %s30, 0
      %p72 = por %p70, %p71
      %p73 = scmp.ne.s32.totalorder %s61, %s62
      %p74 = scmp.eq.s32.totalorder %s31, 3
      %p75 = por %p73, %p74
      %p77 = scmp.ne.s32.totalorder %s62, %s76
      %p78 = scmp.eq.s32.totalorder %s31, 0
      %p79 = por %p77, %p78
      %s81 = sadd.s32 %s80, 1
      %p84 = scmp.eq.s32.totalorder %s25, 3
      %p85 = scmp.ne.s32.totalorder %s80, %s82
      %p86 = scmp.eq.s32.totalorder %s25, 0
      %p87 = por %p85, %p86
      %p88 = scmp.ne.s32.totalorder %s80, %s82
      %p89 = scmp.eq.s32.totalorder %s30, 3
      %p90 = por %p88, %p89
      %p91 = scmp.ne.s32.totalorder %s82, %s83
      %p92 = scmp.eq.s32.totalorder %s30, 0
      %p93 = por %p91, %p92
      %p94 = scmp.ne.s32.totalorder %s82, %s83
      %p95 = scmp.eq.s32.totalorder %s31, 3
      %p96 = por %p94, %p95
      %p98 = scmp.ne.s32.totalorder %s83, %s97
      %p99 = scmp.eq.s32.totalorder %s31, 0
      %p100 = por %p98, %p99
      %s102 = sadd.s32 %s101, 1
      %p105 = scmp.eq.s32.totalorder %s25, 3
      %p106 = scmp.ne.s32.totalorder %s101, %s103
      %p107 = scmp.eq.s32.totalorder %s25, 0
      %p108 = por %p106, %p107
      %p109 = scmp.ne.s32.totalorder %s101, %s103
      %p110 = scmp.eq.s32.totalorder %s30, 3
      %p111 = por %p109, %p110
      %p112 = scmp.ne.s32.totalorder %s103, %s104
      %p113 = scmp.eq.s32.totalorder %s30, 0
      %p114 = por %p112, %p113
      %p115 = scmp.ne.s32.totalorder %s103, %s104
      %p116 = scmp.eq.s32.totalorder %s31, 3
      %p117 = por %p115, %p116
      %p119 = scmp.ne.s32.totalorder %s104, %s118
      %p120 = scmp.eq.s32.totalorder %s31, 0
      %p121 = por %p119, %p120
      %s123 = sadd.s32 %s122, 1
      %p126 = scmp.eq.s32.totalorder %s25, 3
      %p127 = scmp.ne.s32.totalorder %s122, %s124
      %p128 = scmp.eq.s32.totalorder %s25, 0
      %p129 = por %p127, %p128
      %p130 = scmp.ne.s32.totalorder %s122, %s124
      %p131 = scmp.eq.s32.totalorder %s30, 3
      %p132 = por %p130, %p131
      %p133 = scmp.ne.s32.totalorder %s124, %s125
      %p134 = scmp.eq.s32.totalorder %s30, 0
      %p135 = por %p133, %p134
      %p136 = scmp.ne.s32.totalorder %s124, %s125
      %p137 = scmp.eq.s32.totalorder %s31, 3
      %p138 = por %p136, %p137
      %p140 = scmp.ne.s32.totalorder %s125, %s139
      %p141 = scmp.eq.s32.totalorder %s31, 0
      %p142 = por %p140, %p141
      %s144 = sadd.s32 %s143, 1
      %p147 = scmp.eq.s32.totalorder %s25, 3
      %p148 = scmp.ne.s32.totalorder %s143, %s145
      %p149 = scmp.eq.s32.totalorder %s25, 0
      %p150 = por %p148, %p149
      %p151 = scmp.ne.s32.totalorder %s143, %s145
      %p152 = scmp.eq.s32.totalorder %s30, 3
      %p153 = por %p151, %p152
      %p154 = scmp.ne.s32.totalorder %s145, %s146
      %p155 = scmp.eq.s32.totalorder %s30, 0
      %p156 = por %p154, %p155
      %p157 = scmp.ne.s32.totalorder %s145, %s146
      %p158 = scmp.eq.s32.totalorder %s31, 3
      %p159 = por %p157, %p158
      %p161 = scmp.ne.s32.totalorder %s146, %s160
      %p162 = scmp.eq.s32.totalorder %s31, 0
      %p163 = por %p161, %p162
      %s165 = sadd.s32 %s164, 1
      %p168 = scmp.eq.s32.totalorder %s25, 3
      %p169 = scmp.ne.s32.totalorder %s164, %s166
      %p170 = scmp.eq.s32.totalorder %s25, 0
      %p171 = por %p169, %p170
      %p172 = scmp.ne.s32.totalorder %s164, %s166
      %p173 = scmp.eq.s32.totalorder %s30, 3
      %p174 = por %p172, %p173
      %p175 = scmp.ne.s32.totalorder %s166, %s167
      %p176 = scmp.eq.s32.totalorder %s30, 0
      %p177 = por %p175, %p176
      %p178 = scmp.ne.s32.totalorder %s166, %s167
      %p179 = scmp.eq.s32.totalorder %s31, 3
      %p180 = por %p178, %p179
      %p182 = scmp.ne.s32.totalorder %s167, %s181
      %p183 = scmp.eq.s32.totalorder %s31, 0
      %p184 = por %p182, %p183
      %s186 = sadd.s32 %s185, 1
      %p189 = scmp.eq.s32.totalorder %s25, 3
      %p190 = scmp.ne.s32.totalorder %s185, %s187
      %p191 = scmp.eq.s32.totalorder %s25, 0
      %p192 = por %p190, %p191
      %p193 = scmp.ne.s32.totalorder %s185, %s187
      %p194 = scmp.eq.s32.totalorder %s30, 3
      %p195 = por %p193, %p194
      %p196 = scmp.ne.s32.totalorder %s187, %s188
      %p197 = scmp.eq.s32.totalorder %s30, 0
      %p198 = por %p196, %p197
      %p199 = scmp.ne.s32.totalorder %s187, %s188
      %p200 = scmp.eq.s32.totalorder %s31, 3
      %p201 = por %p199, %p200
      %p203 = scmp.ne.s32.totalorder %s188, %s202
      %p204 = scmp.eq.s32.totalorder %s31, 0
      %p205 = por %p203, %p204
      %s207 = sadd.s32 %s206, 1
      %p210 = scmp.eq.s32.totalorder %s25, 3
      %p211 = scmp.ne.s32.totalorder %s206, %s208
      %p212 = scmp.eq.s32.totalorder %s25, 0
      %p213 = por %p211, %p212
      %p214 = scmp.ne.s32.totalorder %s206, %s208
      %p215 = scmp.eq.s32.totalorder %s30, 3
      %p216 = por %p214, %p215
      %p217 = scmp.ne.s32.totalorder %s208, %s209
      %p218 = scmp.eq.s32.totalorder %s30, 0
      %p219 = por %p217, %p218
      %p220 = scmp.ne.s32.totalorder %s208, %s209
      %p221 = scmp.eq.s32.totalorder %s31, 3
      %p222 = por %p220, %p221
      %p224 = scmp.ne.s32.totalorder %s209, %s223
      %p225 = scmp.eq.s32.totalorder %s31, 0
      %p226 = por %p224, %p225
      %s227 = ssub.s32 %s25, %s32
      %p228 = scmp.eq.s32.totalorder %s227, 0
      %s230 = sadd.s32 %s229, 1
      %s231 = scalar_select %p228, %s229, %s230
      %p234 = pneg %p228
      %p235 = scmp.eq.s32.totalorder %s25, 3
      %p236 = por %p234, %p235
      %p237 = scmp.ne.s32.totalorder %s229, %s232
      %p238 = scmp.eq.s32.totalorder %s25, 0
      %p239 = por %p237, %p238
      %p240 = scmp.ne.s32.totalorder %s229, %s232
      %p241 = scmp.eq.s32.totalorder %s30, 3
      %p242 = por %p240, %p241
      %p243 = scmp.ne.s32.totalorder %s232, %s233
      %p244 = scmp.eq.s32.totalorder %s30, 0
      %p245 = por %p243, %p244
      %p246 = scmp.ne.s32.totalorder %s232, %s233
      %p247 = scmp.eq.s32.totalorder %s31, 3
      %p248 = por %p246, %p247
      %p250 = scmp.ne.s32.totalorder %s233, %s249
      %p251 = scmp.eq.s32.totalorder %s31, 0
      %p252 = por %p250, %p251
      %p253 = scmp.le.s32.totalorder 1, %s25
      %p254 = scmp.lt.s32.totalorder %s25, 5
      %p255 = pnand %p253, %p254
      %p256 = pneg %p255
      // Predicated region
      $region9: #{tpu_custom_call.1} parent=5 // pred_check
        _
      $region10: #{tpu_custom_call.1} parent=5 // pred_check_branch
        %258 = sbr.rel (%p255) target = $region12
      $region11: #{tpu_custom_call.1} parent=5 // pred_region
        %s259 = ssub.s32 %s25, 1
        // Predicated region
        $region13: #{tpu_custom_call.1} parent=11 // pred_check
          %p260 = pneg %p72
        $region14: #{tpu_custom_call.1} parent=11 // pred_check_branch
          %262 = sbr.rel (%p260) target = $region16
        $region15: #{tpu_custom_call.1} parent=11 // pred_region
          %s264 = ssub.s32 2048, 2048
          %265 = vsyncadd [#allocation6], %s264
          %s266 = sshll.u32 [#allocation5], 4
          %s267 = int_to_ptr.vmem [resolvable:$true] %s266
          %272 = dma.hbm_to_vmem [thread:$0]  %s1, 2048, %s267, [#allocation6], 64, 64, 4
        $region16: #{tpu_custom_call.1} parent=11 // pred_fallthru
          _
        // Predicated region
        $region17: #{tpu_custom_call.1} parent=11 // pred_check
          %p273 = pneg %p93
        $region18: #{tpu_custom_call.1} parent=11 // pred_check_branch
          %275 = sbr.rel (%p273) target = $region20
        $region19: #{tpu_custom_call.1} parent=11 // pred_region
          %s277 = ssub.s32 16, 16
          %278 = vsyncadd [#allocation6], %s277
          %s280 = sshll.u32 [#allocation7], 4
          %s281 = int_to_ptr.vmem [resolvable:$true] %s280
          %283 = dma.hbm_to_vmem [thread:$0]  %s2, 16, %s281, [#allocation6]
        $region20: #{tpu_custom_call.1} parent=11 // pred_fallthru
          _
        // Predicated region
        $region21: #{tpu_custom_call.1} parent=11 // pred_check
          %p284 = pneg %p114
        $region22: #{tpu_custom_call.1} parent=11 // pred_check_branch
          %286 = sbr.rel (%p284) target = $region24
        $region23: #{tpu_custom_call.1} parent=11 // pred_region
          %s288 = ssub.s32 1024, 1024
          %289 = vsyncadd [#allocation9], %s288
          %s290 = sshll.u32 [#allocation8], 4
          %s291 = int_to_ptr.vmem [resolvable:$true] %s290
          %296 = dma.hbm_to_vmem [thread:$0]  %s3, 1024, %s291, [#allocation9], 64, 64, 4
        $region24: #{tpu_custom_call.1} parent=11 // pred_fallthru
          _
        // Predicated region
        $region25: #{tpu_custom_call.1} parent=11 // pred_check
          %p297 = pneg %p135
        $region26: #{tpu_custom_call.1} parent=11 // pred_check_branch
          %299 = sbr.rel (%p297) target = $region28
        $region27: #{tpu_custom_call.1} parent=11 // pred_region
          %s301 = ssub.s32 16, 16
          %302 = vsyncadd [#allocation9], %s301
          %s304 = sshll.u32 [#allocation10], 4
          %s305 = int_to_ptr.vmem [resolvable:$true] %s304
          %307 = dma.hbm_to_vmem [thread:$0]  %s4, 16, %s305, [#allocation9]
        $region28: #{tpu_custom_call.1} parent=11 // pred_fallthru
          _
        // Predicated region
        $region29: #{tpu_custom_call.1} parent=11 // pred_check
          %p308 = pneg %p156
        $region30: #{tpu_custom_call.1} parent=11 // pred_check_branch
          %310 = sbr.rel (%p308) target = $region32
        $region31: #{tpu_custom_call.1} parent=11 // pred_region
          %s312 = ssub.s32 1024, 1024
          %313 = vsyncadd [#allocation12], %s312
          %s314 = sshll.u32 [#allocation11], 4
          %s315 = int_to_ptr.vmem [resolvable:$true] %s314
          %320 = dma.hbm_to_vmem [thread:$0]  %s5, 1024, %s315, [#allocation12], 64, 64, 4
        $region32: #{tpu_custom_call.1} parent=11 // pred_fallthru
          _
        // Predicated region
        $region33: #{tpu_custom_call.1} parent=11 // pred_check
          %p321 = pneg %p177
        $region34: #{tpu_custom_call.1} parent=11 // pred_check_branch
          %323 = sbr.rel (%p321) target = $region36
        $region35: #{tpu_custom_call.1} parent=11 // pred_region
          %s325 = ssub.s32 16, 16
          %326 = vsyncadd [#allocation12], %s325
          %s328 = sshll.u32 [#allocation13], 4
          %s329 = int_to_ptr.vmem [resolvable:$true] %s328
          %331 = dma.hbm_to_vmem [thread:$0]  %s6, 16, %s329, [#allocation12]
        $region36: #{tpu_custom_call.1} parent=11 // pred_fallthru
          _
        // Predicated region
        $region37: #{tpu_custom_call.1} parent=11 // pred_check
          %p332 = pneg %p198
        $region38: #{tpu_custom_call.1} parent=11 // pred_check_branch
          %334 = sbr.rel (%p332) target = $region40
        $region39: #{tpu_custom_call.1} parent=11 // pred_region
          %s336 = ssub.s32 2048, 2048
          %337 = vsyncadd [#allocation15], %s336
          %s338 = sshll.u32 [#allocation14], 4
          %s339 = int_to_ptr.vmem [resolvable:$true] %s338
          %344 = dma.hbm_to_vmem [thread:$0]  %s7, 2048, %s339, [#allocation15], 128, 128, 8
        $region40: #{tpu_custom_call.1} parent=11 // pred_fallthru
          _
        // Predicated region
        $region41: #{tpu_custom_call.1} parent=11 // pred_check
          %p345 = pneg %p219
        $region42: #{tpu_custom_call.1} parent=11 // pred_check_branch
          %347 = sbr.rel (%p345) target = $region44
        $region43: #{tpu_custom_call.1} parent=11 // pred_region
          %s349 = ssub.s32 32, 32
          %350 = vsyncadd [#allocation15], %s349
          %s352 = sshll.u32 [#allocation16], 4
          %s353 = int_to_ptr.vmem [resolvable:$true] %s352
          %355 = dma.hbm_to_vmem [thread:$0]  %s8, 32, %s353, [#allocation15]
        $region44: #{tpu_custom_call.1} parent=11 // pred_fallthru
          _
      $region12: #{tpu_custom_call.1} parent=5 // pred_fallthru
        _
      %p356 = scmp.lt.s32.totalorder %s25, 4
      // Predicated region
      $region45: #{tpu_custom_call.1} parent=5 // pred_check
        %p357 = pneg %p356
      $region46: #{tpu_custom_call.1} parent=5 // pred_check_branch
        %359 = sbr.rel (%p357) target = $region48
      $region47: #{tpu_custom_call.1} parent=5 // pred_region
        // Predicated region
        $region49: #{tpu_custom_call.1} parent=47 // pred_check
          %p360 = pneg %p45
        $region50: #{tpu_custom_call.1} parent=47 // pred_check_branch
          %362 = sbr.rel (%p360) target = $region52
        $region51: #{tpu_custom_call.1} parent=47 // pred_region
          %s363 = sand.u32 %s35, 1
          %s364 = scalar_lea.sflag [#allocation3], %s363
          %s365 = sand.u32 %s35, 1
          %s366 = smul.addr %s365, 1024
          %s367 = scalar_lea.vmem [#allocation2], %s366
          %s368 = smul.u32 64, %s25
          %s370 = ssub.s32 16384, 16384
          %371 = vsyncadd %s364, %s370
          %s372 = smul.addr %s368, 2
          %s373 = smul.addr %s372, 128
          %s374 = scalar_lea.hbm %s0, %s373
          %s375 = sshll.u32 %s367, 4
          %s376 = int_to_ptr.vmem [resolvable:$true] %s375
          %381 = dma.hbm_to_vmem [thread:$0]  %s374, 16384, %s376, %s364, 256, 256, 16
        $region52: #{tpu_custom_call.1} parent=47 // pred_fallthru
          _
      $region48: #{tpu_custom_call.1} parent=5 // pred_fallthru
        _
      %p382 = scmp.le.s32.totalorder 1, %s25
      %p383 = scmp.lt.s32.totalorder %s25, 5
      %p384 = pnand %p382, %p383
      %p385 = pneg %p384
      // Predicated region
      $region53: #{tpu_custom_call.1} parent=5 // pred_check
        _
      $region54: #{tpu_custom_call.1} parent=5 // pred_check_branch
        %387 = sbr.rel (%p384) target = $region56
      $region55: #{tpu_custom_call.1} parent=5 // pred_region
        %s388 = ssub.s32 %s25, 1
        %s389 = sand.u32 %s38, 1
        %s390 = scalar_lea.sflag [#allocation3], %s389
        %s391 = sand.u32 %s38, 1
        %s392 = smul.addr %s391, 1024
        %s393 = scalar_lea.vmem [#allocation2], %s392
        // Predicated region
        $region57: #{tpu_custom_call.1} parent=55 // pred_check
          %p394 = pneg %p51
        $region58: #{tpu_custom_call.1} parent=55 // pred_check_branch
          %396 = sbr.rel (%p394) target = $region60
        $region59: #{tpu_custom_call.1} parent=55 // pred_region
          %397 = dma.done %s390, 16384
        $region60: #{tpu_custom_call.1} parent=55 // pred_fallthru
          _
        // Predicated region
        $region61: #{tpu_custom_call.1} parent=55 // pred_check
          %p398 = pneg %p72
        $region62: #{tpu_custom_call.1} parent=55 // pred_check_branch
          %400 = sbr.rel (%p398) target = $region64
        $region63: #{tpu_custom_call.1} parent=55 // pred_region
          %401 = dma.done [#allocation6], 2048
        $region64: #{tpu_custom_call.1} parent=55 // pred_fallthru
          _
        // Predicated region
        $region65: #{tpu_custom_call.1} parent=55 // pred_check
          %p402 = pneg %p93
        $region66: #{tpu_custom_call.1} parent=55 // pred_check_branch
          %404 = sbr.rel (%p402) target = $region68
        $region67: #{tpu_custom_call.1} parent=55 // pred_region
          %405 = dma.done [#allocation6], 16
        $region68: #{tpu_custom_call.1} parent=55 // pred_fallthru
          _
        // Predicated region
        $region69: #{tpu_custom_call.1} parent=55 // pred_check
          %p406 = pneg %p114
        $region70: #{tpu_custom_call.1} parent=55 // pred_check_branch
          %408 = sbr.rel (%p406) target = $region72
        $region71: #{tpu_custom_call.1} parent=55 // pred_region
          %409 = dma.done [#allocation9], 1024
        $region72: #{tpu_custom_call.1} parent=55 // pred_fallthru
          _
        // Predicated region
        $region73: #{tpu_custom_call.1} parent=55 // pred_check
          %p410 = pneg %p135
        $region74: #{tpu_custom_call.1} parent=55 // pred_check_branch
          %412 = sbr.rel (%p410) target = $region76
        $region75: #{tpu_custom_call.1} parent=55 // pred_region
          %413 = dma.done [#allocation9], 16
        $region76: #{tpu_custom_call.1} parent=55 // pred_fallthru
          _
        // Predicated region
        $region77: #{tpu_custom_call.1} parent=55 // pred_check
          %p414 = pneg %p156
        $region78: #{tpu_custom_call.1} parent=55 // pred_check_branch
          %416 = sbr.rel (%p414) target = $region80
        $region79: #{tpu_custom_call.1} parent=55 // pred_region
          %417 = dma.done [#allocation12], 1024
        $region80: #{tpu_custom_call.1} parent=55 // pred_fallthru
          _
        // Predicated region
        $region81: #{tpu_custom_call.1} parent=55 // pred_check
          %p418 = pneg %p177
        $region82: #{tpu_custom_call.1} parent=55 // pred_check_branch
          %420 = sbr.rel (%p418) target = $region84
        $region83: #{tpu_custom_call.1} parent=55 // pred_region
          %421 = dma.done [#allocation12], 16
        $region84: #{tpu_custom_call.1} parent=55 // pred_fallthru
          _
        // Predicated region
        $region85: #{tpu_custom_call.1} parent=55 // pred_check
          %p422 = pneg %p198
        $region86: #{tpu_custom_call.1} parent=55 // pred_check_branch
          %424 = sbr.rel (%p422) target = $region88
        $region87: #{tpu_custom_call.1} parent=55 // pred_region
          %425 = dma.done [#allocation15], 2048
        $region88: #{tpu_custom_call.1} parent=55 // pred_fallthru
          _
        // Predicated region
        $region89: #{tpu_custom_call.1} parent=55 // pred_check
          %p426 = pneg %p219
        $region90: #{tpu_custom_call.1} parent=55 // pred_check_branch
          %428 = sbr.rel (%p426) target = $region92
        $region91: #{tpu_custom_call.1} parent=55 // pred_region
          %429 = dma.done [#allocation15], 32
        $region92: #{tpu_custom_call.1} parent=55 // pred_fallthru
          _
        %s430 = sand.u32 %s38, 1
        %s431 = scalar_lea.sflag [#allocation3], %s430
        %s432 = sand.u32 %s38, 1
        %s433 = smul.addr %s432, 1024
        %s434 = scalar_lea.vmem [#allocation2], %s433
        %p435 = pneg %p51
        %p436 = pneg %p48
        %p437 = pneg %p72
        %p438 = pneg %p69
        %p439 = pneg %p93
        %p440 = pneg %p90
        %p441 = pneg %p114
        %p442 = pneg %p111
        %p443 = pneg %p135
        %p444 = pneg %p132
        %p445 = pneg %p156
        %p446 = pneg %p153
        %p447 = pneg %p177
        %p448 = pneg %p174
        %p449 = pneg %p198
        %p450 = pneg %p195
        %p451 = pneg %p219
        %p452 = pneg %p216
        %p453 = pneg %p245
        %p454 = pneg %p242
        %s455 = sand.u32 %s232, 1
        %s456 = scalar_lea.sflag [#allocation4], %s455
        %s457 = sand.u32 %s232, 1
        %s458 = smul.addr %s457, 512
        %s459 = scalar_lea.vmem [#allocation17], %s458
        %s460 = smul.u32 64, %s30
        %s461 = smul.u32 64, %s30
        %v463 = vld [vmem:[%s393] sm:$0xff]
        %v464 = vld [vmem:[%s393 + $0x8] sm:$0xff]
        %v465 = vld [vmem:[%s393 + $0x10] sm:$0xff]
        %v466 = vld [vmem:[%s393 + $0x18] sm:$0xff]
        %v467 = vld [vmem:[%s393 + $0x20] sm:$0xff]
        %v468 = vld [vmem:[%s393 + $0x28] sm:$0xff]
        %v469 = vld [vmem:[%s393 + $0x30] sm:$0xff]
        %v470 = vld [vmem:[%s393 + $0x38] sm:$0xff]
        %v471 = vld [vmem:[%s393 + $0x40] sm:$0xff]
        %v472 = vld [vmem:[%s393 + $0x48] sm:$0xff]
        %v473 = vld [vmem:[%s393 + $0x50] sm:$0xff]
        %v474 = vld [vmem:[%s393 + $0x58] sm:$0xff]
        %v475 = vld [vmem:[%s393 + $0x60] sm:$0xff]
        %v476 = vld [vmem:[%s393 + $0x68] sm:$0xff]
        %v477 = vld [vmem:[%s393 + $0x70] sm:$0xff]
        %v478 = vld [vmem:[%s393 + $0x78] sm:$0xff]
        %v479 = vld [vmem:[%s393 + $0x80] sm:$0xff]
        %v480 = vld [vmem:[%s393 + $0x88] sm:$0xff]
        %v481 = vld [vmem:[%s393 + $0x90] sm:$0xff]
        %v482 = vld [vmem:[%s393 + $0x98] sm:$0xff]
        %v483 = vld [vmem:[%s393 + $0xa0] sm:$0xff]
        %v484 = vld [vmem:[%s393 + $0xa8] sm:$0xff]
        %v485 = vld [vmem:[%s393 + $0xb0] sm:$0xff]
        %v486 = vld [vmem:[%s393 + $0xb8] sm:$0xff]
        %v487 = vld [vmem:[%s393 + $0xc0] sm:$0xff]
        %v488 = vld [vmem:[%s393 + $0xc8] sm:$0xff]
        %v489 = vld [vmem:[%s393 + $0xd0] sm:$0xff]
        %v490 = vld [vmem:[%s393 + $0xd8] sm:$0xff]
        %v491 = vld [vmem:[%s393 + $0xe0] sm:$0xff]
        %v492 = vld [vmem:[%s393 + $0xe8] sm:$0xff]
        %v493 = vld [vmem:[%s393 + $0xf0] sm:$0xff]
        %v494 = vld [vmem:[%s393 + $0xf8] sm:$0xff]
        %v495 = vld [vmem:[%s393 + $0x100] sm:$0xff]
        %v496 = vld [vmem:[%s393 + $0x108] sm:$0xff]
        %v497 = vld [vmem:[%s393 + $0x110] sm:$0xff]
        %v498 = vld [vmem:[%s393 + $0x118] sm:$0xff]
        %v499 = vld [vmem:[%s393 + $0x120] sm:$0xff]
        %v500 = vld [vmem:[%s393 + $0x128] sm:$0xff]
        %v501 = vld [vmem:[%s393 + $0x130] sm:$0xff]
        %v502 = vld [vmem:[%s393 + $0x138] sm:$0xff]
        %v503 = vld [vmem:[%s393 + $0x140] sm:$0xff]
        %v504 = vld [vmem:[%s393 + $0x148] sm:$0xff]
        %v505 = vld [vmem:[%s393 + $0x150] sm:$0xff]
        %v506 = vld [vmem:[%s393 + $0x158] sm:$0xff]
        %v507 = vld [vmem:[%s393 + $0x160] sm:$0xff]
        %v508 = vld [vmem:[%s393 + $0x168] sm:$0xff]
        %v509 = vld [vmem:[%s393 + $0x170] sm:$0xff]
        %v510 = vld [vmem:[%s393 + $0x178] sm:$0xff]
        %v511 = vld [vmem:[%s393 + $0x180] sm:$0xff]
        %v512 = vld [vmem:[%s393 + $0x188] sm:$0xff]
        %v513 = vld [vmem:[%s393 + $0x190] sm:$0xff]
        %v514 = vld [vmem:[%s393 + $0x198] sm:$0xff]
        %v515 = vld [vmem:[%s393 + $0x1a0] sm:$0xff]
        %v516 = vld [vmem:[%s393 + $0x1a8] sm:$0xff]
        %v517 = vld [vmem:[%s393 + $0x1b0] sm:$0xff]
        %v518 = vld [vmem:[%s393 + $0x1b8] sm:$0xff]
        %v519 = vld [vmem:[%s393 + $0x1c0] sm:$0xff]
        %v520 = vld [vmem:[%s393 + $0x1c8] sm:$0xff]
        %v521 = vld [vmem:[%s393 + $0x1d0] sm:$0xff]
        %v522 = vld [vmem:[%s393 + $0x1d8] sm:$0xff]
        %v523 = vld [vmem:[%s393 + $0x1e0] sm:$0xff]
        %v524 = vld [vmem:[%s393 + $0x1e8] sm:$0xff]
        %v525 = vld [vmem:[%s393 + $0x1f0] sm:$0xff]
        %v526 = vld [vmem:[%s393 + $0x1f8] sm:$0xff]
        %v527 = vld [vmem:[%s393 + $0x200] sm:$0xff]
        %v528 = vld [vmem:[%s393 + $0x208] sm:$0xff]
        %v529 = vld [vmem:[%s393 + $0x210] sm:$0xff]
        %v530 = vld [vmem:[%s393 + $0x218] sm:$0xff]
        %v531 = vld [vmem:[%s393 + $0x220] sm:$0xff]
        %v532 = vld [vmem:[%s393 + $0x228] sm:$0xff]
        %v533 = vld [vmem:[%s393 + $0x230] sm:$0xff]
        %v534 = vld [vmem:[%s393 + $0x238] sm:$0xff]
        %v535 = vld [vmem:[%s393 + $0x240] sm:$0xff]
        %v536 = vld [vmem:[%s393 + $0x248] sm:$0xff]
        %v537 = vld [vmem:[%s393 + $0x250] sm:$0xff]
        %v538 = vld [vmem:[%s393 + $0x258] sm:$0xff]
        %v539 = vld [vmem:[%s393 + $0x260] sm:$0xff]
        %v540 = vld [vmem:[%s393 + $0x268] sm:$0xff]
        %v541 = vld [vmem:[%s393 + $0x270] sm:$0xff]
        %v542 = vld [vmem:[%s393 + $0x278] sm:$0xff]
        %v543 = vld [vmem:[%s393 + $0x280] sm:$0xff]
        %v544 = vld [vmem:[%s393 + $0x288] sm:$0xff]
        %v545 = vld [vmem:[%s393 + $0x290] sm:$0xff]
        %v546 = vld [vmem:[%s393 + $0x298] sm:$0xff]
        %v547 = vld [vmem:[%s393 + $0x2a0] sm:$0xff]
        %v548 = vld [vmem:[%s393 + $0x2a8] sm:$0xff]
        %v549 = vld [vmem:[%s393 + $0x2b0] sm:$0xff]
        %v550 = vld [vmem:[%s393 + $0x2b8] sm:$0xff]
        %v551 = vld [vmem:[%s393 + $0x2c0] sm:$0xff]
        %v552 = vld [vmem:[%s393 + $0x2c8] sm:$0xff]
        %v553 = vld [vmem:[%s393 + $0x2d0] sm:$0xff]
        %v554 = vld [vmem:[%s393 + $0x2d8] sm:$0xff]
        %v555 = vld [vmem:[%s393 + $0x2e0] sm:$0xff]
        %v556 = vld [vmem:[%s393 + $0x2e8] sm:$0xff]
        %v557 = vld [vmem:[%s393 + $0x2f0] sm:$0xff]
        %v558 = vld [vmem:[%s393 + $0x2f8] sm:$0xff]
        %v559 = vld [vmem:[%s393 + $0x300] sm:$0xff]
        %v560 = vld [vmem:[%s393 + $0x308] sm:$0xff]
        %v561 = vld [vmem:[%s393 + $0x310] sm:$0xff]
        %v562 = vld [vmem:[%s393 + $0x318] sm:$0xff]
        %v563 = vld [vmem:[%s393 + $0x320] sm:$0xff]
        %v564 = vld [vmem:[%s393 + $0x328] sm:$0xff]
        %v565 = vld [vmem:[%s393 + $0x330] sm:$0xff]
        %v566 = vld [vmem:[%s393 + $0x338] sm:$0xff]
        %v567 = vld [vmem:[%s393 + $0x340] sm:$0xff]
        %v568 = vld [vmem:[%s393 + $0x348] sm:$0xff]
        %v569 = vld [vmem:[%s393 + $0x350] sm:$0xff]
        %v570 = vld [vmem:[%s393 + $0x358] sm:$0xff]
        %v571 = vld [vmem:[%s393 + $0x360] sm:$0xff]
        %v572 = vld [vmem:[%s393 + $0x368] sm:$0xff]
        %v573 = vld [vmem:[%s393 + $0x370] sm:$0xff]
        %v574 = vld [vmem:[%s393 + $0x378] sm:$0xff]
        %v575 = vld [vmem:[%s393 + $0x380] sm:$0xff]
        %v576 = vld [vmem:[%s393 + $0x388] sm:$0xff]
        %v577 = vld [vmem:[%s393 + $0x390] sm:$0xff]
        %v578 = vld [vmem:[%s393 + $0x398] sm:$0xff]
        %v579 = vld [vmem:[%s393 + $0x3a0] sm:$0xff]
        %v580 = vld [vmem:[%s393 + $0x3a8] sm:$0xff]
        %v581 = vld [vmem:[%s393 + $0x3b0] sm:$0xff]
        %v582 = vld [vmem:[%s393 + $0x3b8] sm:$0xff]
        %v583 = vld [vmem:[%s393 + $0x3c0] sm:$0xff]
        %v584 = vld [vmem:[%s393 + $0x3c8] sm:$0xff]
        %v585 = vld [vmem:[%s393 + $0x3d0] sm:$0xff]
        %v586 = vld [vmem:[%s393 + $0x3d8] sm:$0xff]
        %v587 = vld [vmem:[%s393 + $0x3e0] sm:$0xff]
        %v588 = vld [vmem:[%s393 + $0x3e8] sm:$0xff]
        %v589 = vld [vmem:[%s393 + $0x3f0] sm:$0xff]
        %v590 = vld [vmem:[%s393 + $0x3f8] sm:$0xff]
        %v591 = vpack.c.bf16 %v465, %v463
        %v592 = vpack.c.bf16 %v466, %v464
        %v593 = vpack.c.bf16 %v469, %v467
        %v594 = vpack.c.bf16 %v470, %v468
        %v595 = vpack.c.bf16 %v473, %v471
        %v596 = vpack.c.bf16 %v474, %v472
        %v597 = vpack.c.bf16 %v477, %v475
        %v598 = vpack.c.bf16 %v478, %v476
        %v599 = vpack.c.bf16 %v481, %v479
        %v600 = vpack.c.bf16 %v482, %v480
        %v601 = vpack.c.bf16 %v485, %v483
        %v602 = vpack.c.bf16 %v486, %v484
        %v603 = vpack.c.bf16 %v489, %v487
        %v604 = vpack.c.bf16 %v490, %v488
        %v605 = vpack.c.bf16 %v493, %v491
        %v606 = vpack.c.bf16 %v494, %v492
        %v607 = vpack.c.bf16 %v497, %v495
        %v608 = vpack.c.bf16 %v498, %v496
        %v609 = vpack.c.bf16 %v501, %v499
        %v610 = vpack.c.bf16 %v502, %v500
        %v611 = vpack.c.bf16 %v505, %v503
        %v612 = vpack.c.bf16 %v506, %v504
        %v613 = vpack.c.bf16 %v509, %v507
        %v614 = vpack.c.bf16 %v510, %v508
        %v615 = vpack.c.bf16 %v513, %v511
        %v616 = vpack.c.bf16 %v514, %v512
        %v617 = vpack.c.bf16 %v517, %v515
        %v618 = vpack.c.bf16 %v518, %v516
        %v619 = vpack.c.bf16 %v521, %v519
        %v620 = vpack.c.bf16 %v522, %v520
        %v621 = vpack.c.bf16 %v525, %v523
        %v622 = vpack.c.bf16 %v526, %v524
        %v623 = vpack.c.bf16 %v529, %v527
        %v624 = vpack.c.bf16 %v530, %v528
        %v625 = vpack.c.bf16 %v533, %v531
        %v626 = vpack.c.bf16 %v534, %v532
        %v627 = vpack.c.bf16 %v537, %v535
        %v628 = vpack.c.bf16 %v538, %v536
        %v629 = vpack.c.bf16 %v541, %v539
        %v630 = vpack.c.bf16 %v542, %v540
        %v631 = vpack.c.bf16 %v545, %v543
        %v632 = vpack.c.bf16 %v546, %v544
        %v633 = vpack.c.bf16 %v549, %v547
        %v634 = vpack.c.bf16 %v550, %v548
        %v635 = vpack.c.bf16 %v553, %v551
        %v636 = vpack.c.bf16 %v554, %v552
        %v637 = vpack.c.bf16 %v557, %v555
        %v638 = vpack.c.bf16 %v558, %v556
        %v639 = vpack.c.bf16 %v561, %v559
        %v640 = vpack.c.bf16 %v562, %v560
        %v641 = vpack.c.bf16 %v565, %v563
        %v642 = vpack.c.bf16 %v566, %v564
        %v643 = vpack.c.bf16 %v569, %v567
        %v644 = vpack.c.bf16 %v570, %v568
        %v645 = vpack.c.bf16 %v573, %v571
        %v646 = vpack.c.bf16 %v574, %v572
        %v647 = vpack.c.bf16 %v577, %v575
        %v648 = vpack.c.bf16 %v578, %v576
        %v649 = vpack.c.bf16 %v581, %v579
        %v650 = vpack.c.bf16 %v582, %v580
        %v651 = vpack.c.bf16 %v585, %v583
        %v652 = vpack.c.bf16 %v586, %v584
        %v653 = vpack.c.bf16 %v589, %v587
        %v654 = vpack.c.bf16 %v590, %v588
        %v655 = vld [vmem:[#allocation5] sm:$0xf]
        %v656 = vld [vmem:[#allocation5 + $0x4] sm:$0xf]
        %v657 = vld [vmem:[#allocation5 + $0x8] sm:$0xf]
        %v658 = vld [vmem:[#allocation5 + $0xc] sm:$0xf]
        %v659 = vld [vmem:[#allocation5 + $0x10] sm:$0xf]
        %v660 = vld [vmem:[#allocation5 + $0x14] sm:$0xf]
        %v661 = vld [vmem:[#allocation5 + $0x18] sm:$0xf]
        %v662 = vld [vmem:[#allocation5 + $0x1c] sm:$0xf]
        %v663 = vld [vmem:[#allocation5 + $0x20] sm:$0xf]
        %v664 = vld [vmem:[#allocation5 + $0x24] sm:$0xf]
        %v665 = vld [vmem:[#allocation5 + $0x28] sm:$0xf]
        %v666 = vld [vmem:[#allocation5 + $0x2c] sm:$0xf]
        %v667 = vld [vmem:[#allocation5 + $0x30] sm:$0xf]
        %v668 = vld [vmem:[#allocation5 + $0x34] sm:$0xf]
        %v669 = vld [vmem:[#allocation5 + $0x38] sm:$0xf]
        %v670 = vld [vmem:[#allocation5 + $0x3c] sm:$0xf]
        %v671 = vld [vmem:[#allocation5 + $0x40] sm:$0xf]
        %v672 = vld [vmem:[#allocation5 + $0x44] sm:$0xf]
        %v673 = vld [vmem:[#allocation5 + $0x48] sm:$0xf]
        %v674 = vld [vmem:[#allocation5 + $0x4c] sm:$0xf]
        %v675 = vld [vmem:[#allocation5 + $0x50] sm:$0xf]
        %v676 = vld [vmem:[#allocation5 + $0x54] sm:$0xf]
        %v677 = vld [vmem:[#allocation5 + $0x58] sm:$0xf]
        %v678 = vld [vmem:[#allocation5 + $0x5c] sm:$0xf]
        %v679 = vld [vmem:[#allocation5 + $0x60] sm:$0xf]
        %v680 = vld [vmem:[#allocation5 + $0x64] sm:$0xf]
        %v681 = vld [vmem:[#allocation5 + $0x68] sm:$0xf]
        %v682 = vld [vmem:[#allocation5 + $0x6c] sm:$0xf]
        %v683 = vld [vmem:[#allocation5 + $0x70] sm:$0xf]
        %v684 = vld [vmem:[#allocation5 + $0x74] sm:$0xf]
        %v685 = vld [vmem:[#allocation5 + $0x78] sm:$0xf]
        %v686 = vld [vmem:[#allocation5 + $0x7c] sm:$0xf]
        %v687 = vld [vmem:[#allocation7] sm:$0x1]
        %v689 = vlaneseq
        %v690 = vshrl.u32 %v689, 7
        %v691 = vsub.s32 0, %v690
        %v692 = vrot.slane %v687, %v691
        %v726 = vunpack.c.l.b16 %v655
        %v727 = vunpack.c.l.b16 %v656
        %v728 = vunpack.c.l.b16 %v657
        %v729 = vunpack.c.l.b16 %v658
        %v730 = vunpack.c.l.b16 %v659
        %v731 = vunpack.c.l.b16 %v660
        %v732 = vunpack.c.l.b16 %v661
        %v733 = vunpack.c.l.b16 %v662
        %v734 = vunpack.c.l.b16 %v663
        %v735 = vunpack.c.l.b16 %v664
        %v736 = vunpack.c.l.b16 %v665
        %v737 = vunpack.c.l.b16 %v666
        %v738 = vunpack.c.l.b16 %v667
        %v739 = vunpack.c.l.b16 %v668
        %v740 = vunpack.c.l.b16 %v669
        %v741 = vunpack.c.l.b16 %v670
        %v742 = vunpack.c.l.b16 %v671
        %v743 = vunpack.c.l.b16 %v672
        %v744 = vunpack.c.l.b16 %v673
        %v745 = vunpack.c.l.b16 %v674
        %v746 = vunpack.c.l.b16 %v675
        %v747 = vunpack.c.l.b16 %v676
        %v748 = vunpack.c.l.b16 %v677
        %v749 = vunpack.c.l.b16 %v678
        %v750 = vunpack.c.l.b16 %v679
        %v751 = vunpack.c.l.b16 %v680
        %v752 = vunpack.c.l.b16 %v681
        %v753 = vunpack.c.l.b16 %v682
        %v754 = vunpack.c.l.b16 %v683
        %v755 = vunpack.c.l.b16 %v684
        %v756 = vunpack.c.l.b16 %v685
        %v757 = vunpack.c.l.b16 %v686
        %v758 = vpack.c.b16 %v727, %v726
        %v759 = vpack.c.b16 %v729, %v728
        %v760 = vpack.c.b16 %v731, %v730
        %v761 = vpack.c.b16 %v733, %v732
        %v762 = vpack.c.b16 %v735, %v734
        %v763 = vpack.c.b16 %v737, %v736
        %v764 = vpack.c.b16 %v739, %v738
        %v765 = vpack.c.b16 %v741, %v740
        %v766 = vpack.c.b16 %v743, %v742
        %v767 = vpack.c.b16 %v745, %v744
        %v768 = vpack.c.b16 %v747, %v746
        %v769 = vpack.c.b16 %v749, %v748
        %v770 = vpack.c.b16 %v751, %v750
        %v771 = vpack.c.b16 %v753, %v752
        %v772 = vpack.c.b16 %v755, %v754
        %v773 = vpack.c.b16 %v757, %v756
        %790 = vmatprep.subr.bf16.mxu0 0
        %791 = vmatpush1.bf16.msra.mxu0 %v765
        %792 = vmatprep.subr.bf16.mxu0 0
        %793 = vmatpush1.bf16.msra.mxu0 %v764
        %794 = vmatprep.subr.bf16.mxu0 0
        %795 = vmatpush1.bf16.msra.mxu0 %v763
        %796 = vmatprep.subr.bf16.mxu0 0
        %797 = vmatpush1.bf16.msra.mxu0 %v762
        %798 = vmatprep.subr.bf16.mxu0 0
        %799 = vmatpush1.bf16.msra.mxu0 %v761
        %800 = vmatprep.subr.bf16.mxu0 0
        %801 = vmatpush1.bf16.msra.mxu0 %v760
        %802 = vmatprep.subr.bf16.mxu0 0
        %803 = vmatpush1.bf16.msra.mxu0 %v759
        %804 = vmatprep.subr.bf16.mxu0 0
        %805 = vmatpush1.bf16.msra.mxu0 %v758
        %806 = vmatprep.subr.bf16.mxu0 0
        %807 = vmatpush2.bf16.msra.mxu0 %v773
        %808 = vmatprep.subr.bf16.mxu0 0
        %809 = vmatpush2.bf16.msra.mxu0 %v772
        %810 = vmatprep.subr.bf16.mxu0 0
        %811 = vmatpush2.bf16.msra.mxu0 %v771
        %812 = vmatprep.subr.bf16.mxu0 0
        %813 = vmatpush2.bf16.msra.mxu0 %v770
        %814 = vmatprep.subr.bf16.mxu0 0
        %815 = vmatpush2.bf16.msra.mxu0 %v769
        %816 = vmatprep.subr.bf16.mxu0 0
        %817 = vmatpush2.bf16.msra.mxu0 %v768
        %818 = vmatprep.subr.bf16.mxu0 0
        %819 = vmatpush2.bf16.msra.mxu0 %v767
        %820 = vmatprep.subr.bf16.mxu0 0
        %821 = vmatpush2.bf16.msra.mxu0 %v766
        %822 = vmatprep.mubr.bf16.mxu0 %v592
        %823 = vmatmul.mubr.bf16.gmra.mxu0 %v591
        %v824 = vpop.f32.mrf.mxu0
        %v825 = vadd.f32 %v692, %v824
        %v826 = vpop.f32.mrf.mxu0
        %v827 = vpop.f32.mrf.mxu0
        %v828 = vadd.f32 %v692, %v827
        %v829 = vpop.f32.mrf.mxu0
        %830 = vmatprep.mubr.bf16.mxu0 %v594
        %831 = vmatmul.mubr.bf16.gmra.mxu0 %v593
        %v832 = vpop.f32.mrf.mxu0
        %v833 = vadd.f32 %v692, %v832
        %v834 = vpop.f32.mrf.mxu0
        %v835 = vpop.f32.mrf.mxu0
        %v836 = vadd.f32 %v692, %v835
        %v837 = vpop.f32.mrf.mxu0
        %838 = vmatprep.mubr.bf16.mxu0 %v596
        %839 = vmatmul.mubr.bf16.gmra.mxu0 %v595
        %v840 = vpop.f32.mrf.mxu0
        %v841 = vadd.f32 %v692, %v840
        %v842 = vpop.f32.mrf.mxu0
        %v843 = vpop.f32.mrf.mxu0
        %v844 = vadd.f32 %v692, %v843
        %v845 = vpop.f32.mrf.mxu0
        %846 = vmatprep.mubr.bf16.mxu0 %v598
        %847 = vmatmul.mubr.bf16.gmra.mxu0 %v597
        %v848 = vpop.f32.mrf.mxu0
        %v849 = vadd.f32 %v692, %v848
        %v850 = vpop.f32.mrf.mxu0
        %v851 = vpop.f32.mrf.mxu0
        %v852 = vadd.f32 %v692, %v851
        %v853 = vpop.f32.mrf.mxu0
        %854 = vmatprep.mubr.bf16.mxu0 %v600
        %855 = vmatmul.mubr.bf16.gmra.mxu0 %v599
        %v856 = vpop.f32.mrf.mxu0
        %v857 = vadd.f32 %v692, %v856
        %v858 = vpop.f32.mrf.mxu0
        %v859 = vpop.f32.mrf.mxu0
        %v860 = vadd.f32 %v692, %v859
        %v861 = vpop.f32.mrf.mxu0
        %862 = vmatprep.mubr.bf16.mxu0 %v602
        %863 = vmatmul.mubr.bf16.gmra.mxu0 %v601
        %v864 = vpop.f32.mrf.mxu0
        %v865 = vadd.f32 %v692, %v864
        %v866 = vpop.f32.mrf.mxu0
        %v867 = vpop.f32.mrf.mxu0
        %v868 = vadd.f32 %v692, %v867
        %v869 = vpop.f32.mrf.mxu0
        %870 = vmatprep.mubr.bf16.mxu0 %v604
        %871 = vmatmul.mubr.bf16.gmra.mxu0 %v603
        %v872 = vpop.f32.mrf.mxu0
        %v873 = vadd.f32 %v692, %v872
        %v874 = vpop.f32.mrf.mxu0
        %v875 = vpop.f32.mrf.mxu0
        %v876 = vadd.f32 %v692, %v875
        %v877 = vpop.f32.mrf.mxu0
        %878 = vmatprep.mubr.bf16.mxu0 %v606
        %879 = vmatmul.mubr.bf16.gmra.mxu0 %v605
        %v880 = vpop.f32.mrf.mxu0
        %v881 = vadd.f32 %v692, %v880
        %v882 = vpop.f32.mrf.mxu0
        %v883 = vpop.f32.mrf.mxu0
        %v884 = vadd.f32 %v692, %v883
        %v885 = vpop.f32.mrf.mxu0
        %886 = vmatprep.mubr.bf16.mxu0 %v608
        %887 = vmatmul.mubr.bf16.gmra.mxu0 %v607
        %v888 = vpop.f32.mrf.mxu0
        %v889 = vadd.f32 %v692, %v888
        %v890 = vpop.f32.mrf.mxu0
        %v891 = vpop.f32.mrf.mxu0
        %v892 = vadd.f32 %v692, %v891
        %v893 = vpop.f32.mrf.mxu0
        %894 = vmatprep.mubr.bf16.mxu0 %v610
        %895 = vmatmul.mubr.bf16.gmra.mxu0 %v609
        %v896 = vpop.f32.mrf.mxu0
        %v897 = vadd.f32 %v692, %v896
        %v898 = vpop.f32.mrf.mxu0
        %v899 = vpop.f32.mrf.mxu0
        %v900 = vadd.f32 %v692, %v899
        %v901 = vpop.f32.mrf.mxu0
        %902 = vmatprep.mubr.bf16.mxu0 %v612
        %903 = vmatmul.mubr.bf16.gmra.mxu0 %v611
        %v904 = vpop.f32.mrf.mxu0
        %v905 = vadd.f32 %v692, %v904
        %v906 = vpop.f32.mrf.mxu0
        %v907 = vpop.f32.mrf.mxu0
        %v908 = vadd.f32 %v692, %v907
        %v909 = vpop.f32.mrf.mxu0
        %910 = vmatprep.mubr.bf16.mxu0 %v614
        %911 = vmatmul.mubr.bf16.gmra.mxu0 %v613
        %v912 = vpop.f32.mrf.mxu0
        %v913 = vadd.f32 %v692, %v912
        %v914 = vpop.f32.mrf.mxu0
        %v915 = vpop.f32.mrf.mxu0
        %v916 = vadd.f32 %v692, %v915
        %v917 = vpop.f32.mrf.mxu0
        %918 = vmatprep.mubr.bf16.mxu0 %v616
        %919 = vmatmul.mubr.bf16.gmra.mxu0 %v615
        %v920 = vpop.f32.mrf.mxu0
        %v921 = vadd.f32 %v692, %v920
        %v922 = vpop.f32.mrf.mxu0
        %v923 = vpop.f32.mrf.mxu0
        %v924 = vadd.f32 %v692, %v923
        %v925 = vpop.f32.mrf.mxu0
        %926 = vmatprep.mubr.bf16.mxu0 %v618
        %927 = vmatmul.mubr.bf16.gmra.mxu0 %v617
        %v928 = vpop.f32.mrf.mxu0
        %v929 = vadd.f32 %v692, %v928
        %v930 = vpop.f32.mrf.mxu0
        %v931 = vpop.f32.mrf.mxu0
        %v932 = vadd.f32 %v692, %v931
        %v933 = vpop.f32.mrf.mxu0
        %934 = vmatprep.mubr.bf16.mxu0 %v620
        %935 = vmatmul.mubr.bf16.gmra.mxu0 %v619
        %v936 = vpop.f32.mrf.mxu0
        %v937 = vadd.f32 %v692, %v936
        %v938 = vpop.f32.mrf.mxu0
        %v939 = vpop.f32.mrf.mxu0
        %v940 = vadd.f32 %v692, %v939
        %v941 = vpop.f32.mrf.mxu0
        %942 = vmatprep.mubr.bf16.mxu0 %v622
        %943 = vmatmul.mubr.bf16.gmra.mxu0 %v621
        %v944 = vpop.f32.mrf.mxu0
        %v945 = vadd.f32 %v692, %v944
        %v946 = vpop.f32.mrf.mxu0
        %v947 = vpop.f32.mrf.mxu0
        %v948 = vadd.f32 %v692, %v947
        %v949 = vpop.f32.mrf.mxu0
        %950 = vmatprep.mubr.bf16.mxu0 %v624
        %951 = vmatmul.mubr.bf16.gmra.mxu0 %v623
        %v952 = vpop.f32.mrf.mxu0
        %v953 = vadd.f32 %v692, %v952
        %v954 = vpop.f32.mrf.mxu0
        %v955 = vpop.f32.mrf.mxu0
        %v956 = vadd.f32 %v692, %v955
        %v957 = vpop.f32.mrf.mxu0
        %958 = vmatprep.mubr.bf16.mxu0 %v626
        %959 = vmatmul.mubr.bf16.gmra.mxu0 %v625
        %v960 = vpop.f32.mrf.mxu0
        %v961 = vadd.f32 %v692, %v960
        %v962 = vpop.f32.mrf.mxu0
        %v963 = vpop.f32.mrf.mxu0
        %v964 = vadd.f32 %v692, %v963
        %v965 = vpop.f32.mrf.mxu0
        %966 = vmatprep.mubr.bf16.mxu0 %v628
        %967 = vmatmul.mubr.bf16.gmra.mxu0 %v627
        %v968 = vpop.f32.mrf.mxu0
        %v969 = vadd.f32 %v692, %v968
        %v970 = vpop.f32.mrf.mxu0
        %v971 = vpop.f32.mrf.mxu0
        %v972 = vadd.f32 %v692, %v971
        %v973 = vpop.f32.mrf.mxu0
        %974 = vmatprep.mubr.bf16.mxu0 %v630
        %975 = vmatmul.mubr.bf16.gmra.mxu0 %v629
        %v976 = vpop.f32.mrf.mxu0
        %v977 = vadd.f32 %v692, %v976
        %v978 = vpop.f32.mrf.mxu0
        %v979 = vpop.f32.mrf.mxu0
        %v980 = vadd.f32 %v692, %v979
        %v981 = vpop.f32.mrf.mxu0
        %982 = vmatprep.mubr.bf16.mxu0 %v632
        %983 = vmatmul.mubr.bf16.gmra.mxu0 %v631
        %v984 = vpop.f32.mrf.mxu0
        %v985 = vadd.f32 %v692, %v984
        %v986 = vpop.f32.mrf.mxu0
        %v987 = vpop.f32.mrf.mxu0
        %v988 = vadd.f32 %v692, %v987
        %v989 = vpop.f32.mrf.mxu0
        %990 = vmatprep.mubr.bf16.mxu0 %v634
        %991 = vmatmul.mubr.bf16.gmra.mxu0 %v633
        %v992 = vpop.f32.mrf.mxu0
        %v993 = vadd.f32 %v692, %v992
        %v994 = vpop.f32.mrf.mxu0
        %v995 = vpop.f32.mrf.mxu0
        %v996 = vadd.f32 %v692, %v995
        %v997 = vpop.f32.mrf.mxu0
        %998 = vmatprep.mubr.bf16.mxu0 %v636
        %999 = vmatmul.mubr.bf16.gmra.mxu0 %v635
        %v1000 = vpop.f32.mrf.mxu0
        %v1001 = vadd.f32 %v692, %v1000
        %v1002 = vpop.f32.mrf.mxu0
        %v1003 = vpop.f32.mrf.mxu0
        %v1004 = vadd.f32 %v692, %v1003
        %v1005 = vpop.f32.mrf.mxu0
        %1006 = vmatprep.mubr.bf16.mxu0 %v638
        %1007 = vmatmul.mubr.bf16.gmra.mxu0 %v637
        %v1008 = vpop.f32.mrf.mxu0
        %v1009 = vadd.f32 %v692, %v1008
        %v1010 = vpop.f32.mrf.mxu0
        %v1011 = vpop.f32.mrf.mxu0
        %v1012 = vadd.f32 %v692, %v1011
        %v1013 = vpop.f32.mrf.mxu0
        %1014 = vmatprep.mubr.bf16.mxu0 %v640
        %1015 = vmatmul.mubr.bf16.gmra.mxu0 %v639
        %v1016 = vpop.f32.mrf.mxu0
        %v1017 = vadd.f32 %v692, %v1016
        %v1018 = vpop.f32.mrf.mxu0
        %v1019 = vpop.f32.mrf.mxu0
        %v1020 = vadd.f32 %v692, %v1019
        %v1021 = vpop.f32.mrf.mxu0
        %1022 = vmatprep.mubr.bf16.mxu0 %v642
        %1023 = vmatmul.mubr.bf16.gmra.mxu0 %v641
        %v1024 = vpop.f32.mrf.mxu0
        %v1025 = vadd.f32 %v692, %v1024
        %v1026 = vpop.f32.mrf.mxu0
        %v1027 = vpop.f32.mrf.mxu0
        %v1028 = vadd.f32 %v692, %v1027
        %v1029 = vpop.f32.mrf.mxu0
        %1030 = vmatprep.mubr.bf16.mxu0 %v644
        %1031 = vmatmul.mubr.bf16.gmra.mxu0 %v643
        %v1032 = vpop.f32.mrf.mxu0
        %v1033 = vadd.f32 %v692, %v1032
        %v1034 = vpop.f32.mrf.mxu0
        %v1035 = vpop.f32.mrf.mxu0
        %v1036 = vadd.f32 %v692, %v1035
        %v1037 = vpop.f32.mrf.mxu0
        %1038 = vmatprep.mubr.bf16.mxu0 %v646
        %1039 = vmatmul.mubr.bf16.gmra.mxu0 %v645
        %v1040 = vpop.f32.mrf.mxu0
        %v1041 = vadd.f32 %v692, %v1040
        %v1042 = vpop.f32.mrf.mxu0
        %v1043 = vpop.f32.mrf.mxu0
        %v1044 = vadd.f32 %v692, %v1043
        %v1045 = vpop.f32.mrf.mxu0
        %1046 = vmatprep.mubr.bf16.mxu0 %v648
        %1047 = vmatmul.mubr.bf16.gmra.mxu0 %v647
        %v1048 = vpop.f32.mrf.mxu0
        %v1049 = vadd.f32 %v692, %v1048
        %v1050 = vpop.f32.mrf.mxu0
        %v1051 = vpop.f32.mrf.mxu0
        %v1052 = vadd.f32 %v692, %v1051
        %v1053 = vpop.f32.mrf.mxu0
        %1054 = vmatprep.mubr.bf16.mxu0 %v650
        %1055 = vmatmul.mubr.bf16.gmra.mxu0 %v649
        %v1056 = vpop.f32.mrf.mxu0
        %v1057 = vadd.f32 %v692, %v1056
        %v1058 = vpop.f32.mrf.mxu0
        %v1059 = vpop.f32.mrf.mxu0
        %v1060 = vadd.f32 %v692, %v1059
        %v1061 = vpop.f32.mrf.mxu0
        %1062 = vmatprep.mubr.bf16.mxu0 %v652
        %1063 = vmatmul.mubr.bf16.gmra.mxu0 %v651
        %v1064 = vpop.f32.mrf.mxu0
        %v1065 = vadd.f32 %v692, %v1064
        %v1066 = vpop.f32.mrf.mxu0
        %v1067 = vpop.f32.mrf.mxu0
        %v1068 = vadd.f32 %v692, %v1067
        %v1069 = vpop.f32.mrf.mxu0
        %1070 = vmatprep.mubr.bf16.mxu0 %v654
        %1071 = vmatmul.mubr.bf16.gmra.mxu0 %v653
        %v1072 = vpop.f32.mrf.mxu0
        %v1073 = vadd.f32 %v692, %v1072
        %v1074 = vpop.f32.mrf.mxu0
        %v1075 = vpop.f32.mrf.mxu0
        %v1076 = vadd.f32 %v692, %v1075
        %v1077 = vpop.f32.mrf.mxu0
        %1078 = vdwg.mxu0
        %v1079 = vmax.f32 %v825, 0.0
        %v1080 = vmax.f32 %v828, 0.0
        %v1081 = vmax.f32 %v833, 0.0
        %v1082 = vmax.f32 %v836, 0.0
        %v1083 = vmax.f32 %v841, 0.0
        %v1084 = vmax.f32 %v844, 0.0
        %v1085 = vmax.f32 %v849, 0.0
        %v1086 = vmax.f32 %v852, 0.0
        %v1087 = vmax.f32 %v857, 0.0
        %v1088 = vmax.f32 %v860, 0.0
        %v1089 = vmax.f32 %v865, 0.0
        %v1090 = vmax.f32 %v868, 0.0
        %v1091 = vmax.f32 %v873, 0.0
        %v1092 = vmax.f32 %v876, 0.0
        %v1093 = vmax.f32 %v881, 0.0
        %v1094 = vmax.f32 %v884, 0.0
        %v1095 = vmax.f32 %v889, 0.0
        %v1096 = vmax.f32 %v892, 0.0
        %v1097 = vmax.f32 %v897, 0.0
        %v1098 = vmax.f32 %v900, 0.0
        %v1099 = vmax.f32 %v905, 0.0
        %v1100 = vmax.f32 %v908, 0.0
        %v1101 = vmax.f32 %v913, 0.0
        %v1102 = vmax.f32 %v916, 0.0
        %v1103 = vmax.f32 %v921, 0.0
        %v1104 = vmax.f32 %v924, 0.0
        %v1105 = vmax.f32 %v929, 0.0
        %v1106 = vmax.f32 %v932, 0.0
        %v1107 = vmax.f32 %v937, 0.0
        %v1108 = vmax.f32 %v940, 0.0
        %v1109 = vmax.f32 %v945, 0.0
        %v1110 = vmax.f32 %v948, 0.0
        %v1111 = vmax.f32 %v953, 0.0
        %v1112 = vmax.f32 %v956, 0.0
        %v1113 = vmax.f32 %v961, 0.0
        %v1114 = vmax.f32 %v964, 0.0
        %v1115 = vmax.f32 %v969, 0.0
        %v1116 = vmax.f32 %v972, 0.0
        %v1117 = vmax.f32 %v977, 0.0
        %v1118 = vmax.f32 %v980, 0.0
        %v1119 = vmax.f32 %v985, 0.0
        %v1120 = vmax.f32 %v988, 0.0
        %v1121 = vmax.f32 %v993, 0.0
        %v1122 = vmax.f32 %v996, 0.0
        %v1123 = vmax.f32 %v1001, 0.0
        %v1124 = vmax.f32 %v1004, 0.0
        %v1125 = vmax.f32 %v1009, 0.0
        %v1126 = vmax.f32 %v1012, 0.0
        %v1127 = vmax.f32 %v1017, 0.0
        %v1128 = vmax.f32 %v1020, 0.0
        %v1129 = vmax.f32 %v1025, 0.0
        %v1130 = vmax.f32 %v1028, 0.0
        %v1131 = vmax.f32 %v1033, 0.0
        %v1132 = vmax.f32 %v1036, 0.0
        %v1133 = vmax.f32 %v1041, 0.0
        %v1134 = vmax.f32 %v1044, 0.0
        %v1135 = vmax.f32 %v1049, 0.0
        %v1136 = vmax.f32 %v1052, 0.0
        %v1137 = vmax.f32 %v1057, 0.0
        %v1138 = vmax.f32 %v1060, 0.0
        %v1139 = vmax.f32 %v1065, 0.0
        %v1140 = vmax.f32 %v1068, 0.0
        %v1141 = vmax.f32 %v1073, 0.0
        %v1142 = vmax.f32 %v1076, 0.0
        %v1143 = vpack.c.bf16 %v1080, %v1079
        %v1144 = vpack.c.bf16 %v1082, %v1081
        %v1145 = vpack.c.bf16 %v1084, %v1083
        %v1146 = vpack.c.bf16 %v1086, %v1085
        %v1147 = vpack.c.bf16 %v1088, %v1087
        %v1148 = vpack.c.bf16 %v1090, %v1089
        %v1149 = vpack.c.bf16 %v1092, %v1091
        %v1150 = vpack.c.bf16 %v1094, %v1093
        %v1151 = vpack.c.bf16 %v1096, %v1095
        %v1152 = vpack.c.bf16 %v1098, %v1097
        %v1153 = vpack.c.bf16 %v1100, %v1099
        %v1154 = vpack.c.bf16 %v1102, %v1101
        %v1155 = vpack.c.bf16 %v1104, %v1103
        %v1156 = vpack.c.bf16 %v1106, %v1105
        %v1157 = vpack.c.bf16 %v1108, %v1107
        %v1158 = vpack.c.bf16 %v1110, %v1109
        %v1159 = vpack.c.bf16 %v1112, %v1111
        %v1160 = vpack.c.bf16 %v1114, %v1113
        %v1161 = vpack.c.bf16 %v1116, %v1115
        %v1162 = vpack.c.bf16 %v1118, %v1117
        %v1163 = vpack.c.bf16 %v1120, %v1119
        %v1164 = vpack.c.bf16 %v1122, %v1121
        %v1165 = vpack.c.bf16 %v1124, %v1123
        %v1166 = vpack.c.bf16 %v1126, %v1125
        %v1167 = vpack.c.bf16 %v1128, %v1127
        %v1168 = vpack.c.bf16 %v1130, %v1129
        %v1169 = vpack.c.bf16 %v1132, %v1131
        %v1170 = vpack.c.bf16 %v1134, %v1133
        %v1171 = vpack.c.bf16 %v1136, %v1135
        %v1172 = vpack.c.bf16 %v1138, %v1137
        %v1173 = vpack.c.bf16 %v1140, %v1139
        %v1174 = vpack.c.bf16 %v1142, %v1141
        %v1175 = vld [vmem:[#allocation8] sm:$0xf]
        %v1176 = vld [vmem:[#allocation8 + $0x4] sm:$0xf]
        %v1177 = vld [vmem:[#allocation8 + $0x8] sm:$0xf]
        %v1178 = vld [vmem:[#allocation8 + $0xc] sm:$0xf]
        %v1179 = vld [vmem:[#allocation8 + $0x10] sm:$0xf]
        %v1180 = vld [vmem:[#allocation8 + $0x14] sm:$0xf]
        %v1181 = vld [vmem:[#allocation8 + $0x18] sm:$0xf]
        %v1182 = vld [vmem:[#allocation8 + $0x1c] sm:$0xf]
        %v1183 = vld [vmem:[#allocation8 + $0x20] sm:$0xf]
        %v1184 = vld [vmem:[#allocation8 + $0x24] sm:$0xf]
        %v1185 = vld [vmem:[#allocation8 + $0x28] sm:$0xf]
        %v1186 = vld [vmem:[#allocation8 + $0x2c] sm:$0xf]
        %v1187 = vld [vmem:[#allocation8 + $0x30] sm:$0xf]
        %v1188 = vld [vmem:[#allocation8 + $0x34] sm:$0xf]
        %v1189 = vld [vmem:[#allocation8 + $0x38] sm:$0xf]
        %v1190 = vld [vmem:[#allocation8 + $0x3c] sm:$0xf]
        %v1191 = vld [vmem:[#allocation10] sm:$0x1]
        %v1193 = vlaneseq
        %v1194 = vshrl.u32 %v1193, 7
        %v1195 = vsub.s32 0, %v1194
        %v1196 = vrot.slane %v1191, %v1195
        %v1214 = vunpack.c.l.b16 %v1175
        %v1215 = vunpack.c.l.b16 %v1176
        %v1216 = vunpack.c.l.b16 %v1177
        %v1217 = vunpack.c.l.b16 %v1178
        %v1218 = vunpack.c.l.b16 %v1179
        %v1219 = vunpack.c.l.b16 %v1180
        %v1220 = vunpack.c.l.b16 %v1181
        %v1221 = vunpack.c.l.b16 %v1182
        %v1222 = vunpack.c.l.b16 %v1183
        %v1223 = vunpack.c.l.b16 %v1184
        %v1224 = vunpack.c.l.b16 %v1185
        %v1225 = vunpack.c.l.b16 %v1186
        %v1226 = vunpack.c.l.b16 %v1187
        %v1227 = vunpack.c.l.b16 %v1188
        %v1228 = vunpack.c.l.b16 %v1189
        %v1229 = vunpack.c.l.b16 %v1190
        %v1230 = vpack.c.b16 %v1215, %v1214
        %v1231 = vpack.c.b16 %v1217, %v1216
        %v1232 = vpack.c.b16 %v1219, %v1218
        %v1233 = vpack.c.b16 %v1221, %v1220
        %v1234 = vpack.c.b16 %v1223, %v1222
        %v1235 = vpack.c.b16 %v1225, %v1224
        %v1236 = vpack.c.b16 %v1227, %v1226
        %v1237 = vpack.c.b16 %v1229, %v1228
        %1246 = vmatprep.subr.bf16.mxu0 0
        %1247 = vmatpush1.bf16.msra.mxu0 %v1237
        %1248 = vmatprep.subr.bf16.mxu0 0
        %1249 = vmatpush1.bf16.msra.mxu0 %v1236
        %1250 = vmatprep.subr.bf16.mxu0 0
        %1251 = vmatpush1.bf16.msra.mxu0 %v1235
        %1252 = vmatprep.subr.bf16.mxu0 0
        %1253 = vmatpush1.bf16.msra.mxu0 %v1234
        %1254 = vmatprep.subr.bf16.mxu0 0
        %1255 = vmatpush1.bf16.msra.mxu0 %v1233
        %1256 = vmatprep.subr.bf16.mxu0 0
        %1257 = vmatpush1.bf16.msra.mxu0 %v1232
        %1258 = vmatprep.subr.bf16.mxu0 0
        %1259 = vmatpush1.bf16.msra.mxu0 %v1231
        %1260 = vmatprep.subr.bf16.mxu0 0
        %1261 = vmatpush1.bf16.msra.mxu0 %v1230
        %1262 = vmatprep.subr.bf16.mxu0 0
        %1263 = vmatpush2.bf16.msra.mxu0 0
        %1264 = vmatprep.subr.bf16.mxu0 0
        %1265 = vmatpush2.bf16.msra.mxu0 0
        %1266 = vmatprep.subr.bf16.mxu0 0
        %1267 = vmatpush2.bf16.msra.mxu0 0
        %1268 = vmatprep.subr.bf16.mxu0 0
        %1269 = vmatpush2.bf16.msra.mxu0 0
        %1270 = vmatprep.subr.bf16.mxu0 0
        %1271 = vmatpush2.bf16.msra.mxu0 0
        %1272 = vmatprep.subr.bf16.mxu0 0
        %1273 = vmatpush2.bf16.msra.mxu0 0
        %1274 = vmatprep.subr.bf16.mxu0 0
        %1275 = vmatpush2.bf16.msra.mxu0 0
        %1276 = vmatprep.subr.bf16.mxu0 0
        %1277 = vmatpush2.bf16.msra.mxu0 0
        %1278 = vmatprep.mubr.bf16.mxu0 0
        %1279 = vmatmul.mubr.bf16.gmra.mxu0 %v1143
        %v1280 = vpop.f32.mrf.mxu0
        %v1281 = vadd.f32 %v1196, %v1280
        %v1282 = vpop.f32.mrf.mxu0
        %v1283 = vpop.f32.mrf.mxu0
        %v1284 = vadd.f32 %v1196, %v1283
        %v1285 = vpop.f32.mrf.mxu0
        %1286 = vmatprep.mubr.bf16.mxu0 0
        %1287 = vmatmul.mubr.bf16.gmra.mxu0 %v1144
        %v1288 = vpop.f32.mrf.mxu0
        %v1289 = vadd.f32 %v1196, %v1288
        %v1290 = vpop.f32.mrf.mxu0
        %v1291 = vpop.f32.mrf.mxu0
        %v1292 = vadd.f32 %v1196, %v1291
        %v1293 = vpop.f32.mrf.mxu0
        %1294 = vmatprep.mubr.bf16.mxu0 0
        %1295 = vmatmul.mubr.bf16.gmra.mxu0 %v1145
        %v1296 = vpop.f32.mrf.mxu0
        %v1297 = vadd.f32 %v1196, %v1296
        %v1298 = vpop.f32.mrf.mxu0
        %v1299 = vpop.f32.mrf.mxu0
        %v1300 = vadd.f32 %v1196, %v1299
        %v1301 = vpop.f32.mrf.mxu0
        %1302 = vmatprep.mubr.bf16.mxu0 0
        %1303 = vmatmul.mubr.bf16.gmra.mxu0 %v1146
        %v1304 = vpop.f32.mrf.mxu0
        %v1305 = vadd.f32 %v1196, %v1304
        %v1306 = vpop.f32.mrf.mxu0
        %v1307 = vpop.f32.mrf.mxu0
        %v1308 = vadd.f32 %v1196, %v1307
        %v1309 = vpop.f32.mrf.mxu0
        %1310 = vmatprep.mubr.bf16.mxu0 0
        %1311 = vmatmul.mubr.bf16.gmra.mxu0 %v1147
        %v1312 = vpop.f32.mrf.mxu0
        %v1313 = vadd.f32 %v1196, %v1312
        %v1314 = vpop.f32.mrf.mxu0
        %v1315 = vpop.f32.mrf.mxu0
        %v1316 = vadd.f32 %v1196, %v1315
        %v1317 = vpop.f32.mrf.mxu0
        %1318 = vmatprep.mubr.bf16.mxu0 0
        %1319 = vmatmul.mubr.bf16.gmra.mxu0 %v1148
        %v1320 = vpop.f32.mrf.mxu0
        %v1321 = vadd.f32 %v1196, %v1320
        %v1322 = vpop.f32.mrf.mxu0
        %v1323 = vpop.f32.mrf.mxu0
        %v1324 = vadd.f32 %v1196, %v1323
        %v1325 = vpop.f32.mrf.mxu0
        %1326 = vmatprep.mubr.bf16.mxu0 0
        %1327 = vmatmul.mubr.bf16.gmra.mxu0 %v1149
        %v1328 = vpop.f32.mrf.mxu0
        %v1329 = vadd.f32 %v1196, %v1328
        %v1330 = vpop.f32.mrf.mxu0
        %v1331 = vpop.f32.mrf.mxu0
        %v1332 = vadd.f32 %v1196, %v1331
        %v1333 = vpop.f32.mrf.mxu0
        %1334 = vmatprep.mubr.bf16.mxu0 0
        %1335 = vmatmul.mubr.bf16.gmra.mxu0 %v1150
        %v1336 = vpop.f32.mrf.mxu0
        %v1337 = vadd.f32 %v1196, %v1336
        %v1338 = vpop.f32.mrf.mxu0
        %v1339 = vpop.f32.mrf.mxu0
        %v1340 = vadd.f32 %v1196, %v1339
        %v1341 = vpop.f32.mrf.mxu0
        %1342 = vmatprep.mubr.bf16.mxu0 0
        %1343 = vmatmul.mubr.bf16.gmra.mxu0 %v1151
        %v1344 = vpop.f32.mrf.mxu0
        %v1345 = vadd.f32 %v1196, %v1344
        %v1346 = vpop.f32.mrf.mxu0
        %v1347 = vpop.f32.mrf.mxu0
        %v1348 = vadd.f32 %v1196, %v1347
        %v1349 = vpop.f32.mrf.mxu0
        %1350 = vmatprep.mubr.bf16.mxu0 0
        %1351 = vmatmul.mubr.bf16.gmra.mxu0 %v1152
        %v1352 = vpop.f32.mrf.mxu0
        %v1353 = vadd.f32 %v1196, %v1352
        %v1354 = vpop.f32.mrf.mxu0
        %v1355 = vpop.f32.mrf.mxu0
        %v1356 = vadd.f32 %v1196, %v1355
        %v1357 = vpop.f32.mrf.mxu0
        %1358 = vmatprep.mubr.bf16.mxu0 0
        %1359 = vmatmul.mubr.bf16.gmra.mxu0 %v1153
        %v1360 = vpop.f32.mrf.mxu0
        %v1361 = vadd.f32 %v1196, %v1360
        %v1362 = vpop.f32.mrf.mxu0
        %v1363 = vpop.f32.mrf.mxu0
        %v1364 = vadd.f32 %v1196, %v1363
        %v1365 = vpop.f32.mrf.mxu0
        %1366 = vmatprep.mubr.bf16.mxu0 0
        %1367 = vmatmul.mubr.bf16.gmra.mxu0 %v1154
        %v1368 = vpop.f32.mrf.mxu0
        %v1369 = vadd.f32 %v1196, %v1368
        %v1370 = vpop.f32.mrf.mxu0
        %v1371 = vpop.f32.mrf.mxu0
        %v1372 = vadd.f32 %v1196, %v1371
        %v1373 = vpop.f32.mrf.mxu0
        %1374 = vmatprep.mubr.bf16.mxu0 0
        %1375 = vmatmul.mubr.bf16.gmra.mxu0 %v1155
        %v1376 = vpop.f32.mrf.mxu0
        %v1377 = vadd.f32 %v1196, %v1376
        %v1378 = vpop.f32.mrf.mxu0
        %v1379 = vpop.f32.mrf.mxu0
        %v1380 = vadd.f32 %v1196, %v1379
        %v1381 = vpop.f32.mrf.mxu0
        %1382 = vmatprep.mubr.bf16.mxu0 0
        %1383 = vmatmul.mubr.bf16.gmra.mxu0 %v1156
        %v1384 = vpop.f32.mrf.mxu0
        %v1385 = vadd.f32 %v1196, %v1384
        %v1386 = vpop.f32.mrf.mxu0
        %v1387 = vpop.f32.mrf.mxu0
        %v1388 = vadd.f32 %v1196, %v1387
        %v1389 = vpop.f32.mrf.mxu0
        %1390 = vmatprep.mubr.bf16.mxu0 0
        %1391 = vmatmul.mubr.bf16.gmra.mxu0 %v1157
        %v1392 = vpop.f32.mrf.mxu0
        %v1393 = vadd.f32 %v1196, %v1392
        %v1394 = vpop.f32.mrf.mxu0
        %v1395 = vpop.f32.mrf.mxu0
        %v1396 = vadd.f32 %v1196, %v1395
        %v1397 = vpop.f32.mrf.mxu0
        %1398 = vmatprep.mubr.bf16.mxu0 0
        %1399 = vmatmul.mubr.bf16.gmra.mxu0 %v1158
        %v1400 = vpop.f32.mrf.mxu0
        %v1401 = vadd.f32 %v1196, %v1400
        %v1402 = vpop.f32.mrf.mxu0
        %v1403 = vpop.f32.mrf.mxu0
        %v1404 = vadd.f32 %v1196, %v1403
        %v1405 = vpop.f32.mrf.mxu0
        %1406 = vmatprep.mubr.bf16.mxu0 0
        %1407 = vmatmul.mubr.bf16.gmra.mxu0 %v1159
        %v1408 = vpop.f32.mrf.mxu0
        %v1409 = vadd.f32 %v1196, %v1408
        %v1410 = vpop.f32.mrf.mxu0
        %v1411 = vpop.f32.mrf.mxu0
        %v1412 = vadd.f32 %v1196, %v1411
        %v1413 = vpop.f32.mrf.mxu0
        %1414 = vmatprep.mubr.bf16.mxu0 0
        %1415 = vmatmul.mubr.bf16.gmra.mxu0 %v1160
        %v1416 = vpop.f32.mrf.mxu0
        %v1417 = vadd.f32 %v1196, %v1416
        %v1418 = vpop.f32.mrf.mxu0
        %v1419 = vpop.f32.mrf.mxu0
        %v1420 = vadd.f32 %v1196, %v1419
        %v1421 = vpop.f32.mrf.mxu0
        %1422 = vmatprep.mubr.bf16.mxu0 0
        %1423 = vmatmul.mubr.bf16.gmra.mxu0 %v1161
        %v1424 = vpop.f32.mrf.mxu0
        %v1425 = vadd.f32 %v1196, %v1424
        %v1426 = vpop.f32.mrf.mxu0
        %v1427 = vpop.f32.mrf.mxu0
        %v1428 = vadd.f32 %v1196, %v1427
        %v1429 = vpop.f32.mrf.mxu0
        %1430 = vmatprep.mubr.bf16.mxu0 0
        %1431 = vmatmul.mubr.bf16.gmra.mxu0 %v1162
        %v1432 = vpop.f32.mrf.mxu0
        %v1433 = vadd.f32 %v1196, %v1432
        %v1434 = vpop.f32.mrf.mxu0
        %v1435 = vpop.f32.mrf.mxu0
        %v1436 = vadd.f32 %v1196, %v1435
        %v1437 = vpop.f32.mrf.mxu0
        %1438 = vmatprep.mubr.bf16.mxu0 0
        %1439 = vmatmul.mubr.bf16.gmra.mxu0 %v1163
        %v1440 = vpop.f32.mrf.mxu0
        %v1441 = vadd.f32 %v1196, %v1440
        %v1442 = vpop.f32.mrf.mxu0
        %v1443 = vpop.f32.mrf.mxu0
        %v1444 = vadd.f32 %v1196, %v1443
        %v1445 = vpop.f32.mrf.mxu0
        %1446 = vmatprep.mubr.bf16.mxu0 0
        %1447 = vmatmul.mubr.bf16.gmra.mxu0 %v1164
        %v1448 = vpop.f32.mrf.mxu0
        %v1449 = vadd.f32 %v1196, %v1448
        %v1450 = vpop.f32.mrf.mxu0
        %v1451 = vpop.f32.mrf.mxu0
        %v1452 = vadd.f32 %v1196, %v1451
        %v1453 = vpop.f32.mrf.mxu0
        %1454 = vmatprep.mubr.bf16.mxu0 0
        %1455 = vmatmul.mubr.bf16.gmra.mxu0 %v1165
        %v1456 = vpop.f32.mrf.mxu0
        %v1457 = vadd.f32 %v1196, %v1456
        %v1458 = vpop.f32.mrf.mxu0
        %v1459 = vpop.f32.mrf.mxu0
        %v1460 = vadd.f32 %v1196, %v1459
        %v1461 = vpop.f32.mrf.mxu0
        %1462 = vmatprep.mubr.bf16.mxu0 0
        %1463 = vmatmul.mubr.bf16.gmra.mxu0 %v1166
        %v1464 = vpop.f32.mrf.mxu0
        %v1465 = vadd.f32 %v1196, %v1464
        %v1466 = vpop.f32.mrf.mxu0
        %v1467 = vpop.f32.mrf.mxu0
        %v1468 = vadd.f32 %v1196, %v1467
        %v1469 = vpop.f32.mrf.mxu0
        %1470 = vmatprep.mubr.bf16.mxu0 0
        %1471 = vmatmul.mubr.bf16.gmra.mxu0 %v1167
        %v1472 = vpop.f32.mrf.mxu0
        %v1473 = vadd.f32 %v1196, %v1472
        %v1474 = vpop.f32.mrf.mxu0
        %v1475 = vpop.f32.mrf.mxu0
        %v1476 = vadd.f32 %v1196, %v1475
        %v1477 = vpop.f32.mrf.mxu0
        %1478 = vmatprep.mubr.bf16.mxu0 0
        %1479 = vmatmul.mubr.bf16.gmra.mxu0 %v1168
        %v1480 = vpop.f32.mrf.mxu0
        %v1481 = vadd.f32 %v1196, %v1480
        %v1482 = vpop.f32.mrf.mxu0
        %v1483 = vpop.f32.mrf.mxu0
        %v1484 = vadd.f32 %v1196, %v1483
        %v1485 = vpop.f32.mrf.mxu0
        %1486 = vmatprep.mubr.bf16.mxu0 0
        %1487 = vmatmul.mubr.bf16.gmra.mxu0 %v1169
        %v1488 = vpop.f32.mrf.mxu0
        %v1489 = vadd.f32 %v1196, %v1488
        %v1490 = vpop.f32.mrf.mxu0
        %v1491 = vpop.f32.mrf.mxu0
        %v1492 = vadd.f32 %v1196, %v1491
        %v1493 = vpop.f32.mrf.mxu0
        %1494 = vmatprep.mubr.bf16.mxu0 0
        %1495 = vmatmul.mubr.bf16.gmra.mxu0 %v1170
        %v1496 = vpop.f32.mrf.mxu0
        %v1497 = vadd.f32 %v1196, %v1496
        %v1498 = vpop.f32.mrf.mxu0
        %v1499 = vpop.f32.mrf.mxu0
        %v1500 = vadd.f32 %v1196, %v1499
        %v1501 = vpop.f32.mrf.mxu0
        %1502 = vmatprep.mubr.bf16.mxu0 0
        %1503 = vmatmul.mubr.bf16.gmra.mxu0 %v1171
        %v1504 = vpop.f32.mrf.mxu0
        %v1505 = vadd.f32 %v1196, %v1504
        %v1506 = vpop.f32.mrf.mxu0
        %v1507 = vpop.f32.mrf.mxu0
        %v1508 = vadd.f32 %v1196, %v1507
        %v1509 = vpop.f32.mrf.mxu0
        %1510 = vmatprep.mubr.bf16.mxu0 0
        %1511 = vmatmul.mubr.bf16.gmra.mxu0 %v1172
        %v1512 = vpop.f32.mrf.mxu0
        %v1513 = vadd.f32 %v1196, %v1512
        %v1514 = vpop.f32.mrf.mxu0
        %v1515 = vpop.f32.mrf.mxu0
        %v1516 = vadd.f32 %v1196, %v1515
        %v1517 = vpop.f32.mrf.mxu0
        %1518 = vmatprep.mubr.bf16.mxu0 0
        %1519 = vmatmul.mubr.bf16.gmra.mxu0 %v1173
        %v1520 = vpop.f32.mrf.mxu0
        %v1521 = vadd.f32 %v1196, %v1520
        %v1522 = vpop.f32.mrf.mxu0
        %v1523 = vpop.f32.mrf.mxu0
        %v1524 = vadd.f32 %v1196, %v1523
        %v1525 = vpop.f32.mrf.mxu0
        %1526 = vmatprep.mubr.bf16.mxu0 0
        %1527 = vmatmul.mubr.bf16.gmra.mxu0 %v1174
        %v1528 = vpop.f32.mrf.mxu0
        %v1529 = vadd.f32 %v1196, %v1528
        %v1530 = vpop.f32.mrf.mxu0
        %v1531 = vpop.f32.mrf.mxu0
        %v1532 = vadd.f32 %v1196, %v1531
        %v1533 = vpop.f32.mrf.mxu0
        %1534 = vdwg.mxu0
        %v1535 = vmax.f32 %v1281, 0.0
        %v1536 = vmax.f32 %v1284, 0.0
        %v1537 = vmax.f32 %v1289, 0.0
        %v1538 = vmax.f32 %v1292, 0.0
        %v1539 = vmax.f32 %v1297, 0.0
        %v1540 = vmax.f32 %v1300, 0.0
        %v1541 = vmax.f32 %v1305, 0.0
        %v1542 = vmax.f32 %v1308, 0.0
        %v1543 = vmax.f32 %v1313, 0.0
        %v1544 = vmax.f32 %v1316, 0.0
        %v1545 = vmax.f32 %v1321, 0.0
        %v1546 = vmax.f32 %v1324, 0.0
        %v1547 = vmax.f32 %v1329, 0.0
        %v1548 = vmax.f32 %v1332, 0.0
        %v1549 = vmax.f32 %v1337, 0.0
        %v1550 = vmax.f32 %v1340, 0.0
        %v1551 = vmax.f32 %v1345, 0.0
        %v1552 = vmax.f32 %v1348, 0.0
        %v1553 = vmax.f32 %v1353, 0.0
        %v1554 = vmax.f32 %v1356, 0.0
        %v1555 = vmax.f32 %v1361, 0.0
        %v1556 = vmax.f32 %v1364, 0.0
        %v1557 = vmax.f32 %v1369, 0.0
        %v1558 = vmax.f32 %v1372, 0.0
        %v1559 = vmax.f32 %v1377, 0.0
        %v1560 = vmax.f32 %v1380, 0.0
        %v1561 = vmax.f32 %v1385, 0.0
        %v1562 = vmax.f32 %v1388, 0.0
        %v1563 = vmax.f32 %v1393, 0.0
        %v1564 = vmax.f32 %v1396, 0.0
        %v1565 = vmax.f32 %v1401, 0.0
        %v1566 = vmax.f32 %v1404, 0.0
        %v1567 = vmax.f32 %v1409, 0.0
        %v1568 = vmax.f32 %v1412, 0.0
        %v1569 = vmax.f32 %v1417, 0.0
        %v1570 = vmax.f32 %v1420, 0.0
        %v1571 = vmax.f32 %v1425, 0.0
        %v1572 = vmax.f32 %v1428, 0.0
        %v1573 = vmax.f32 %v1433, 0.0
        %v1574 = vmax.f32 %v1436, 0.0
        %v1575 = vmax.f32 %v1441, 0.0
        %v1576 = vmax.f32 %v1444, 0.0
        %v1577 = vmax.f32 %v1449, 0.0
        %v1578 = vmax.f32 %v1452, 0.0
        %v1579 = vmax.f32 %v1457, 0.0
        %v1580 = vmax.f32 %v1460, 0.0
        %v1581 = vmax.f32 %v1465, 0.0
        %v1582 = vmax.f32 %v1468, 0.0
        %v1583 = vmax.f32 %v1473, 0.0
        %v1584 = vmax.f32 %v1476, 0.0
        %v1585 = vmax.f32 %v1481, 0.0
        %v1586 = vmax.f32 %v1484, 0.0
        %v1587 = vmax.f32 %v1489, 0.0
        %v1588 = vmax.f32 %v1492, 0.0
        %v1589 = vmax.f32 %v1497, 0.0
        %v1590 = vmax.f32 %v1500, 0.0
        %v1591 = vmax.f32 %v1505, 0.0
        %v1592 = vmax.f32 %v1508, 0.0
        %v1593 = vmax.f32 %v1513, 0.0
        %v1594 = vmax.f32 %v1516, 0.0
        %v1595 = vmax.f32 %v1521, 0.0
        %v1596 = vmax.f32 %v1524, 0.0
        %v1597 = vmax.f32 %v1529, 0.0
        %v1598 = vmax.f32 %v1532, 0.0
        %v1599 = vpack.c.bf16 %v1536, %v1535
        %v1600 = vpack.c.bf16 %v1538, %v1537
        %v1601 = vpack.c.bf16 %v1540, %v1539
        %v1602 = vpack.c.bf16 %v1542, %v1541
        %v1603 = vpack.c.bf16 %v1544, %v1543
        %v1604 = vpack.c.bf16 %v1546, %v1545
        %v1605 = vpack.c.bf16 %v1548, %v1547
        %v1606 = vpack.c.bf16 %v1550, %v1549
        %v1607 = vpack.c.bf16 %v1552, %v1551
        %v1608 = vpack.c.bf16 %v1554, %v1553
        %v1609 = vpack.c.bf16 %v1556, %v1555
        %v1610 = vpack.c.bf16 %v1558, %v1557
        %v1611 = vpack.c.bf16 %v1560, %v1559
        %v1612 = vpack.c.bf16 %v1562, %v1561
        %v1613 = vpack.c.bf16 %v1564, %v1563
        %v1614 = vpack.c.bf16 %v1566, %v1565
        %v1615 = vpack.c.bf16 %v1568, %v1567
        %v1616 = vpack.c.bf16 %v1570, %v1569
        %v1617 = vpack.c.bf16 %v1572, %v1571
        %v1618 = vpack.c.bf16 %v1574, %v1573
        %v1619 = vpack.c.bf16 %v1576, %v1575
        %v1620 = vpack.c.bf16 %v1578, %v1577
        %v1621 = vpack.c.bf16 %v1580, %v1579
        %v1622 = vpack.c.bf16 %v1582, %v1581
        %v1623 = vpack.c.bf16 %v1584, %v1583
        %v1624 = vpack.c.bf16 %v1586, %v1585
        %v1625 = vpack.c.bf16 %v1588, %v1587
        %v1626 = vpack.c.bf16 %v1590, %v1589
        %v1627 = vpack.c.bf16 %v1592, %v1591
        %v1628 = vpack.c.bf16 %v1594, %v1593
        %v1629 = vpack.c.bf16 %v1596, %v1595
        %v1630 = vpack.c.bf16 %v1598, %v1597
        %v1631 = vld [vmem:[#allocation11] sm:$0xf]
        %v1632 = vld [vmem:[#allocation11 + $0x4] sm:$0xf]
        %v1633 = vld [vmem:[#allocation11 + $0x8] sm:$0xf]
        %v1634 = vld [vmem:[#allocation11 + $0xc] sm:$0xf]
        %v1635 = vld [vmem:[#allocation11 + $0x10] sm:$0xf]
        %v1636 = vld [vmem:[#allocation11 + $0x14] sm:$0xf]
        %v1637 = vld [vmem:[#allocation11 + $0x18] sm:$0xf]
        %v1638 = vld [vmem:[#allocation11 + $0x1c] sm:$0xf]
        %v1639 = vld [vmem:[#allocation11 + $0x20] sm:$0xf]
        %v1640 = vld [vmem:[#allocation11 + $0x24] sm:$0xf]
        %v1641 = vld [vmem:[#allocation11 + $0x28] sm:$0xf]
        %v1642 = vld [vmem:[#allocation11 + $0x2c] sm:$0xf]
        %v1643 = vld [vmem:[#allocation11 + $0x30] sm:$0xf]
        %v1644 = vld [vmem:[#allocation11 + $0x34] sm:$0xf]
        %v1645 = vld [vmem:[#allocation11 + $0x38] sm:$0xf]
        %v1646 = vld [vmem:[#allocation11 + $0x3c] sm:$0xf]
        %v1647 = vld [vmem:[#allocation13] sm:$0x1]
        %v1649 = vlaneseq
        %v1650 = vshrl.u32 %v1649, 7
        %v1651 = vsub.s32 0, %v1650
        %v1652 = vrot.slane %v1647, %v1651
        %v1670 = vunpack.c.l.b16 %v1631
        %v1671 = vunpack.c.l.b16 %v1632
        %v1672 = vunpack.c.l.b16 %v1633
        %v1673 = vunpack.c.l.b16 %v1634
        %v1674 = vunpack.c.l.b16 %v1635
        %v1675 = vunpack.c.l.b16 %v1636
        %v1676 = vunpack.c.l.b16 %v1637
        %v1677 = vunpack.c.l.b16 %v1638
        %v1678 = vunpack.c.l.b16 %v1639
        %v1679 = vunpack.c.l.b16 %v1640
        %v1680 = vunpack.c.l.b16 %v1641
        %v1681 = vunpack.c.l.b16 %v1642
        %v1682 = vunpack.c.l.b16 %v1643
        %v1683 = vunpack.c.l.b16 %v1644
        %v1684 = vunpack.c.l.b16 %v1645
        %v1685 = vunpack.c.l.b16 %v1646
        %v1686 = vpack.c.b16 %v1671, %v1670
        %v1687 = vpack.c.b16 %v1673, %v1672
        %v1688 = vpack.c.b16 %v1675, %v1674
        %v1689 = vpack.c.b16 %v1677, %v1676
        %v1690 = vpack.c.b16 %v1679, %v1678
        %v1691 = vpack.c.b16 %v1681, %v1680
        %v1692 = vpack.c.b16 %v1683, %v1682
        %v1693 = vpack.c.b16 %v1685, %v1684
        %1702 = vmatprep.subr.bf16.mxu0 0
        %1703 = vmatpush1.bf16.msra.mxu0 %v1693
        %1704 = vmatprep.subr.bf16.mxu0 0
        %1705 = vmatpush1.bf16.msra.mxu0 %v1692
        %1706 = vmatprep.subr.bf16.mxu0 0
        %1707 = vmatpush1.bf16.msra.mxu0 %v1691
        %1708 = vmatprep.subr.bf16.mxu0 0
        %1709 = vmatpush1.bf16.msra.mxu0 %v1690
        %1710 = vmatprep.subr.bf16.mxu0 0
        %1711 = vmatpush1.bf16.msra.mxu0 %v1689
        %1712 = vmatprep.subr.bf16.mxu0 0
        %1713 = vmatpush1.bf16.msra.mxu0 %v1688
        %1714 = vmatprep.subr.bf16.mxu0 0
        %1715 = vmatpush1.bf16.msra.mxu0 %v1687
        %1716 = vmatprep.subr.bf16.mxu0 0
        %1717 = vmatpush1.bf16.msra.mxu0 %v1686
        %1718 = vmatprep.subr.bf16.mxu0 0
        %1719 = vmatpush2.bf16.msra.mxu0 0
        %1720 = vmatprep.subr.bf16.mxu0 0
        %1721 = vmatpush2.bf16.msra.mxu0 0
        %1722 = vmatprep.subr.bf16.mxu0 0
        %1723 = vmatpush2.bf16.msra.mxu0 0
        %1724 = vmatprep.subr.bf16.mxu0 0
        %1725 = vmatpush2.bf16.msra.mxu0 0
        %1726 = vmatprep.subr.bf16.mxu0 0
        %1727 = vmatpush2.bf16.msra.mxu0 0
        %1728 = vmatprep.subr.bf16.mxu0 0
        %1729 = vmatpush2.bf16.msra.mxu0 0
        %1730 = vmatprep.subr.bf16.mxu0 0
        %1731 = vmatpush2.bf16.msra.mxu0 0
        %1732 = vmatprep.subr.bf16.mxu0 0
        %1733 = vmatpush2.bf16.msra.mxu0 0
        %1734 = vmatprep.mubr.bf16.mxu0 0
        %1735 = vmatmul.mubr.bf16.gmra.mxu0 %v1599
        %v1736 = vpop.f32.mrf.mxu0
        %v1737 = vadd.f32 %v1652, %v1736
        %v1738 = vpop.f32.mrf.mxu0
        %v1739 = vpop.f32.mrf.mxu0
        %v1740 = vadd.f32 %v1652, %v1739
        %v1741 = vpop.f32.mrf.mxu0
        %1742 = vmatprep.mubr.bf16.mxu0 0
        %1743 = vmatmul.mubr.bf16.gmra.mxu0 %v1600
        %v1744 = vpop.f32.mrf.mxu0
        %v1745 = vadd.f32 %v1652, %v1744
        %v1746 = vpop.f32.mrf.mxu0
        %v1747 = vpop.f32.mrf.mxu0
        %v1748 = vadd.f32 %v1652, %v1747
        %v1749 = vpop.f32.mrf.mxu0
        %1750 = vmatprep.mubr.bf16.mxu0 0
        %1751 = vmatmul.mubr.bf16.gmra.mxu0 %v1601
        %v1752 = vpop.f32.mrf.mxu0
        %v1753 = vadd.f32 %v1652, %v1752
        %v1754 = vpop.f32.mrf.mxu0
        %v1755 = vpop.f32.mrf.mxu0
        %v1756 = vadd.f32 %v1652, %v1755
        %v1757 = vpop.f32.mrf.mxu0
        %1758 = vmatprep.mubr.bf16.mxu0 0
        %1759 = vmatmul.mubr.bf16.gmra.mxu0 %v1602
        %v1760 = vpop.f32.mrf.mxu0
        %v1761 = vadd.f32 %v1652, %v1760
        %v1762 = vpop.f32.mrf.mxu0
        %v1763 = vpop.f32.mrf.mxu0
        %v1764 = vadd.f32 %v1652, %v1763
        %v1765 = vpop.f32.mrf.mxu0
        %1766 = vmatprep.mubr.bf16.mxu0 0
        %1767 = vmatmul.mubr.bf16.gmra.mxu0 %v1603
        %v1768 = vpop.f32.mrf.mxu0
        %v1769 = vadd.f32 %v1652, %v1768
        %v1770 = vpop.f32.mrf.mxu0
        %v1771 = vpop.f32.mrf.mxu0
        %v1772 = vadd.f32 %v1652, %v1771
        %v1773 = vpop.f32.mrf.mxu0
        %1774 = vmatprep.mubr.bf16.mxu0 0
        %1775 = vmatmul.mubr.bf16.gmra.mxu0 %v1604
        %v1776 = vpop.f32.mrf.mxu0
        %v1777 = vadd.f32 %v1652, %v1776
        %v1778 = vpop.f32.mrf.mxu0
        %v1779 = vpop.f32.mrf.mxu0
        %v1780 = vadd.f32 %v1652, %v1779
        %v1781 = vpop.f32.mrf.mxu0
        %1782 = vmatprep.mubr.bf16.mxu0 0
        %1783 = vmatmul.mubr.bf16.gmra.mxu0 %v1605
        %v1784 = vpop.f32.mrf.mxu0
        %v1785 = vadd.f32 %v1652, %v1784
        %v1786 = vpop.f32.mrf.mxu0
        %v1787 = vpop.f32.mrf.mxu0
        %v1788 = vadd.f32 %v1652, %v1787
        %v1789 = vpop.f32.mrf.mxu0
        %1790 = vmatprep.mubr.bf16.mxu0 0
        %1791 = vmatmul.mubr.bf16.gmra.mxu0 %v1606
        %v1792 = vpop.f32.mrf.mxu0
        %v1793 = vadd.f32 %v1652, %v1792
        %v1794 = vpop.f32.mrf.mxu0
        %v1795 = vpop.f32.mrf.mxu0
        %v1796 = vadd.f32 %v1652, %v1795
        %v1797 = vpop.f32.mrf.mxu0
        %1798 = vmatprep.mubr.bf16.mxu0 0
        %1799 = vmatmul.mubr.bf16.gmra.mxu0 %v1607
        %v1800 = vpop.f32.mrf.mxu0
        %v1801 = vadd.f32 %v1652, %v1800
        %v1802 = vpop.f32.mrf.mxu0
        %v1803 = vpop.f32.mrf.mxu0
        %v1804 = vadd.f32 %v1652, %v1803
        %v1805 = vpop.f32.mrf.mxu0
        %1806 = vmatprep.mubr.bf16.mxu0 0
        %1807 = vmatmul.mubr.bf16.gmra.mxu0 %v1608
        %v1808 = vpop.f32.mrf.mxu0
        %v1809 = vadd.f32 %v1652, %v1808
        %v1810 = vpop.f32.mrf.mxu0
        %v1811 = vpop.f32.mrf.mxu0
        %v1812 = vadd.f32 %v1652, %v1811
        %v1813 = vpop.f32.mrf.mxu0
        %1814 = vmatprep.mubr.bf16.mxu0 0
        %1815 = vmatmul.mubr.bf16.gmra.mxu0 %v1609
        %v1816 = vpop.f32.mrf.mxu0
        %v1817 = vadd.f32 %v1652, %v1816
        %v1818 = vpop.f32.mrf.mxu0
        %v1819 = vpop.f32.mrf.mxu0
        %v1820 = vadd.f32 %v1652, %v1819
        %v1821 = vpop.f32.mrf.mxu0
        %1822 = vmatprep.mubr.bf16.mxu0 0
        %1823 = vmatmul.mubr.bf16.gmra.mxu0 %v1610
        %v1824 = vpop.f32.mrf.mxu0
        %v1825 = vadd.f32 %v1652, %v1824
        %v1826 = vpop.f32.mrf.mxu0
        %v1827 = vpop.f32.mrf.mxu0
        %v1828 = vadd.f32 %v1652, %v1827
        %v1829 = vpop.f32.mrf.mxu0
        %1830 = vmatprep.mubr.bf16.mxu0 0
        %1831 = vmatmul.mubr.bf16.gmra.mxu0 %v1611
        %v1832 = vpop.f32.mrf.mxu0
        %v1833 = vadd.f32 %v1652, %v1832
        %v1834 = vpop.f32.mrf.mxu0
        %v1835 = vpop.f32.mrf.mxu0
        %v1836 = vadd.f32 %v1652, %v1835
        %v1837 = vpop.f32.mrf.mxu0
        %1838 = vmatprep.mubr.bf16.mxu0 0
        %1839 = vmatmul.mubr.bf16.gmra.mxu0 %v1612
        %v1840 = vpop.f32.mrf.mxu0
        %v1841 = vadd.f32 %v1652, %v1840
        %v1842 = vpop.f32.mrf.mxu0
        %v1843 = vpop.f32.mrf.mxu0
        %v1844 = vadd.f32 %v1652, %v1843
        %v1845 = vpop.f32.mrf.mxu0
        %1846 = vmatprep.mubr.bf16.mxu0 0
        %1847 = vmatmul.mubr.bf16.gmra.mxu0 %v1613
        %v1848 = vpop.f32.mrf.mxu0
        %v1849 = vadd.f32 %v1652, %v1848
        %v1850 = vpop.f32.mrf.mxu0
        %v1851 = vpop.f32.mrf.mxu0
        %v1852 = vadd.f32 %v1652, %v1851
        %v1853 = vpop.f32.mrf.mxu0
        %1854 = vmatprep.mubr.bf16.mxu0 0
        %1855 = vmatmul.mubr.bf16.gmra.mxu0 %v1614
        %v1856 = vpop.f32.mrf.mxu0
        %v1857 = vadd.f32 %v1652, %v1856
        %v1858 = vpop.f32.mrf.mxu0
        %v1859 = vpop.f32.mrf.mxu0
        %v1860 = vadd.f32 %v1652, %v1859
        %v1861 = vpop.f32.mrf.mxu0
        %1862 = vmatprep.mubr.bf16.mxu0 0
        %1863 = vmatmul.mubr.bf16.gmra.mxu0 %v1615
        %v1864 = vpop.f32.mrf.mxu0
        %v1865 = vadd.f32 %v1652, %v1864
        %v1866 = vpop.f32.mrf.mxu0
        %v1867 = vpop.f32.mrf.mxu0
        %v1868 = vadd.f32 %v1652, %v1867
        %v1869 = vpop.f32.mrf.mxu0
        %1870 = vmatprep.mubr.bf16.mxu0 0
        %1871 = vmatmul.mubr.bf16.gmra.mxu0 %v1616
        %v1872 = vpop.f32.mrf.mxu0
        %v1873 = vadd.f32 %v1652, %v1872
        %v1874 = vpop.f32.mrf.mxu0
        %v1875 = vpop.f32.mrf.mxu0
        %v1876 = vadd.f32 %v1652, %v1875
        %v1877 = vpop.f32.mrf.mxu0
        %1878 = vmatprep.mubr.bf16.mxu0 0
        %1879 = vmatmul.mubr.bf16.gmra.mxu0 %v1617
        %v1880 = vpop.f32.mrf.mxu0
        %v1881 = vadd.f32 %v1652, %v1880
        %v1882 = vpop.f32.mrf.mxu0
        %v1883 = vpop.f32.mrf.mxu0
        %v1884 = vadd.f32 %v1652, %v1883
        %v1885 = vpop.f32.mrf.mxu0
        %1886 = vmatprep.mubr.bf16.mxu0 0
        %1887 = vmatmul.mubr.bf16.gmra.mxu0 %v1618
        %v1888 = vpop.f32.mrf.mxu0
        %v1889 = vadd.f32 %v1652, %v1888
        %v1890 = vpop.f32.mrf.mxu0
        %v1891 = vpop.f32.mrf.mxu0
        %v1892 = vadd.f32 %v1652, %v1891
        %v1893 = vpop.f32.mrf.mxu0
        %1894 = vmatprep.mubr.bf16.mxu0 0
        %1895 = vmatmul.mubr.bf16.gmra.mxu0 %v1619
        %v1896 = vpop.f32.mrf.mxu0
        %v1897 = vadd.f32 %v1652, %v1896
        %v1898 = vpop.f32.mrf.mxu0
        %v1899 = vpop.f32.mrf.mxu0
        %v1900 = vadd.f32 %v1652, %v1899
        %v1901 = vpop.f32.mrf.mxu0
        %1902 = vmatprep.mubr.bf16.mxu0 0
        %1903 = vmatmul.mubr.bf16.gmra.mxu0 %v1620
        %v1904 = vpop.f32.mrf.mxu0
        %v1905 = vadd.f32 %v1652, %v1904
        %v1906 = vpop.f32.mrf.mxu0
        %v1907 = vpop.f32.mrf.mxu0
        %v1908 = vadd.f32 %v1652, %v1907
        %v1909 = vpop.f32.mrf.mxu0
        %1910 = vmatprep.mubr.bf16.mxu0 0
        %1911 = vmatmul.mubr.bf16.gmra.mxu0 %v1621
        %v1912 = vpop.f32.mrf.mxu0
        %v1913 = vadd.f32 %v1652, %v1912
        %v1914 = vpop.f32.mrf.mxu0
        %v1915 = vpop.f32.mrf.mxu0
        %v1916 = vadd.f32 %v1652, %v1915
        %v1917 = vpop.f32.mrf.mxu0
        %1918 = vmatprep.mubr.bf16.mxu0 0
        %1919 = vmatmul.mubr.bf16.gmra.mxu0 %v1622
        %v1920 = vpop.f32.mrf.mxu0
        %v1921 = vadd.f32 %v1652, %v1920
        %v1922 = vpop.f32.mrf.mxu0
        %v1923 = vpop.f32.mrf.mxu0
        %v1924 = vadd.f32 %v1652, %v1923
        %v1925 = vpop.f32.mrf.mxu0
        %1926 = vmatprep.mubr.bf16.mxu0 0
        %1927 = vmatmul.mubr.bf16.gmra.mxu0 %v1623
        %v1928 = vpop.f32.mrf.mxu0
        %v1929 = vadd.f32 %v1652, %v1928
        %v1930 = vpop.f32.mrf.mxu0
        %v1931 = vpop.f32.mrf.mxu0
        %v1932 = vadd.f32 %v1652, %v1931
        %v1933 = vpop.f32.mrf.mxu0
        %1934 = vmatprep.mubr.bf16.mxu0 0
        %1935 = vmatmul.mubr.bf16.gmra.mxu0 %v1624
        %v1936 = vpop.f32.mrf.mxu0
        %v1937 = vadd.f32 %v1652, %v1936
        %v1938 = vpop.f32.mrf.mxu0
        %v1939 = vpop.f32.mrf.mxu0
        %v1940 = vadd.f32 %v1652, %v1939
        %v1941 = vpop.f32.mrf.mxu0
        %1942 = vmatprep.mubr.bf16.mxu0 0
        %1943 = vmatmul.mubr.bf16.gmra.mxu0 %v1625
        %v1944 = vpop.f32.mrf.mxu0
        %v1945 = vadd.f32 %v1652, %v1944
        %v1946 = vpop.f32.mrf.mxu0
        %v1947 = vpop.f32.mrf.mxu0
        %v1948 = vadd.f32 %v1652, %v1947
        %v1949 = vpop.f32.mrf.mxu0
        %1950 = vmatprep.mubr.bf16.mxu0 0
        %1951 = vmatmul.mubr.bf16.gmra.mxu0 %v1626
        %v1952 = vpop.f32.mrf.mxu0
        %v1953 = vadd.f32 %v1652, %v1952
        %v1954 = vpop.f32.mrf.mxu0
        %v1955 = vpop.f32.mrf.mxu0
        %v1956 = vadd.f32 %v1652, %v1955
        %v1957 = vpop.f32.mrf.mxu0
        %1958 = vmatprep.mubr.bf16.mxu0 0
        %1959 = vmatmul.mubr.bf16.gmra.mxu0 %v1627
        %v1960 = vpop.f32.mrf.mxu0
        %v1961 = vadd.f32 %v1652, %v1960
        %v1962 = vpop.f32.mrf.mxu0
        %v1963 = vpop.f32.mrf.mxu0
        %v1964 = vadd.f32 %v1652, %v1963
        %v1965 = vpop.f32.mrf.mxu0
        %1966 = vmatprep.mubr.bf16.mxu0 0
        %1967 = vmatmul.mubr.bf16.gmra.mxu0 %v1628
        %v1968 = vpop.f32.mrf.mxu0
        %v1969 = vadd.f32 %v1652, %v1968
        %v1970 = vpop.f32.mrf.mxu0
        %v1971 = vpop.f32.mrf.mxu0
        %v1972 = vadd.f32 %v1652, %v1971
        %v1973 = vpop.f32.mrf.mxu0
        %1974 = vmatprep.mubr.bf16.mxu0 0
        %1975 = vmatmul.mubr.bf16.gmra.mxu0 %v1629
        %v1976 = vpop.f32.mrf.mxu0
        %v1977 = vadd.f32 %v1652, %v1976
        %v1978 = vpop.f32.mrf.mxu0
        %v1979 = vpop.f32.mrf.mxu0
        %v1980 = vadd.f32 %v1652, %v1979
        %v1981 = vpop.f32.mrf.mxu0
        %1982 = vmatprep.mubr.bf16.mxu0 0
        %1983 = vmatmul.mubr.bf16.gmra.mxu0 %v1630
        %v1984 = vpop.f32.mrf.mxu0
        %v1985 = vadd.f32 %v1652, %v1984
        %v1986 = vpop.f32.mrf.mxu0
        %v1987 = vpop.f32.mrf.mxu0
        %v1988 = vadd.f32 %v1652, %v1987
        %v1989 = vpop.f32.mrf.mxu0
        %1990 = vdwg.mxu0
        %v1991 = vmax.f32 %v1737, 0.0
        %v1992 = vmax.f32 %v1740, 0.0
        %v1993 = vmax.f32 %v1745, 0.0
        %v1994 = vmax.f32 %v1748, 0.0
        %v1995 = vmax.f32 %v1753, 0.0
        %v1996 = vmax.f32 %v1756, 0.0
        %v1997 = vmax.f32 %v1761, 0.0
        %v1998 = vmax.f32 %v1764, 0.0
        %v1999 = vmax.f32 %v1769, 0.0
        %v2000 = vmax.f32 %v1772, 0.0
        %v2001 = vmax.f32 %v1777, 0.0
        %v2002 = vmax.f32 %v1780, 0.0
        %v2003 = vmax.f32 %v1785, 0.0
        %v2004 = vmax.f32 %v1788, 0.0
        %v2005 = vmax.f32 %v1793, 0.0
        %v2006 = vmax.f32 %v1796, 0.0
        %v2007 = vmax.f32 %v1801, 0.0
        %v2008 = vmax.f32 %v1804, 0.0
        %v2009 = vmax.f32 %v1809, 0.0
        %v2010 = vmax.f32 %v1812, 0.0
        %v2011 = vmax.f32 %v1817, 0.0
        %v2012 = vmax.f32 %v1820, 0.0
        %v2013 = vmax.f32 %v1825, 0.0
        %v2014 = vmax.f32 %v1828, 0.0
        %v2015 = vmax.f32 %v1833, 0.0
        %v2016 = vmax.f32 %v1836, 0.0
        %v2017 = vmax.f32 %v1841, 0.0
        %v2018 = vmax.f32 %v1844, 0.0
        %v2019 = vmax.f32 %v1849, 0.0
        %v2020 = vmax.f32 %v1852, 0.0
        %v2021 = vmax.f32 %v1857, 0.0
        %v2022 = vmax.f32 %v1860, 0.0
        %v2023 = vmax.f32 %v1865, 0.0
        %v2024 = vmax.f32 %v1868, 0.0
        %v2025 = vmax.f32 %v1873, 0.0
        %v2026 = vmax.f32 %v1876, 0.0
        %v2027 = vmax.f32 %v1881, 0.0
        %v2028 = vmax.f32 %v1884, 0.0
        %v2029 = vmax.f32 %v1889, 0.0
        %v2030 = vmax.f32 %v1892, 0.0
        %v2031 = vmax.f32 %v1897, 0.0
        %v2032 = vmax.f32 %v1900, 0.0
        %v2033 = vmax.f32 %v1905, 0.0
        %v2034 = vmax.f32 %v1908, 0.0
        %v2035 = vmax.f32 %v1913, 0.0
        %v2036 = vmax.f32 %v1916, 0.0
        %v2037 = vmax.f32 %v1921, 0.0
        %v2038 = vmax.f32 %v1924, 0.0
        %v2039 = vmax.f32 %v1929, 0.0
        %v2040 = vmax.f32 %v1932, 0.0
        %v2041 = vmax.f32 %v1937, 0.0
        %v2042 = vmax.f32 %v1940, 0.0
        %v2043 = vmax.f32 %v1945, 0.0
        %v2044 = vmax.f32 %v1948, 0.0
        %v2045 = vmax.f32 %v1953, 0.0
        %v2046 = vmax.f32 %v1956, 0.0
        %v2047 = vmax.f32 %v1961, 0.0
        %v2048 = vmax.f32 %v1964, 0.0
        %v2049 = vmax.f32 %v1969, 0.0
        %v2050 = vmax.f32 %v1972, 0.0
        %v2051 = vmax.f32 %v1977, 0.0
        %v2052 = vmax.f32 %v1980, 0.0
        %v2053 = vmax.f32 %v1985, 0.0
        %v2054 = vmax.f32 %v1988, 0.0
        %v2055 = vpack.c.bf16 %v1992, %v1991
        %v2056 = vpack.c.bf16 %v1994, %v1993
        %v2057 = vpack.c.bf16 %v1996, %v1995
        %v2058 = vpack.c.bf16 %v1998, %v1997
        %v2059 = vpack.c.bf16 %v2000, %v1999
        %v2060 = vpack.c.bf16 %v2002, %v2001
        %v2061 = vpack.c.bf16 %v2004, %v2003
        %v2062 = vpack.c.bf16 %v2006, %v2005
        %v2063 = vpack.c.bf16 %v2008, %v2007
        %v2064 = vpack.c.bf16 %v2010, %v2009
        %v2065 = vpack.c.bf16 %v2012, %v2011
        %v2066 = vpack.c.bf16 %v2014, %v2013
        %v2067 = vpack.c.bf16 %v2016, %v2015
        %v2068 = vpack.c.bf16 %v2018, %v2017
        %v2069 = vpack.c.bf16 %v2020, %v2019
        %v2070 = vpack.c.bf16 %v2022, %v2021
        %v2071 = vpack.c.bf16 %v2024, %v2023
        %v2072 = vpack.c.bf16 %v2026, %v2025
        %v2073 = vpack.c.bf16 %v2028, %v2027
        %v2074 = vpack.c.bf16 %v2030, %v2029
        %v2075 = vpack.c.bf16 %v2032, %v2031
        %v2076 = vpack.c.bf16 %v2034, %v2033
        %v2077 = vpack.c.bf16 %v2036, %v2035
        %v2078 = vpack.c.bf16 %v2038, %v2037
        %v2079 = vpack.c.bf16 %v2040, %v2039
        %v2080 = vpack.c.bf16 %v2042, %v2041
        %v2081 = vpack.c.bf16 %v2044, %v2043
        %v2082 = vpack.c.bf16 %v2046, %v2045
        %v2083 = vpack.c.bf16 %v2048, %v2047
        %v2084 = vpack.c.bf16 %v2050, %v2049
        %v2085 = vpack.c.bf16 %v2052, %v2051
        %v2086 = vpack.c.bf16 %v2054, %v2053
        %v2087 = vld [vmem:[#allocation14] sm:$0xff]
        %v2088 = vld [vmem:[#allocation14 + $0x8] sm:$0xff]
        %v2089 = vld [vmem:[#allocation14 + $0x10] sm:$0xff]
        %v2090 = vld [vmem:[#allocation14 + $0x18] sm:$0xff]
        %v2091 = vld [vmem:[#allocation14 + $0x20] sm:$0xff]
        %v2092 = vld [vmem:[#allocation14 + $0x28] sm:$0xff]
        %v2093 = vld [vmem:[#allocation14 + $0x30] sm:$0xff]
        %v2094 = vld [vmem:[#allocation14 + $0x38] sm:$0xff]
        %v2095 = vld [vmem:[#allocation14 + $0x40] sm:$0xff]
        %v2096 = vld [vmem:[#allocation14 + $0x48] sm:$0xff]
        %v2097 = vld [vmem:[#allocation14 + $0x50] sm:$0xff]
        %v2098 = vld [vmem:[#allocation14 + $0x58] sm:$0xff]
        %v2099 = vld [vmem:[#allocation14 + $0x60] sm:$0xff]
        %v2100 = vld [vmem:[#allocation14 + $0x68] sm:$0xff]
        %v2101 = vld [vmem:[#allocation14 + $0x70] sm:$0xff]
        %v2102 = vld [vmem:[#allocation14 + $0x78] sm:$0xff]
        %v2103 = vld [vmem:[#allocation16] sm:$0x3]
        %v2105 = vlaneseq
        %v2106 = vshrl.u32 %v2105, 7
        %v2107 = vsub.s32 0, %v2106
        %v2108 = vrot.slane %v2103, %v2107
        %v2109 = vlaneseq
        %v2110 = vshrl.u32 %v2109, 7
        %v2111 = vsub.s32 1, %v2110
        %v2112 = vrot.slane %v2103, %v2111
        %v2131 = vunpack.c.l.b16 %v2087
        %v2132 = vunpack.c.h.b16 %v2087
        %v2133 = vunpack.c.l.b16 %v2088
        %v2134 = vunpack.c.h.b16 %v2088
        %v2135 = vunpack.c.l.b16 %v2089
        %v2136 = vunpack.c.h.b16 %v2089
        %v2137 = vunpack.c.l.b16 %v2090
        %v2138 = vunpack.c.h.b16 %v2090
        %v2139 = vunpack.c.l.b16 %v2091
        %v2140 = vunpack.c.h.b16 %v2091
        %v2141 = vunpack.c.l.b16 %v2092
        %v2142 = vunpack.c.h.b16 %v2092
        %v2143 = vunpack.c.l.b16 %v2093
        %v2144 = vunpack.c.h.b16 %v2093
        %v2145 = vunpack.c.l.b16 %v2094
        %v2146 = vunpack.c.h.b16 %v2094
        %v2147 = vunpack.c.l.b16 %v2095
        %v2148 = vunpack.c.h.b16 %v2095
        %v2149 = vunpack.c.l.b16 %v2096
        %v2150 = vunpack.c.h.b16 %v2096
        %v2151 = vunpack.c.l.b16 %v2097
        %v2152 = vunpack.c.h.b16 %v2097
        %v2153 = vunpack.c.l.b16 %v2098
        %v2154 = vunpack.c.h.b16 %v2098
        %v2155 = vunpack.c.l.b16 %v2099
        %v2156 = vunpack.c.h.b16 %v2099
        %v2157 = vunpack.c.l.b16 %v2100
        %v2158 = vunpack.c.h.b16 %v2100
        %v2159 = vunpack.c.l.b16 %v2101
        %v2160 = vunpack.c.h.b16 %v2101
        %v2161 = vunpack.c.l.b16 %v2102
        %v2162 = vunpack.c.h.b16 %v2102
        %v2163 = vpack.c.b16 %v2133, %v2131
        %v2164 = vpack.c.b16 %v2134, %v2132
        %v2165 = vpack.c.b16 %v2137, %v2135
        %v2166 = vpack.c.b16 %v2138, %v2136
        %v2167 = vpack.c.b16 %v2141, %v2139
        %v2168 = vpack.c.b16 %v2142, %v2140
        %v2169 = vpack.c.b16 %v2145, %v2143
        %v2170 = vpack.c.b16 %v2146, %v2144
        %v2171 = vpack.c.b16 %v2149, %v2147
        %v2172 = vpack.c.b16 %v2150, %v2148
        %v2173 = vpack.c.b16 %v2153, %v2151
        %v2174 = vpack.c.b16 %v2154, %v2152
        %v2175 = vpack.c.b16 %v2157, %v2155
        %v2176 = vpack.c.b16 %v2158, %v2156
        %v2177 = vpack.c.b16 %v2161, %v2159
        %v2178 = vpack.c.b16 %v2162, %v2160
        %2195 = vmatprep.subr.bf16.mxu0 %v2178
        %2196 = vmatpush1.bf16.msra.mxu0 %v2177
        %2197 = vmatprep.subr.bf16.mxu0 %v2176
        %2198 = vmatpush1.bf16.msra.mxu0 %v2175
        %2199 = vmatprep.subr.bf16.mxu0 %v2174
        %2200 = vmatpush1.bf16.msra.mxu0 %v2173
        %2201 = vmatprep.subr.bf16.mxu0 %v2172
        %2202 = vmatpush1.bf16.msra.mxu0 %v2171
        %2203 = vmatprep.subr.bf16.mxu0 %v2170
        %2204 = vmatpush1.bf16.msra.mxu0 %v2169
        %2205 = vmatprep.subr.bf16.mxu0 %v2168
        %2206 = vmatpush1.bf16.msra.mxu0 %v2167
        %2207 = vmatprep.subr.bf16.mxu0 %v2166
        %2208 = vmatpush1.bf16.msra.mxu0 %v2165
        %2209 = vmatprep.subr.bf16.mxu0 %v2164
        %2210 = vmatpush1.bf16.msra.mxu0 %v2163
        %2211 = vmatprep.subr.bf16.mxu0 0
        %2212 = vmatpush2.bf16.msra.mxu0 0
        %2213 = vmatprep.subr.bf16.mxu0 0
        %2214 = vmatpush2.bf16.msra.mxu0 0
        %2215 = vmatprep.subr.bf16.mxu0 0
        %2216 = vmatpush2.bf16.msra.mxu0 0
        %2217 = vmatprep.subr.bf16.mxu0 0
        %2218 = vmatpush2.bf16.msra.mxu0 0
        %2219 = vmatprep.subr.bf16.mxu0 0
        %2220 = vmatpush2.bf16.msra.mxu0 0
        %2221 = vmatprep.subr.bf16.mxu0 0
        %2222 = vmatpush2.bf16.msra.mxu0 0
        %2223 = vmatprep.subr.bf16.mxu0 0
        %2224 = vmatpush2.bf16.msra.mxu0 0
        %2225 = vmatprep.subr.bf16.mxu0 0
        %2226 = vmatpush2.bf16.msra.mxu0 0
        %2227 = vmatprep.mubr.bf16.mxu0 0
        %2228 = vmatmul.mubr.bf16.gmra.mxu0 %v2055
        %v2229 = vpop.f32.mrf.mxu0
        %v2230 = vadd.f32 %v2108, %v2229
        %v2231 = vpop.f32.mrf.mxu0
        %v2232 = vadd.f32 %v2112, %v2231
        %v2233 = vpop.f32.mrf.mxu0
        %v2234 = vadd.f32 %v2108, %v2233
        %v2235 = vpop.f32.mrf.mxu0
        %v2236 = vadd.f32 %v2112, %v2235
        %2237 = vmatprep.mubr.bf16.mxu0 0
        %2238 = vmatmul.mubr.bf16.gmra.mxu0 %v2056
        %v2239 = vpop.f32.mrf.mxu0
        %v2240 = vadd.f32 %v2108, %v2239
        %v2241 = vpop.f32.mrf.mxu0
        %v2242 = vadd.f32 %v2112, %v2241
        %v2243 = vpop.f32.mrf.mxu0
        %v2244 = vadd.f32 %v2108, %v2243
        %v2245 = vpop.f32.mrf.mxu0
        %v2246 = vadd.f32 %v2112, %v2245
        %2247 = vmatprep.mubr.bf16.mxu0 0
        %2248 = vmatmul.mubr.bf16.gmra.mxu0 %v2057
        %v2249 = vpop.f32.mrf.mxu0
        %v2250 = vadd.f32 %v2108, %v2249
        %v2251 = vpop.f32.mrf.mxu0
        %v2252 = vadd.f32 %v2112, %v2251
        %v2253 = vpop.f32.mrf.mxu0
        %v2254 = vadd.f32 %v2108, %v2253
        %v2255 = vpop.f32.mrf.mxu0
        %v2256 = vadd.f32 %v2112, %v2255
        %2257 = vmatprep.mubr.bf16.mxu0 0
        %2258 = vmatmul.mubr.bf16.gmra.mxu0 %v2058
        %v2259 = vpop.f32.mrf.mxu0
        %v2260 = vadd.f32 %v2108, %v2259
        %v2261 = vpop.f32.mrf.mxu0
        %v2262 = vadd.f32 %v2112, %v2261
        %v2263 = vpop.f32.mrf.mxu0
        %v2264 = vadd.f32 %v2108, %v2263
        %v2265 = vpop.f32.mrf.mxu0
        %v2266 = vadd.f32 %v2112, %v2265
        %2267 = vmatprep.mubr.bf16.mxu0 0
        %2268 = vmatmul.mubr.bf16.gmra.mxu0 %v2059
        %v2269 = vpop.f32.mrf.mxu0
        %v2270 = vadd.f32 %v2108, %v2269
        %v2271 = vpop.f32.mrf.mxu0
        %v2272 = vadd.f32 %v2112, %v2271
        %v2273 = vpop.f32.mrf.mxu0
        %v2274 = vadd.f32 %v2108, %v2273
        %v2275 = vpop.f32.mrf.mxu0
        %v2276 = vadd.f32 %v2112, %v2275
        %2277 = vmatprep.mubr.bf16.mxu0 0
        %2278 = vmatmul.mubr.bf16.gmra.mxu0 %v2060
        %v2279 = vpop.f32.mrf.mxu0
        %v2280 = vadd.f32 %v2108, %v2279
        %v2281 = vpop.f32.mrf.mxu0
        %v2282 = vadd.f32 %v2112, %v2281
        %v2283 = vpop.f32.mrf.mxu0
        %v2284 = vadd.f32 %v2108, %v2283
        %v2285 = vpop.f32.mrf.mxu0
        %v2286 = vadd.f32 %v2112, %v2285
        %2287 = vmatprep.mubr.bf16.mxu0 0
        %2288 = vmatmul.mubr.bf16.gmra.mxu0 %v2061
        %v2289 = vpop.f32.mrf.mxu0
        %v2290 = vadd.f32 %v2108, %v2289
        %v2291 = vpop.f32.mrf.mxu0
        %v2292 = vadd.f32 %v2112, %v2291
        %v2293 = vpop.f32.mrf.mxu0
        %v2294 = vadd.f32 %v2108, %v2293
        %v2295 = vpop.f32.mrf.mxu0
        %v2296 = vadd.f32 %v2112, %v2295
        %2297 = vmatprep.mubr.bf16.mxu0 0
        %2298 = vmatmul.mubr.bf16.gmra.mxu0 %v2062
        %v2299 = vpop.f32.mrf.mxu0
        %v2300 = vadd.f32 %v2108, %v2299
        %v2301 = vpop.f32.mrf.mxu0
        %v2302 = vadd.f32 %v2112, %v2301
        %v2303 = vpop.f32.mrf.mxu0
        %v2304 = vadd.f32 %v2108, %v2303
        %v2305 = vpop.f32.mrf.mxu0
        %v2306 = vadd.f32 %v2112, %v2305
        %2307 = vmatprep.mubr.bf16.mxu0 0
        %2308 = vmatmul.mubr.bf16.gmra.mxu0 %v2063
        %v2309 = vpop.f32.mrf.mxu0
        %v2310 = vadd.f32 %v2108, %v2309
        %v2311 = vpop.f32.mrf.mxu0
        %v2312 = vadd.f32 %v2112, %v2311
        %v2313 = vpop.f32.mrf.mxu0
        %v2314 = vadd.f32 %v2108, %v2313
        %v2315 = vpop.f32.mrf.mxu0
        %v2316 = vadd.f32 %v2112, %v2315
        %2317 = vmatprep.mubr.bf16.mxu0 0
        %2318 = vmatmul.mubr.bf16.gmra.mxu0 %v2064
        %v2319 = vpop.f32.mrf.mxu0
        %v2320 = vadd.f32 %v2108, %v2319
        %v2321 = vpop.f32.mrf.mxu0
        %v2322 = vadd.f32 %v2112, %v2321
        %v2323 = vpop.f32.mrf.mxu0
        %v2324 = vadd.f32 %v2108, %v2323
        %v2325 = vpop.f32.mrf.mxu0
        %v2326 = vadd.f32 %v2112, %v2325
        %2327 = vmatprep.mubr.bf16.mxu0 0
        %2328 = vmatmul.mubr.bf16.gmra.mxu0 %v2065
        %v2329 = vpop.f32.mrf.mxu0
        %v2330 = vadd.f32 %v2108, %v2329
        %v2331 = vpop.f32.mrf.mxu0
        %v2332 = vadd.f32 %v2112, %v2331
        %v2333 = vpop.f32.mrf.mxu0
        %v2334 = vadd.f32 %v2108, %v2333
        %v2335 = vpop.f32.mrf.mxu0
        %v2336 = vadd.f32 %v2112, %v2335
        %2337 = vmatprep.mubr.bf16.mxu0 0
        %2338 = vmatmul.mubr.bf16.gmra.mxu0 %v2066
        %v2339 = vpop.f32.mrf.mxu0
        %v2340 = vadd.f32 %v2108, %v2339
        %v2341 = vpop.f32.mrf.mxu0
        %v2342 = vadd.f32 %v2112, %v2341
        %v2343 = vpop.f32.mrf.mxu0
        %v2344 = vadd.f32 %v2108, %v2343
        %v2345 = vpop.f32.mrf.mxu0
        %v2346 = vadd.f32 %v2112, %v2345
        %2347 = vmatprep.mubr.bf16.mxu0 0
        %2348 = vmatmul.mubr.bf16.gmra.mxu0 %v2067
        %v2349 = vpop.f32.mrf.mxu0
        %v2350 = vadd.f32 %v2108, %v2349
        %v2351 = vpop.f32.mrf.mxu0
        %v2352 = vadd.f32 %v2112, %v2351
        %v2353 = vpop.f32.mrf.mxu0
        %v2354 = vadd.f32 %v2108, %v2353
        %v2355 = vpop.f32.mrf.mxu0
        %v2356 = vadd.f32 %v2112, %v2355
        %2357 = vmatprep.mubr.bf16.mxu0 0
        %2358 = vmatmul.mubr.bf16.gmra.mxu0 %v2068
        %v2359 = vpop.f32.mrf.mxu0
        %v2360 = vadd.f32 %v2108, %v2359
        %v2361 = vpop.f32.mrf.mxu0
        %v2362 = vadd.f32 %v2112, %v2361
        %v2363 = vpop.f32.mrf.mxu0
        %v2364 = vadd.f32 %v2108, %v2363
        %v2365 = vpop.f32.mrf.mxu0
        %v2366 = vadd.f32 %v2112, %v2365
        %2367 = vmatprep.mubr.bf16.mxu0 0
        %2368 = vmatmul.mubr.bf16.gmra.mxu0 %v2069
        %v2369 = vpop.f32.mrf.mxu0
        %v2370 = vadd.f32 %v2108, %v2369
        %v2371 = vpop.f32.mrf.mxu0
        %v2372 = vadd.f32 %v2112, %v2371
        %v2373 = vpop.f32.mrf.mxu0
        %v2374 = vadd.f32 %v2108, %v2373
        %v2375 = vpop.f32.mrf.mxu0
        %v2376 = vadd.f32 %v2112, %v2375
        %2377 = vmatprep.mubr.bf16.mxu0 0
        %2378 = vmatmul.mubr.bf16.gmra.mxu0 %v2070
        %v2379 = vpop.f32.mrf.mxu0
        %v2380 = vadd.f32 %v2108, %v2379
        %v2381 = vpop.f32.mrf.mxu0
        %v2382 = vadd.f32 %v2112, %v2381
        %v2383 = vpop.f32.mrf.mxu0
        %v2384 = vadd.f32 %v2108, %v2383
        %v2385 = vpop.f32.mrf.mxu0
        %v2386 = vadd.f32 %v2112, %v2385
        %2387 = vmatprep.mubr.bf16.mxu0 0
        %2388 = vmatmul.mubr.bf16.gmra.mxu0 %v2071
        %v2389 = vpop.f32.mrf.mxu0
        %v2390 = vadd.f32 %v2108, %v2389
        %v2391 = vpop.f32.mrf.mxu0
        %v2392 = vadd.f32 %v2112, %v2391
        %v2393 = vpop.f32.mrf.mxu0
        %v2394 = vadd.f32 %v2108, %v2393
        %v2395 = vpop.f32.mrf.mxu0
        %v2396 = vadd.f32 %v2112, %v2395
        %2397 = vmatprep.mubr.bf16.mxu0 0
        %2398 = vmatmul.mubr.bf16.gmra.mxu0 %v2072
        %v2399 = vpop.f32.mrf.mxu0
        %v2400 = vadd.f32 %v2108, %v2399
        %v2401 = vpop.f32.mrf.mxu0
        %v2402 = vadd.f32 %v2112, %v2401
        %v2403 = vpop.f32.mrf.mxu0
        %v2404 = vadd.f32 %v2108, %v2403
        %v2405 = vpop.f32.mrf.mxu0
        %v2406 = vadd.f32 %v2112, %v2405
        %2407 = vmatprep.mubr.bf16.mxu0 0
        %2408 = vmatmul.mubr.bf16.gmra.mxu0 %v2073
        %v2409 = vpop.f32.mrf.mxu0
        %v2410 = vadd.f32 %v2108, %v2409
        %v2411 = vpop.f32.mrf.mxu0
        %v2412 = vadd.f32 %v2112, %v2411
        %v2413 = vpop.f32.mrf.mxu0
        %v2414 = vadd.f32 %v2108, %v2413
        %v2415 = vpop.f32.mrf.mxu0
        %v2416 = vadd.f32 %v2112, %v2415
        %2417 = vmatprep.mubr.bf16.mxu0 0
        %2418 = vmatmul.mubr.bf16.gmra.mxu0 %v2074
        %v2419 = vpop.f32.mrf.mxu0
        %v2420 = vadd.f32 %v2108, %v2419
        %v2421 = vpop.f32.mrf.mxu0
        %v2422 = vadd.f32 %v2112, %v2421
        %v2423 = vpop.f32.mrf.mxu0
        %v2424 = vadd.f32 %v2108, %v2423
        %v2425 = vpop.f32.mrf.mxu0
        %v2426 = vadd.f32 %v2112, %v2425
        %2427 = vmatprep.mubr.bf16.mxu0 0
        %2428 = vmatmul.mubr.bf16.gmra.mxu0 %v2075
        %v2429 = vpop.f32.mrf.mxu0
        %v2430 = vadd.f32 %v2108, %v2429
        %v2431 = vpop.f32.mrf.mxu0
        %v2432 = vadd.f32 %v2112, %v2431
        %v2433 = vpop.f32.mrf.mxu0
        %v2434 = vadd.f32 %v2108, %v2433
        %v2435 = vpop.f32.mrf.mxu0
        %v2436 = vadd.f32 %v2112, %v2435
        %2437 = vmatprep.mubr.bf16.mxu0 0
        %2438 = vmatmul.mubr.bf16.gmra.mxu0 %v2076
        %v2439 = vpop.f32.mrf.mxu0
        %v2440 = vadd.f32 %v2108, %v2439
        %v2441 = vpop.f32.mrf.mxu0
        %v2442 = vadd.f32 %v2112, %v2441
        %v2443 = vpop.f32.mrf.mxu0
        %v2444 = vadd.f32 %v2108, %v2443
        %v2445 = vpop.f32.mrf.mxu0
        %v2446 = vadd.f32 %v2112, %v2445
        %2447 = vmatprep.mubr.bf16.mxu0 0
        %2448 = vmatmul.mubr.bf16.gmra.mxu0 %v2077
        %v2449 = vpop.f32.mrf.mxu0
        %v2450 = vadd.f32 %v2108, %v2449
        %v2451 = vpop.f32.mrf.mxu0
        %v2452 = vadd.f32 %v2112, %v2451
        %v2453 = vpop.f32.mrf.mxu0
        %v2454 = vadd.f32 %v2108, %v2453
        %v2455 = vpop.f32.mrf.mxu0
        %v2456 = vadd.f32 %v2112, %v2455
        %2457 = vmatprep.mubr.bf16.mxu0 0
        %2458 = vmatmul.mubr.bf16.gmra.mxu0 %v2078
        %v2459 = vpop.f32.mrf.mxu0
        %v2460 = vadd.f32 %v2108, %v2459
        %v2461 = vpop.f32.mrf.mxu0
        %v2462 = vadd.f32 %v2112, %v2461
        %v2463 = vpop.f32.mrf.mxu0
        %v2464 = vadd.f32 %v2108, %v2463
        %v2465 = vpop.f32.mrf.mxu0
        %v2466 = vadd.f32 %v2112, %v2465
        %2467 = vmatprep.mubr.bf16.mxu0 0
        %2468 = vmatmul.mubr.bf16.gmra.mxu0 %v2079
        %v2469 = vpop.f32.mrf.mxu0
        %v2470 = vadd.f32 %v2108, %v2469
        %v2471 = vpop.f32.mrf.mxu0
        %v2472 = vadd.f32 %v2112, %v2471
        %v2473 = vpop.f32.mrf.mxu0
        %v2474 = vadd.f32 %v2108, %v2473
        %v2475 = vpop.f32.mrf.mxu0
        %v2476 = vadd.f32 %v2112, %v2475
        %2477 = vmatprep.mubr.bf16.mxu0 0
        %2478 = vmatmul.mubr.bf16.gmra.mxu0 %v2080
        %v2479 = vpop.f32.mrf.mxu0
        %v2480 = vadd.f32 %v2108, %v2479
        %v2481 = vpop.f32.mrf.mxu0
        %v2482 = vadd.f32 %v2112, %v2481
        %v2483 = vpop.f32.mrf.mxu0
        %v2484 = vadd.f32 %v2108, %v2483
        %v2485 = vpop.f32.mrf.mxu0
        %v2486 = vadd.f32 %v2112, %v2485
        %2487 = vmatprep.mubr.bf16.mxu0 0
        %2488 = vmatmul.mubr.bf16.gmra.mxu0 %v2081
        %v2489 = vpop.f32.mrf.mxu0
        %v2490 = vadd.f32 %v2108, %v2489
        %v2491 = vpop.f32.mrf.mxu0
        %v2492 = vadd.f32 %v2112, %v2491
        %v2493 = vpop.f32.mrf.mxu0
        %v2494 = vadd.f32 %v2108, %v2493
        %v2495 = vpop.f32.mrf.mxu0
        %v2496 = vadd.f32 %v2112, %v2495
        %2497 = vmatprep.mubr.bf16.mxu0 0
        %2498 = vmatmul.mubr.bf16.gmra.mxu0 %v2082
        %v2499 = vpop.f32.mrf.mxu0
        %v2500 = vadd.f32 %v2108, %v2499
        %v2501 = vpop.f32.mrf.mxu0
        %v2502 = vadd.f32 %v2112, %v2501
        %v2503 = vpop.f32.mrf.mxu0
        %v2504 = vadd.f32 %v2108, %v2503
        %v2505 = vpop.f32.mrf.mxu0
        %v2506 = vadd.f32 %v2112, %v2505
        %2507 = vmatprep.mubr.bf16.mxu0 0
        %2508 = vmatmul.mubr.bf16.gmra.mxu0 %v2083
        %v2509 = vpop.f32.mrf.mxu0
        %v2510 = vadd.f32 %v2108, %v2509
        %v2511 = vpop.f32.mrf.mxu0
        %v2512 = vadd.f32 %v2112, %v2511
        %v2513 = vpop.f32.mrf.mxu0
        %v2514 = vadd.f32 %v2108, %v2513
        %v2515 = vpop.f32.mrf.mxu0
        %v2516 = vadd.f32 %v2112, %v2515
        %2517 = vmatprep.mubr.bf16.mxu0 0
        %2518 = vmatmul.mubr.bf16.gmra.mxu0 %v2084
        %v2519 = vpop.f32.mrf.mxu0
        %v2520 = vadd.f32 %v2108, %v2519
        %v2521 = vpop.f32.mrf.mxu0
        %v2522 = vadd.f32 %v2112, %v2521
        %v2523 = vpop.f32.mrf.mxu0
        %v2524 = vadd.f32 %v2108, %v2523
        %v2525 = vpop.f32.mrf.mxu0
        %v2526 = vadd.f32 %v2112, %v2525
        %2527 = vmatprep.mubr.bf16.mxu0 0
        %2528 = vmatmul.mubr.bf16.gmra.mxu0 %v2085
        %v2529 = vpop.f32.mrf.mxu0
        %v2530 = vadd.f32 %v2108, %v2529
        %v2531 = vpop.f32.mrf.mxu0
        %v2532 = vadd.f32 %v2112, %v2531
        %v2533 = vpop.f32.mrf.mxu0
        %v2534 = vadd.f32 %v2108, %v2533
        %v2535 = vpop.f32.mrf.mxu0
        %v2536 = vadd.f32 %v2112, %v2535
        %2537 = vmatprep.mubr.bf16.mxu0 0
        %2538 = vmatmul.mubr.bf16.gmra.mxu0 %v2086
        %v2539 = vpop.f32.mrf.mxu0
        %v2540 = vadd.f32 %v2108, %v2539
        %v2541 = vpop.f32.mrf.mxu0
        %v2542 = vadd.f32 %v2112, %v2541
        %v2543 = vpop.f32.mrf.mxu0
        %v2544 = vadd.f32 %v2108, %v2543
        %v2545 = vpop.f32.mrf.mxu0
        %v2546 = vadd.f32 %v2112, %v2545
        %2547 = vdwg.mxu0
        %v2548 = vsub.f32 0.0, %v2230
        %v2549 = vsub.f32 0.0, %v2232
        %v2550 = vsub.f32 0.0, %v2234
        %v2551 = vsub.f32 0.0, %v2236
        %v2552 = vsub.f32 0.0, %v2240
        %v2553 = vsub.f32 0.0, %v2242
        %v2554 = vsub.f32 0.0, %v2244
        %v2555 = vsub.f32 0.0, %v2246
        %v2556 = vsub.f32 0.0, %v2250
        %v2557 = vsub.f32 0.0, %v2252
        %v2558 = vsub.f32 0.0, %v2254
        %v2559 = vsub.f32 0.0, %v2256
        %v2560 = vsub.f32 0.0, %v2260
        %v2561 = vsub.f32 0.0, %v2262
        %v2562 = vsub.f32 0.0, %v2264
        %v2563 = vsub.f32 0.0, %v2266
        %v2564 = vsub.f32 0.0, %v2270
        %v2565 = vsub.f32 0.0, %v2272
        %v2566 = vsub.f32 0.0, %v2274
        %v2567 = vsub.f32 0.0, %v2276
        %v2568 = vsub.f32 0.0, %v2280
        %v2569 = vsub.f32 0.0, %v2282
        %v2570 = vsub.f32 0.0, %v2284
        %v2571 = vsub.f32 0.0, %v2286
        %v2572 = vsub.f32 0.0, %v2290
        %v2573 = vsub.f32 0.0, %v2292
        %v2574 = vsub.f32 0.0, %v2294
        %v2575 = vsub.f32 0.0, %v2296
        %v2576 = vsub.f32 0.0, %v2300
        %v2577 = vsub.f32 0.0, %v2302
        %v2578 = vsub.f32 0.0, %v2304
        %v2579 = vsub.f32 0.0, %v2306
        %v2580 = vsub.f32 0.0, %v2310
        %v2581 = vsub.f32 0.0, %v2312
        %v2582 = vsub.f32 0.0, %v2314
        %v2583 = vsub.f32 0.0, %v2316
        %v2584 = vsub.f32 0.0, %v2320
        %v2585 = vsub.f32 0.0, %v2322
        %v2586 = vsub.f32 0.0, %v2324
        %v2587 = vsub.f32 0.0, %v2326
        %v2588 = vsub.f32 0.0, %v2330
        %v2589 = vsub.f32 0.0, %v2332
        %v2590 = vsub.f32 0.0, %v2334
        %v2591 = vsub.f32 0.0, %v2336
        %v2592 = vsub.f32 0.0, %v2340
        %v2593 = vsub.f32 0.0, %v2342
        %v2594 = vsub.f32 0.0, %v2344
        %v2595 = vsub.f32 0.0, %v2346
        %v2596 = vsub.f32 0.0, %v2350
        %v2597 = vsub.f32 0.0, %v2352
        %v2598 = vsub.f32 0.0, %v2354
        %v2599 = vsub.f32 0.0, %v2356
        %v2600 = vsub.f32 0.0, %v2360
        %v2601 = vsub.f32 0.0, %v2362
        %v2602 = vsub.f32 0.0, %v2364
        %v2603 = vsub.f32 0.0, %v2366
        %v2604 = vsub.f32 0.0, %v2370
        %v2605 = vsub.f32 0.0, %v2372
        %v2606 = vsub.f32 0.0, %v2374
        %v2607 = vsub.f32 0.0, %v2376
        %v2608 = vsub.f32 0.0, %v2380
        %v2609 = vsub.f32 0.0, %v2382
        %v2610 = vsub.f32 0.0, %v2384
        %v2611 = vsub.f32 0.0, %v2386
        %v2612 = vsub.f32 0.0, %v2390
        %v2613 = vsub.f32 0.0, %v2392
        %v2614 = vsub.f32 0.0, %v2394
        %v2615 = vsub.f32 0.0, %v2396
        %v2616 = vsub.f32 0.0, %v2400
        %v2617 = vsub.f32 0.0, %v2402
        %v2618 = vsub.f32 0.0, %v2404
        %v2619 = vsub.f32 0.0, %v2406
        %v2620 = vsub.f32 0.0, %v2410
        %v2621 = vsub.f32 0.0, %v2412
        %v2622 = vsub.f32 0.0, %v2414
        %v2623 = vsub.f32 0.0, %v2416
        %v2624 = vsub.f32 0.0, %v2420
        %v2625 = vsub.f32 0.0, %v2422
        %v2626 = vsub.f32 0.0, %v2424
        %v2627 = vsub.f32 0.0, %v2426
        %v2628 = vsub.f32 0.0, %v2430
        %v2629 = vsub.f32 0.0, %v2432
        %v2630 = vsub.f32 0.0, %v2434
        %v2631 = vsub.f32 0.0, %v2436
        %v2632 = vsub.f32 0.0, %v2440
        %v2633 = vsub.f32 0.0, %v2442
        %v2634 = vsub.f32 0.0, %v2444
        %v2635 = vsub.f32 0.0, %v2446
        %v2636 = vsub.f32 0.0, %v2450
        %v2637 = vsub.f32 0.0, %v2452
        %v2638 = vsub.f32 0.0, %v2454
        %v2639 = vsub.f32 0.0, %v2456
        %v2640 = vsub.f32 0.0, %v2460
        %v2641 = vsub.f32 0.0, %v2462
        %v2642 = vsub.f32 0.0, %v2464
        %v2643 = vsub.f32 0.0, %v2466
        %v2644 = vsub.f32 0.0, %v2470
        %v2645 = vsub.f32 0.0, %v2472
        %v2646 = vsub.f32 0.0, %v2474
        %v2647 = vsub.f32 0.0, %v2476
        %v2648 = vsub.f32 0.0, %v2480
        %v2649 = vsub.f32 0.0, %v2482
        %v2650 = vsub.f32 0.0, %v2484
        %v2651 = vsub.f32 0.0, %v2486
        %v2652 = vsub.f32 0.0, %v2490
        %v2653 = vsub.f32 0.0, %v2492
        %v2654 = vsub.f32 0.0, %v2494
        %v2655 = vsub.f32 0.0, %v2496
        %v2656 = vsub.f32 0.0, %v2500
        %v2657 = vsub.f32 0.0, %v2502
        %v2658 = vsub.f32 0.0, %v2504
        %v2659 = vsub.f32 0.0, %v2506
        %v2660 = vsub.f32 0.0, %v2510
        %v2661 = vsub.f32 0.0, %v2512
        %v2662 = vsub.f32 0.0, %v2514
        %v2663 = vsub.f32 0.0, %v2516
        %v2664 = vsub.f32 0.0, %v2520
        %v2665 = vsub.f32 0.0, %v2522
        %v2666 = vsub.f32 0.0, %v2524
        %v2667 = vsub.f32 0.0, %v2526
        %v2668 = vsub.f32 0.0, %v2530
        %v2669 = vsub.f32 0.0, %v2532
        %v2670 = vsub.f32 0.0, %v2534
        %v2671 = vsub.f32 0.0, %v2536
        %v2672 = vsub.f32 0.0, %v2540
        %v2673 = vsub.f32 0.0, %v2542
        %v2674 = vsub.f32 0.0, %v2544
        %v2675 = vsub.f32 0.0, %v2546
        %v2676 = vmul.f32 %v2548, 1.442695
        %v2677 = vpow.pop %v2676
        %v2678 = vmul.f32 %v2549, 1.442695
        %v2679 = vpow.pop %v2678
        %v2680 = vmul.f32 %v2550, 1.442695
        %v2681 = vpow.pop %v2680
        %v2682 = vmul.f32 %v2551, 1.442695
        %v2683 = vpow.pop %v2682
        %v2684 = vmul.f32 %v2552, 1.442695
        %v2685 = vpow.pop %v2684
        %v2686 = vmul.f32 %v2553, 1.442695
        %v2687 = vpow.pop %v2686
        %v2688 = vmul.f32 %v2554, 1.442695
        %v2689 = vpow.pop %v2688
        %v2690 = vmul.f32 %v2555, 1.442695
        %v2691 = vpow.pop %v2690
        %v2692 = vmul.f32 %v2556, 1.442695
        %v2693 = vpow.pop %v2692
        %v2694 = vmul.f32 %v2557, 1.442695
        %v2695 = vpow.pop %v2694
        %v2696 = vmul.f32 %v2558, 1.442695
        %v2697 = vpow.pop %v2696
        %v2698 = vmul.f32 %v2559, 1.442695
        %v2699 = vpow.pop %v2698
        %v2700 = vmul.f32 %v2560, 1.442695
        %v2701 = vpow.pop %v2700
        %v2702 = vmul.f32 %v2561, 1.442695
        %v2703 = vpow.pop %v2702
        %v2704 = vmul.f32 %v2562, 1.442695
        %v2705 = vpow.pop %v2704
        %v2706 = vmul.f32 %v2563, 1.442695
        %v2707 = vpow.pop %v2706
        %v2708 = vmul.f32 %v2564, 1.442695
        %v2709 = vpow.pop %v2708
        %v2710 = vmul.f32 %v2565, 1.442695
        %v2711 = vpow.pop %v2710
        %v2712 = vmul.f32 %v2566, 1.442695
        %v2713 = vpow.pop %v2712
        %v2714 = vmul.f32 %v2567, 1.442695
        %v2715 = vpow.pop %v2714
        %v2716 = vmul.f32 %v2568, 1.442695
        %v2717 = vpow.pop %v2716
        %v2718 = vmul.f32 %v2569, 1.442695
        %v2719 = vpow.pop %v2718
        %v2720 = vmul.f32 %v2570, 1.442695
        %v2721 = vpow.pop %v2720
        %v2722 = vmul.f32 %v2571, 1.442695
        %v2723 = vpow.pop %v2722
        %v2724 = vmul.f32 %v2572, 1.442695
        %v2725 = vpow.pop %v2724
        %v2726 = vmul.f32 %v2573, 1.442695
        %v2727 = vpow.pop %v2726
        %v2728 = vmul.f32 %v2574, 1.442695
        %v2729 = vpow.pop %v2728
        %v2730 = vmul.f32 %v2575, 1.442695
        %v2731 = vpow.pop %v2730
        %v2732 = vmul.f32 %v2576, 1.442695
        %v2733 = vpow.pop %v2732
        %v2734 = vmul.f32 %v2577, 1.442695
        %v2735 = vpow.pop %v2734
        %v2736 = vmul.f32 %v2578, 1.442695
        %v2737 = vpow.pop %v2736
        %v2738 = vmul.f32 %v2579, 1.442695
        %v2739 = vpow.pop %v2738
        %v2740 = vmul.f32 %v2580, 1.442695
        %v2741 = vpow.pop %v2740
        %v2742 = vmul.f32 %v2581, 1.442695
        %v2743 = vpow.pop %v2742
        %v2744 = vmul.f32 %v2582, 1.442695
        %v2745 = vpow.pop %v2744
        %v2746 = vmul.f32 %v2583, 1.442695
        %v2747 = vpow.pop %v2746
        %v2748 = vmul.f32 %v2584, 1.442695
        %v2749 = vpow.pop %v2748
        %v2750 = vmul.f32 %v2585, 1.442695
        %v2751 = vpow.pop %v2750
        %v2752 = vmul.f32 %v2586, 1.442695
        %v2753 = vpow.pop %v2752
        %v2754 = vmul.f32 %v2587, 1.442695
        %v2755 = vpow.pop %v2754
        %v2756 = vmul.f32 %v2588, 1.442695
        %v2757 = vpow.pop %v2756
        %v2758 = vmul.f32 %v2589, 1.442695
        %v2759 = vpow.pop %v2758
        %v2760 = vmul.f32 %v2590, 1.442695
        %v2761 = vpow.pop %v2760
        %v2762 = vmul.f32 %v2591, 1.442695
        %v2763 = vpow.pop %v2762
        %v2764 = vmul.f32 %v2592, 1.442695
        %v2765 = vpow.pop %v2764
        %v2766 = vmul.f32 %v2593, 1.442695
        %v2767 = vpow.pop %v2766
        %v2768 = vmul.f32 %v2594, 1.442695
        %v2769 = vpow.pop %v2768
        %v2770 = vmul.f32 %v2595, 1.442695
        %v2771 = vpow.pop %v2770
        %v2772 = vmul.f32 %v2596, 1.442695
        %v2773 = vpow.pop %v2772
        %v2774 = vmul.f32 %v2597, 1.442695
        %v2775 = vpow.pop %v2774
        %v2776 = vmul.f32 %v2598, 1.442695
        %v2777 = vpow.pop %v2776
        %v2778 = vmul.f32 %v2599, 1.442695
        %v2779 = vpow.pop %v2778
        %v2780 = vmul.f32 %v2600, 1.442695
        %v2781 = vpow.pop %v2780
        %v2782 = vmul.f32 %v2601, 1.442695
        %v2783 = vpow.pop %v2782
        %v2784 = vmul.f32 %v2602, 1.442695
        %v2785 = vpow.pop %v2784
        %v2786 = vmul.f32 %v2603, 1.442695
        %v2787 = vpow.pop %v2786
        %v2788 = vmul.f32 %v2604, 1.442695
        %v2789 = vpow.pop %v2788
        %v2790 = vmul.f32 %v2605, 1.442695
        %v2791 = vpow.pop %v2790
        %v2792 = vmul.f32 %v2606, 1.442695
        %v2793 = vpow.pop %v2792
        %v2794 = vmul.f32 %v2607, 1.442695
        %v2795 = vpow.pop %v2794
        %v2796 = vmul.f32 %v2608, 1.442695
        %v2797 = vpow.pop %v2796
        %v2798 = vmul.f32 %v2609, 1.442695
        %v2799 = vpow.pop %v2798
        %v2800 = vmul.f32 %v2610, 1.442695
        %v2801 = vpow.pop %v2800
        %v2802 = vmul.f32 %v2611, 1.442695
        %v2803 = vpow.pop %v2802
        %v2804 = vmul.f32 %v2612, 1.442695
        %v2805 = vpow.pop %v2804
        %v2806 = vmul.f32 %v2613, 1.442695
        %v2807 = vpow.pop %v2806
        %v2808 = vmul.f32 %v2614, 1.442695
        %v2809 = vpow.pop %v2808
        %v2810 = vmul.f32 %v2615, 1.442695
        %v2811 = vpow.pop %v2810
        %v2812 = vmul.f32 %v2616, 1.442695
        %v2813 = vpow.pop %v2812
        %v2814 = vmul.f32 %v2617, 1.442695
        %v2815 = vpow.pop %v2814
        %v2816 = vmul.f32 %v2618, 1.442695
        %v2817 = vpow.pop %v2816
        %v2818 = vmul.f32 %v2619, 1.442695
        %v2819 = vpow.pop %v2818
        %v2820 = vmul.f32 %v2620, 1.442695
        %v2821 = vpow.pop %v2820
        %v2822 = vmul.f32 %v2621, 1.442695
        %v2823 = vpow.pop %v2822
        %v2824 = vmul.f32 %v2622, 1.442695
        %v2825 = vpow.pop %v2824
        %v2826 = vmul.f32 %v2623, 1.442695
        %v2827 = vpow.pop %v2826
        %v2828 = vmul.f32 %v2624, 1.442695
        %v2829 = vpow.pop %v2828
        %v2830 = vmul.f32 %v2625, 1.442695
        %v2831 = vpow.pop %v2830
        %v2832 = vmul.f32 %v2626, 1.442695
        %v2833 = vpow.pop %v2832
        %v2834 = vmul.f32 %v2627, 1.442695
        %v2835 = vpow.pop %v2834
        %v2836 = vmul.f32 %v2628, 1.442695
        %v2837 = vpow.pop %v2836
        %v2838 = vmul.f32 %v2629, 1.442695
        %v2839 = vpow.pop %v2838
        %v2840 = vmul.f32 %v2630, 1.442695
        %v2841 = vpow.pop %v2840
        %v2842 = vmul.f32 %v2631, 1.442695
        %v2843 = vpow.pop %v2842
        %v2844 = vmul.f32 %v2632, 1.442695
        %v2845 = vpow.pop %v2844
        %v2846 = vmul.f32 %v2633, 1.442695
        %v2847 = vpow.pop %v2846
        %v2848 = vmul.f32 %v2634, 1.442695
        %v2849 = vpow.pop %v2848
        %v2850 = vmul.f32 %v2635, 1.442695
        %v2851 = vpow.pop %v2850
        %v2852 = vmul.f32 %v2636, 1.442695
        %v2853 = vpow.pop %v2852
        %v2854 = vmul.f32 %v2637, 1.442695
        %v2855 = vpow.pop %v2854
        %v2856 = vmul.f32 %v2638, 1.442695
        %v2857 = vpow.pop %v2856
        %v2858 = vmul.f32 %v2639, 1.442695
        %v2859 = vpow.pop %v2858
        %v2860 = vmul.f32 %v2640, 1.442695
        %v2861 = vpow.pop %v2860
        %v2862 = vmul.f32 %v2641, 1.442695
        %v2863 = vpow.pop %v2862
        %v2864 = vmul.f32 %v2642, 1.442695
        %v2865 = vpow.pop %v2864
        %v2866 = vmul.f32 %v2643, 1.442695
        %v2867 = vpow.pop %v2866
        %v2868 = vmul.f32 %v2644, 1.442695
        %v2869 = vpow.pop %v2868
        %v2870 = vmul.f32 %v2645, 1.442695
        %v2871 = vpow.pop %v2870
        %v2872 = vmul.f32 %v2646, 1.442695
        %v2873 = vpow.pop %v2872
        %v2874 = vmul.f32 %v2647, 1.442695
        %v2875 = vpow.pop %v2874
        %v2876 = vmul.f32 %v2648, 1.442695
        %v2877 = vpow.pop %v2876
        %v2878 = vmul.f32 %v2649, 1.442695
        %v2879 = vpow.pop %v2878
        %v2880 = vmul.f32 %v2650, 1.442695
        %v2881 = vpow.pop %v2880
        %v2882 = vmul.f32 %v2651, 1.442695
        %v2883 = vpow.pop %v2882
        %v2884 = vmul.f32 %v2652, 1.442695
        %v2885 = vpow.pop %v2884
        %v2886 = vmul.f32 %v2653, 1.442695
        %v2887 = vpow.pop %v2886
        %v2888 = vmul.f32 %v2654, 1.442695
        %v2889 = vpow.pop %v2888
        %v2890 = vmul.f32 %v2655, 1.442695
        %v2891 = vpow.pop %v2890
        %v2892 = vmul.f32 %v2656, 1.442695
        %v2893 = vpow.pop %v2892
        %v2894 = vmul.f32 %v2657, 1.442695
        %v2895 = vpow.pop %v2894
        %v2896 = vmul.f32 %v2658, 1.442695
        %v2897 = vpow.pop %v2896
        %v2898 = vmul.f32 %v2659, 1.442695
        %v2899 = vpow.pop %v2898
        %v2900 = vmul.f32 %v2660, 1.442695
        %v2901 = vpow.pop %v2900
        %v2902 = vmul.f32 %v2661, 1.442695
        %v2903 = vpow.pop %v2902
        %v2904 = vmul.f32 %v2662, 1.442695
        %v2905 = vpow.pop %v2904
        %v2906 = vmul.f32 %v2663, 1.442695
        %v2907 = vpow.pop %v2906
        %v2908 = vmul.f32 %v2664, 1.442695
        %v2909 = vpow.pop %v2908
        %v2910 = vmul.f32 %v2665, 1.442695
        %v2911 = vpow.pop %v2910
        %v2912 = vmul.f32 %v2666, 1.442695
        %v2913 = vpow.pop %v2912
        %v2914 = vmul.f32 %v2667, 1.442695
        %v2915 = vpow.pop %v2914
        %v2916 = vmul.f32 %v2668, 1.442695
        %v2917 = vpow.pop %v2916
        %v2918 = vmul.f32 %v2669, 1.442695
        %v2919 = vpow.pop %v2918
        %v2920 = vmul.f32 %v2670, 1.442695
        %v2921 = vpow.pop %v2920
        %v2922 = vmul.f32 %v2671, 1.442695
        %v2923 = vpow.pop %v2922
        %v2924 = vmul.f32 %v2672, 1.442695
        %v2925 = vpow.pop %v2924
        %v2926 = vmul.f32 %v2673, 1.442695
        %v2927 = vpow.pop %v2926
        %v2928 = vmul.f32 %v2674, 1.442695
        %v2929 = vpow.pop %v2928
        %v2930 = vmul.f32 %v2675, 1.442695
        %v2931 = vpow.pop %v2930
        %v2932 = vadd.f32 %v2677, 1.0
        %v2933 = vadd.f32 %v2679, 1.0
        %v2934 = vadd.f32 %v2681, 1.0
        %v2935 = vadd.f32 %v2683, 1.0
        %v2936 = vadd.f32 %v2685, 1.0
        %v2937 = vadd.f32 %v2687, 1.0
        %v2938 = vadd.f32 %v2689, 1.0
        %v2939 = vadd.f32 %v2691, 1.0
        %v2940 = vadd.f32 %v2693, 1.0
        %v2941 = vadd.f32 %v2695, 1.0
        %v2942 = vadd.f32 %v2697, 1.0
        %v2943 = vadd.f32 %v2699, 1.0
        %v2944 = vadd.f32 %v2701, 1.0
        %v2945 = vadd.f32 %v2703, 1.0
        %v2946 = vadd.f32 %v2705, 1.0
        %v2947 = vadd.f32 %v2707, 1.0
        %v2948 = vadd.f32 %v2709, 1.0
        %v2949 = vadd.f32 %v2711, 1.0
        %v2950 = vadd.f32 %v2713, 1.0
        %v2951 = vadd.f32 %v2715, 1.0
        %v2952 = vadd.f32 %v2717, 1.0
        %v2953 = vadd.f32 %v2719, 1.0
        %v2954 = vadd.f32 %v2721, 1.0
        %v2955 = vadd.f32 %v2723, 1.0
        %v2956 = vadd.f32 %v2725, 1.0
        %v2957 = vadd.f32 %v2727, 1.0
        %v2958 = vadd.f32 %v2729, 1.0
        %v2959 = vadd.f32 %v2731, 1.0
        %v2960 = vadd.f32 %v2733, 1.0
        %v2961 = vadd.f32 %v2735, 1.0
        %v2962 = vadd.f32 %v2737, 1.0
        %v2963 = vadd.f32 %v2739, 1.0
        %v2964 = vadd.f32 %v2741, 1.0
        %v2965 = vadd.f32 %v2743, 1.0
        %v2966 = vadd.f32 %v2745, 1.0
        %v2967 = vadd.f32 %v2747, 1.0
        %v2968 = vadd.f32 %v2749, 1.0
        %v2969 = vadd.f32 %v2751, 1.0
        %v2970 = vadd.f32 %v2753, 1.0
        %v2971 = vadd.f32 %v2755, 1.0
        %v2972 = vadd.f32 %v2757, 1.0
        %v2973 = vadd.f32 %v2759, 1.0
        %v2974 = vadd.f32 %v2761, 1.0
        %v2975 = vadd.f32 %v2763, 1.0
        %v2976 = vadd.f32 %v2765, 1.0
        %v2977 = vadd.f32 %v2767, 1.0
        %v2978 = vadd.f32 %v2769, 1.0
        %v2979 = vadd.f32 %v2771, 1.0
        %v2980 = vadd.f32 %v2773, 1.0
        %v2981 = vadd.f32 %v2775, 1.0
        %v2982 = vadd.f32 %v2777, 1.0
        %v2983 = vadd.f32 %v2779, 1.0
        %v2984 = vadd.f32 %v2781, 1.0
        %v2985 = vadd.f32 %v2783, 1.0
        %v2986 = vadd.f32 %v2785, 1.0
        %v2987 = vadd.f32 %v2787, 1.0
        %v2988 = vadd.f32 %v2789, 1.0
        %v2989 = vadd.f32 %v2791, 1.0
        %v2990 = vadd.f32 %v2793, 1.0
        %v2991 = vadd.f32 %v2795, 1.0
        %v2992 = vadd.f32 %v2797, 1.0
        %v2993 = vadd.f32 %v2799, 1.0
        %v2994 = vadd.f32 %v2801, 1.0
        %v2995 = vadd.f32 %v2803, 1.0
        %v2996 = vadd.f32 %v2805, 1.0
        %v2997 = vadd.f32 %v2807, 1.0
        %v2998 = vadd.f32 %v2809, 1.0
        %v2999 = vadd.f32 %v2811, 1.0
        %v3000 = vadd.f32 %v2813, 1.0
        %v3001 = vadd.f32 %v2815, 1.0
        %v3002 = vadd.f32 %v2817, 1.0
        %v3003 = vadd.f32 %v2819, 1.0
        %v3004 = vadd.f32 %v2821, 1.0
        %v3005 = vadd.f32 %v2823, 1.0
        %v3006 = vadd.f32 %v2825, 1.0
        %v3007 = vadd.f32 %v2827, 1.0
        %v3008 = vadd.f32 %v2829, 1.0
        %v3009 = vadd.f32 %v2831, 1.0
        %v3010 = vadd.f32 %v2833, 1.0
        %v3011 = vadd.f32 %v2835, 1.0
        %v3012 = vadd.f32 %v2837, 1.0
        %v3013 = vadd.f32 %v2839, 1.0
        %v3014 = vadd.f32 %v2841, 1.0
        %v3015 = vadd.f32 %v2843, 1.0
        %v3016 = vadd.f32 %v2845, 1.0
        %v3017 = vadd.f32 %v2847, 1.0
        %v3018 = vadd.f32 %v2849, 1.0
        %v3019 = vadd.f32 %v2851, 1.0
        %v3020 = vadd.f32 %v2853, 1.0
        %v3021 = vadd.f32 %v2855, 1.0
        %v3022 = vadd.f32 %v2857, 1.0
        %v3023 = vadd.f32 %v2859, 1.0
        %v3024 = vadd.f32 %v2861, 1.0
        %v3025 = vadd.f32 %v2863, 1.0
        %v3026 = vadd.f32 %v2865, 1.0
        %v3027 = vadd.f32 %v2867, 1.0
        %v3028 = vadd.f32 %v2869, 1.0
        %v3029 = vadd.f32 %v2871, 1.0
        %v3030 = vadd.f32 %v2873, 1.0
        %v3031 = vadd.f32 %v2875, 1.0
        %v3032 = vadd.f32 %v2877, 1.0
        %v3033 = vadd.f32 %v2879, 1.0
        %v3034 = vadd.f32 %v2881, 1.0
        %v3035 = vadd.f32 %v2883, 1.0
        %v3036 = vadd.f32 %v2885, 1.0
        %v3037 = vadd.f32 %v2887, 1.0
        %v3038 = vadd.f32 %v2889, 1.0
        %v3039 = vadd.f32 %v2891, 1.0
        %v3040 = vadd.f32 %v2893, 1.0
        %v3041 = vadd.f32 %v2895, 1.0
        %v3042 = vadd.f32 %v2897, 1.0
        %v3043 = vadd.f32 %v2899, 1.0
        %v3044 = vadd.f32 %v2901, 1.0
        %v3045 = vadd.f32 %v2903, 1.0
        %v3046 = vadd.f32 %v2905, 1.0
        %v3047 = vadd.f32 %v2907, 1.0
        %v3048 = vadd.f32 %v2909, 1.0
        %v3049 = vadd.f32 %v2911, 1.0
        %v3050 = vadd.f32 %v2913, 1.0
        %v3051 = vadd.f32 %v2915, 1.0
        %v3052 = vadd.f32 %v2917, 1.0
        %v3053 = vadd.f32 %v2919, 1.0
        %v3054 = vadd.f32 %v2921, 1.0
        %v3055 = vadd.f32 %v2923, 1.0
        %v3056 = vadd.f32 %v2925, 1.0
        %v3057 = vadd.f32 %v2927, 1.0
        %v3058 = vadd.f32 %v2929, 1.0
        %v3059 = vadd.f32 %v2931, 1.0
        %v3060 = vrcp.pop %v2932
        %v3061 = vrcp.pop %v2933
        %v3062 = vrcp.pop %v2934
        %v3063 = vrcp.pop %v2935
        %v3064 = vrcp.pop %v2936
        %v3065 = vrcp.pop %v2937
        %v3066 = vrcp.pop %v2938
        %v3067 = vrcp.pop %v2939
        %v3068 = vrcp.pop %v2940
        %v3069 = vrcp.pop %v2941
        %v3070 = vrcp.pop %v2942
        %v3071 = vrcp.pop %v2943
        %v3072 = vrcp.pop %v2944
        %v3073 = vrcp.pop %v2945
        %v3074 = vrcp.pop %v2946
        %v3075 = vrcp.pop %v2947
        %v3076 = vrcp.pop %v2948
        %v3077 = vrcp.pop %v2949
        %v3078 = vrcp.pop %v2950
        %v3079 = vrcp.pop %v2951
        %v3080 = vrcp.pop %v2952
        %v3081 = vrcp.pop %v2953
        %v3082 = vrcp.pop %v2954
        %v3083 = vrcp.pop %v2955
        %v3084 = vrcp.pop %v2956
        %v3085 = vrcp.pop %v2957
        %v3086 = vrcp.pop %v2958
        %v3087 = vrcp.pop %v2959
        %v3088 = vrcp.pop %v2960
        %v3089 = vrcp.pop %v2961
        %v3090 = vrcp.pop %v2962
        %v3091 = vrcp.pop %v2963
        %v3092 = vrcp.pop %v2964
        %v3093 = vrcp.pop %v2965
        %v3094 = vrcp.pop %v2966
        %v3095 = vrcp.pop %v2967
        %v3096 = vrcp.pop %v2968
        %v3097 = vrcp.pop %v2969
        %v3098 = vrcp.pop %v2970
        %v3099 = vrcp.pop %v2971
        %v3100 = vrcp.pop %v2972
        %v3101 = vrcp.pop %v2973
        %v3102 = vrcp.pop %v2974
        %v3103 = vrcp.pop %v2975
        %v3104 = vrcp.pop %v2976
        %v3105 = vrcp.pop %v2977
        %v3106 = vrcp.pop %v2978
        %v3107 = vrcp.pop %v2979
        %v3108 = vrcp.pop %v2980
        %v3109 = vrcp.pop %v2981
        %v3110 = vrcp.pop %v2982
        %v3111 = vrcp.pop %v2983
        %v3112 = vrcp.pop %v2984
        %v3113 = vrcp.pop %v2985
        %v3114 = vrcp.pop %v2986
        %v3115 = vrcp.pop %v2987
        %v3116 = vrcp.pop %v2988
        %v3117 = vrcp.pop %v2989
        %v3118 = vrcp.pop %v2990
        %v3119 = vrcp.pop %v2991
        %v3120 = vrcp.pop %v2992
        %v3121 = vrcp.pop %v2993
        %v3122 = vrcp.pop %v2994
        %v3123 = vrcp.pop %v2995
        %v3124 = vrcp.pop %v2996
        %v3125 = vrcp.pop %v2997
        %v3126 = vrcp.pop %v2998
        %v3127 = vrcp.pop %v2999
        %v3128 = vrcp.pop %v3000
        %v3129 = vrcp.pop %v3001
        %v3130 = vrcp.pop %v3002
        %v3131 = vrcp.pop %v3003
        %v3132 = vrcp.pop %v3004
        %v3133 = vrcp.pop %v3005
        %v3134 = vrcp.pop %v3006
        %v3135 = vrcp.pop %v3007
        %v3136 = vrcp.pop %v3008
        %v3137 = vrcp.pop %v3009
        %v3138 = vrcp.pop %v3010
        %v3139 = vrcp.pop %v3011
        %v3140 = vrcp.pop %v3012
        %v3141 = vrcp.pop %v3013
        %v3142 = vrcp.pop %v3014
        %v3143 = vrcp.pop %v3015
        %v3144 = vrcp.pop %v3016
        %v3145 = vrcp.pop %v3017
        %v3146 = vrcp.pop %v3018
        %v3147 = vrcp.pop %v3019
        %v3148 = vrcp.pop %v3020
        %v3149 = vrcp.pop %v3021
        %v3150 = vrcp.pop %v3022
        %v3151 = vrcp.pop %v3023
        %v3152 = vrcp.pop %v3024
        %v3153 = vrcp.pop %v3025
        %v3154 = vrcp.pop %v3026
        %v3155 = vrcp.pop %v3027
        %v3156 = vrcp.pop %v3028
        %v3157 = vrcp.pop %v3029
        %v3158 = vrcp.pop %v3030
        %v3159 = vrcp.pop %v3031
        %v3160 = vrcp.pop %v3032
        %v3161 = vrcp.pop %v3033
        %v3162 = vrcp.pop %v3034
        %v3163 = vrcp.pop %v3035
        %v3164 = vrcp.pop %v3036
        %v3165 = vrcp.pop %v3037
        %v3166 = vrcp.pop %v3038
        %v3167 = vrcp.pop %v3039
        %v3168 = vrcp.pop %v3040
        %v3169 = vrcp.pop %v3041
        %v3170 = vrcp.pop %v3042
        %v3171 = vrcp.pop %v3043
        %v3172 = vrcp.pop %v3044
        %v3173 = vrcp.pop %v3045
        %v3174 = vrcp.pop %v3046
        %v3175 = vrcp.pop %v3047
        %v3176 = vrcp.pop %v3048
        %v3177 = vrcp.pop %v3049
        %v3178 = vrcp.pop %v3050
        %v3179 = vrcp.pop %v3051
        %v3180 = vrcp.pop %v3052
        %v3181 = vrcp.pop %v3053
        %v3182 = vrcp.pop %v3054
        %v3183 = vrcp.pop %v3055
        %v3184 = vrcp.pop %v3056
        %v3185 = vrcp.pop %v3057
        %v3186 = vrcp.pop %v3058
        %v3187 = vrcp.pop %v3059
        %v3188 = vpack.c.bf16 %v3062, %v3060
        %v3189 = vpack.c.bf16 %v3063, %v3061
        %v3190 = vpack.c.bf16 %v3066, %v3064
        %v3191 = vpack.c.bf16 %v3067, %v3065
        %v3192 = vpack.c.bf16 %v3070, %v3068
        %v3193 = vpack.c.bf16 %v3071, %v3069
        %v3194 = vpack.c.bf16 %v3074, %v3072
        %v3195 = vpack.c.bf16 %v3075, %v3073
        %v3196 = vpack.c.bf16 %v3078, %v3076
        %v3197 = vpack.c.bf16 %v3079, %v3077
        %v3198 = vpack.c.bf16 %v3082, %v3080
        %v3199 = vpack.c.bf16 %v3083, %v3081
        %v3200 = vpack.c.bf16 %v3086, %v3084
        %v3201 = vpack.c.bf16 %v3087, %v3085
        %v3202 = vpack.c.bf16 %v3090, %v3088
        %v3203 = vpack.c.bf16 %v3091, %v3089
        %v3204 = vpack.c.bf16 %v3094, %v3092
        %v3205 = vpack.c.bf16 %v3095, %v3093
        %v3206 = vpack.c.bf16 %v3098, %v3096
        %v3207 = vpack.c.bf16 %v3099, %v3097
        %v3208 = vpack.c.bf16 %v3102, %v3100
        %v3209 = vpack.c.bf16 %v3103, %v3101
        %v3210 = vpack.c.bf16 %v3106, %v3104
        %v3211 = vpack.c.bf16 %v3107, %v3105
        %v3212 = vpack.c.bf16 %v3110, %v3108
        %v3213 = vpack.c.bf16 %v3111, %v3109
        %v3214 = vpack.c.bf16 %v3114, %v3112
        %v3215 = vpack.c.bf16 %v3115, %v3113
        %v3216 = vpack.c.bf16 %v3118, %v3116
        %v3217 = vpack.c.bf16 %v3119, %v3117
        %v3218 = vpack.c.bf16 %v3122, %v3120
        %v3219 = vpack.c.bf16 %v3123, %v3121
        %v3220 = vpack.c.bf16 %v3126, %v3124
        %v3221 = vpack.c.bf16 %v3127, %v3125
        %v3222 = vpack.c.bf16 %v3130, %v3128
        %v3223 = vpack.c.bf16 %v3131, %v3129
        %v3224 = vpack.c.bf16 %v3134, %v3132
        %v3225 = vpack.c.bf16 %v3135, %v3133
        %v3226 = vpack.c.bf16 %v3138, %v3136
        %v3227 = vpack.c.bf16 %v3139, %v3137
        %v3228 = vpack.c.bf16 %v3142, %v3140
        %v3229 = vpack.c.bf16 %v3143, %v3141
        %v3230 = vpack.c.bf16 %v3146, %v3144
        %v3231 = vpack.c.bf16 %v3147, %v3145
        %v3232 = vpack.c.bf16 %v3150, %v3148
        %v3233 = vpack.c.bf16 %v3151, %v3149
        %v3234 = vpack.c.bf16 %v3154, %v3152
        %v3235 = vpack.c.bf16 %v3155, %v3153
        %v3236 = vpack.c.bf16 %v3158, %v3156
        %v3237 = vpack.c.bf16 %v3159, %v3157
        %v3238 = vpack.c.bf16 %v3162, %v3160
        %v3239 = vpack.c.bf16 %v3163, %v3161
        %v3240 = vpack.c.bf16 %v3166, %v3164
        %v3241 = vpack.c.bf16 %v3167, %v3165
        %v3242 = vpack.c.bf16 %v3170, %v3168
        %v3243 = vpack.c.bf16 %v3171, %v3169
        %v3244 = vpack.c.bf16 %v3174, %v3172
        %v3245 = vpack.c.bf16 %v3175, %v3173
        %v3246 = vpack.c.bf16 %v3178, %v3176
        %v3247 = vpack.c.bf16 %v3179, %v3177
        %v3248 = vpack.c.bf16 %v3182, %v3180
        %v3249 = vpack.c.bf16 %v3183, %v3181
        %v3250 = vpack.c.bf16 %v3186, %v3184
        %v3251 = vpack.c.bf16 %v3187, %v3185
        %v3316 = vunpack.c.l.b16 %v3188
        %v3317 = vunpack.c.l.b16 %v3189
        %v3318 = vunpack.c.h.b16 %v3188
        %v3319 = vunpack.c.h.b16 %v3189
        %v3320 = vunpack.c.l.b16 %v3190
        %v3321 = vunpack.c.l.b16 %v3191
        %v3322 = vunpack.c.h.b16 %v3190
        %v3323 = vunpack.c.h.b16 %v3191
        %v3324 = vunpack.c.l.b16 %v3192
        %v3325 = vunpack.c.l.b16 %v3193
        %v3326 = vunpack.c.h.b16 %v3192
        %v3327 = vunpack.c.h.b16 %v3193
        %v3328 = vunpack.c.l.b16 %v3194
        %v3329 = vunpack.c.l.b16 %v3195
        %v3330 = vunpack.c.h.b16 %v3194
        %v3331 = vunpack.c.h.b16 %v3195
        %v3332 = vunpack.c.l.b16 %v3196
        %v3333 = vunpack.c.l.b16 %v3197
        %v3334 = vunpack.c.h.b16 %v3196
        %v3335 = vunpack.c.h.b16 %v3197
        %v3336 = vunpack.c.l.b16 %v3198
        %v3337 = vunpack.c.l.b16 %v3199
        %v3338 = vunpack.c.h.b16 %v3198
        %v3339 = vunpack.c.h.b16 %v3199
        %v3340 = vunpack.c.l.b16 %v3200
        %v3341 = vunpack.c.l.b16 %v3201
        %v3342 = vunpack.c.h.b16 %v3200
        %v3343 = vunpack.c.h.b16 %v3201
        %v3344 = vunpack.c.l.b16 %v3202
        %v3345 = vunpack.c.l.b16 %v3203
        %v3346 = vunpack.c.h.b16 %v3202
        %v3347 = vunpack.c.h.b16 %v3203
        %v3348 = vunpack.c.l.b16 %v3204
        %v3349 = vunpack.c.l.b16 %v3205
        %v3350 = vunpack.c.h.b16 %v3204
        %v3351 = vunpack.c.h.b16 %v3205
        %v3352 = vunpack.c.l.b16 %v3206
        %v3353 = vunpack.c.l.b16 %v3207
        %v3354 = vunpack.c.h.b16 %v3206
        %v3355 = vunpack.c.h.b16 %v3207
        %v3356 = vunpack.c.l.b16 %v3208
        %v3357 = vunpack.c.l.b16 %v3209
        %v3358 = vunpack.c.h.b16 %v3208
        %v3359 = vunpack.c.h.b16 %v3209
        %v3360 = vunpack.c.l.b16 %v3210
        %v3361 = vunpack.c.l.b16 %v3211
        %v3362 = vunpack.c.h.b16 %v3210
        %v3363 = vunpack.c.h.b16 %v3211
        %v3364 = vunpack.c.l.b16 %v3212
        %v3365 = vunpack.c.l.b16 %v3213
        %v3366 = vunpack.c.h.b16 %v3212
        %v3367 = vunpack.c.h.b16 %v3213
        %v3368 = vunpack.c.l.b16 %v3214
        %v3369 = vunpack.c.l.b16 %v3215
        %v3370 = vunpack.c.h.b16 %v3214
        %v3371 = vunpack.c.h.b16 %v3215
        %v3372 = vunpack.c.l.b16 %v3216
        %v3373 = vunpack.c.l.b16 %v3217
        %v3374 = vunpack.c.h.b16 %v3216
        %v3375 = vunpack.c.h.b16 %v3217
        %v3376 = vunpack.c.l.b16 %v3218
        %v3377 = vunpack.c.l.b16 %v3219
        %v3378 = vunpack.c.h.b16 %v3218
        %v3379 = vunpack.c.h.b16 %v3219
        %v3380 = vunpack.c.l.b16 %v3220
        %v3381 = vunpack.c.l.b16 %v3221
        %v3382 = vunpack.c.h.b16 %v3220
        %v3383 = vunpack.c.h.b16 %v3221
        %v3384 = vunpack.c.l.b16 %v3222
        %v3385 = vunpack.c.l.b16 %v3223
        %v3386 = vunpack.c.h.b16 %v3222
        %v3387 = vunpack.c.h.b16 %v3223
        %v3388 = vunpack.c.l.b16 %v3224
        %v3389 = vunpack.c.l.b16 %v3225
        %v3390 = vunpack.c.h.b16 %v3224
        %v3391 = vunpack.c.h.b16 %v3225
        %v3392 = vunpack.c.l.b16 %v3226
        %v3393 = vunpack.c.l.b16 %v3227
        %v3394 = vunpack.c.h.b16 %v3226
        %v3395 = vunpack.c.h.b16 %v3227
        %v3396 = vunpack.c.l.b16 %v3228
        %v3397 = vunpack.c.l.b16 %v3229
        %v3398 = vunpack.c.h.b16 %v3228
        %v3399 = vunpack.c.h.b16 %v3229
        %v3400 = vunpack.c.l.b16 %v3230
        %v3401 = vunpack.c.l.b16 %v3231
        %v3402 = vunpack.c.h.b16 %v3230
        %v3403 = vunpack.c.h.b16 %v3231
        %v3404 = vunpack.c.l.b16 %v3232
        %v3405 = vunpack.c.l.b16 %v3233
        %v3406 = vunpack.c.h.b16 %v3232
        %v3407 = vunpack.c.h.b16 %v3233
        %v3408 = vunpack.c.l.b16 %v3234
        %v3409 = vunpack.c.l.b16 %v3235
        %v3410 = vunpack.c.h.b16 %v3234
        %v3411 = vunpack.c.h.b16 %v3235
        %v3412 = vunpack.c.l.b16 %v3236
        %v3413 = vunpack.c.l.b16 %v3237
        %v3414 = vunpack.c.h.b16 %v3236
        %v3415 = vunpack.c.h.b16 %v3237
        %v3416 = vunpack.c.l.b16 %v3238
        %v3417 = vunpack.c.l.b16 %v3239
        %v3418 = vunpack.c.h.b16 %v3238
        %v3419 = vunpack.c.h.b16 %v3239
        %v3420 = vunpack.c.l.b16 %v3240
        %v3421 = vunpack.c.l.b16 %v3241
        %v3422 = vunpack.c.h.b16 %v3240
        %v3423 = vunpack.c.h.b16 %v3241
        %v3424 = vunpack.c.l.b16 %v3242
        %v3425 = vunpack.c.l.b16 %v3243
        %v3426 = vunpack.c.h.b16 %v3242
        %v3427 = vunpack.c.h.b16 %v3243
        %v3428 = vunpack.c.l.b16 %v3244
        %v3429 = vunpack.c.l.b16 %v3245
        %v3430 = vunpack.c.h.b16 %v3244
        %v3431 = vunpack.c.h.b16 %v3245
        %v3432 = vunpack.c.l.b16 %v3246
        %v3433 = vunpack.c.l.b16 %v3247
        %v3434 = vunpack.c.h.b16 %v3246
        %v3435 = vunpack.c.h.b16 %v3247
        %v3436 = vunpack.c.l.b16 %v3248
        %v3437 = vunpack.c.l.b16 %v3249
        %v3438 = vunpack.c.h.b16 %v3248
        %v3439 = vunpack.c.h.b16 %v3249
        %v3440 = vunpack.c.l.b16 %v3250
        %v3441 = vunpack.c.l.b16 %v3251
        %v3442 = vunpack.c.h.b16 %v3250
        %v3443 = vunpack.c.h.b16 %v3251
        %v3444 = vpack.c.b16 %v3317, %v3316
        %v3445 = vpack.c.b16 %v3319, %v3318
        %v3446 = vpack.c.b16 %v3321, %v3320
        %v3447 = vpack.c.b16 %v3323, %v3322
        %v3448 = vpack.c.b16 %v3325, %v3324
        %v3449 = vpack.c.b16 %v3327, %v3326
        %v3450 = vpack.c.b16 %v3329, %v3328
        %v3451 = vpack.c.b16 %v3331, %v3330
        %v3452 = vpack.c.b16 %v3333, %v3332
        %v3453 = vpack.c.b16 %v3335, %v3334
        %v3454 = vpack.c.b16 %v3337, %v3336
        %v3455 = vpack.c.b16 %v3339, %v3338
        %v3456 = vpack.c.b16 %v3341, %v3340
        %v3457 = vpack.c.b16 %v3343, %v3342
        %v3458 = vpack.c.b16 %v3345, %v3344
        %v3459 = vpack.c.b16 %v3347, %v3346
        %v3460 = vpack.c.b16 %v3349, %v3348
        %v3461 = vpack.c.b16 %v3351, %v3350
        %v3462 = vpack.c.b16 %v3353, %v3352
        %v3463 = vpack.c.b16 %v3355, %v3354
        %v3464 = vpack.c.b16 %v3357, %v3356
        %v3465 = vpack.c.b16 %v3359, %v3358
        %v3466 = vpack.c.b16 %v3361, %v3360
        %v3467 = vpack.c.b16 %v3363, %v3362
        %v3468 = vpack.c.b16 %v3365, %v3364
        %v3469 = vpack.c.b16 %v3367, %v3366
        %v3470 = vpack.c.b16 %v3369, %v3368
        %v3471 = vpack.c.b16 %v3371, %v3370
        %v3472 = vpack.c.b16 %v3373, %v3372
        %v3473 = vpack.c.b16 %v3375, %v3374
        %v3474 = vpack.c.b16 %v3377, %v3376
        %v3475 = vpack.c.b16 %v3379, %v3378
        %v3476 = vpack.c.b16 %v3381, %v3380
        %v3477 = vpack.c.b16 %v3383, %v3382
        %v3478 = vpack.c.b16 %v3385, %v3384
        %v3479 = vpack.c.b16 %v3387, %v3386
        %v3480 = vpack.c.b16 %v3389, %v3388
        %v3481 = vpack.c.b16 %v3391, %v3390
        %v3482 = vpack.c.b16 %v3393, %v3392
        %v3483 = vpack.c.b16 %v3395, %v3394
        %v3484 = vpack.c.b16 %v3397, %v3396
        %v3485 = vpack.c.b16 %v3399, %v3398
        %v3486 = vpack.c.b16 %v3401, %v3400
        %v3487 = vpack.c.b16 %v3403, %v3402
        %v3488 = vpack.c.b16 %v3405, %v3404
        %v3489 = vpack.c.b16 %v3407, %v3406
        %v3490 = vpack.c.b16 %v3409, %v3408
        %v3491 = vpack.c.b16 %v3411, %v3410
        %v3492 = vpack.c.b16 %v3413, %v3412
        %v3493 = vpack.c.b16 %v3415, %v3414
        %v3494 = vpack.c.b16 %v3417, %v3416
        %v3495 = vpack.c.b16 %v3419, %v3418
        %v3496 = vpack.c.b16 %v3421, %v3420
        %v3497 = vpack.c.b16 %v3423, %v3422
        %v3498 = vpack.c.b16 %v3425, %v3424
        %v3499 = vpack.c.b16 %v3427, %v3426
        %v3500 = vpack.c.b16 %v3429, %v3428
        %v3501 = vpack.c.b16 %v3431, %v3430
        %v3502 = vpack.c.b16 %v3433, %v3432
        %v3503 = vpack.c.b16 %v3435, %v3434
        %v3504 = vpack.c.b16 %v3437, %v3436
        %v3505 = vpack.c.b16 %v3439, %v3438
        %v3506 = vpack.c.b16 %v3441, %v3440
        %v3507 = vpack.c.b16 %v3443, %v3442
        %3572 = vst [vmem:[%s459] sm:$0xff] %v3444
        %3573 = vst [vmem:[%s459 + $0x8] sm:$0xff] %v3445
        %3574 = vst [vmem:[%s459 + $0x10] sm:$0xff] %v3446
        %3575 = vst [vmem:[%s459 + $0x18] sm:$0xff] %v3447
        %3576 = vst [vmem:[%s459 + $0x20] sm:$0xff] %v3448
        %3577 = vst [vmem:[%s459 + $0x28] sm:$0xff] %v3449
        %3578 = vst [vmem:[%s459 + $0x30] sm:$0xff] %v3450
        %3579 = vst [vmem:[%s459 + $0x38] sm:$0xff] %v3451
        %3580 = vst [vmem:[%s459 + $0x40] sm:$0xff] %v3452
        %3581 = vst [vmem:[%s459 + $0x48] sm:$0xff] %v3453
        %3582 = vst [vmem:[%s459 + $0x50] sm:$0xff] %v3454
        %3583 = vst [vmem:[%s459 + $0x58] sm:$0xff] %v3455
        %3584 = vst [vmem:[%s459 + $0x60] sm:$0xff] %v3456
        %3585 = vst [vmem:[%s459 + $0x68] sm:$0xff] %v3457
        %3586 = vst [vmem:[%s459 + $0x70] sm:$0xff] %v3458
        %3587 = vst [vmem:[%s459 + $0x78] sm:$0xff] %v3459
        %3588 = vst [vmem:[%s459 + $0x80] sm:$0xff] %v3460
        %3589 = vst [vmem:[%s459 + $0x88] sm:$0xff] %v3461
        %3590 = vst [vmem:[%s459 + $0x90] sm:$0xff] %v3462
        %3591 = vst [vmem:[%s459 + $0x98] sm:$0xff] %v3463
        %3592 = vst [vmem:[%s459 + $0xa0] sm:$0xff] %v3464
        %3593 = vst [vmem:[%s459 + $0xa8] sm:$0xff] %v3465
        %3594 = vst [vmem:[%s459 + $0xb0] sm:$0xff] %v3466
        %3595 = vst [vmem:[%s459 + $0xb8] sm:$0xff] %v3467
        %3596 = vst [vmem:[%s459 + $0xc0] sm:$0xff] %v3468
        %3597 = vst [vmem:[%s459 + $0xc8] sm:$0xff] %v3469
        %3598 = vst [vmem:[%s459 + $0xd0] sm:$0xff] %v3470
        %3599 = vst [vmem:[%s459 + $0xd8] sm:$0xff] %v3471
        %3600 = vst [vmem:[%s459 + $0xe0] sm:$0xff] %v3472
        %3601 = vst [vmem:[%s459 + $0xe8] sm:$0xff] %v3473
        %3602 = vst [vmem:[%s459 + $0xf0] sm:$0xff] %v3474
        %3603 = vst [vmem:[%s459 + $0xf8] sm:$0xff] %v3475
        %3604 = vst [vmem:[%s459 + $0x100] sm:$0xff] %v3476
        %3605 = vst [vmem:[%s459 + $0x108] sm:$0xff] %v3477
        %3606 = vst [vmem:[%s459 + $0x110] sm:$0xff] %v3478
        %3607 = vst [vmem:[%s459 + $0x118] sm:$0xff] %v3479
        %3608 = vst [vmem:[%s459 + $0x120] sm:$0xff] %v3480
        %3609 = vst [vmem:[%s459 + $0x128] sm:$0xff] %v3481
        %3610 = vst [vmem:[%s459 + $0x130] sm:$0xff] %v3482
        %3611 = vst [vmem:[%s459 + $0x138] sm:$0xff] %v3483
        %3612 = vst [vmem:[%s459 + $0x140] sm:$0xff] %v3484
        %3613 = vst [vmem:[%s459 + $0x148] sm:$0xff] %v3485
        %3614 = vst [vmem:[%s459 + $0x150] sm:$0xff] %v3486
        %3615 = vst [vmem:[%s459 + $0x158] sm:$0xff] %v3487
        %3616 = vst [vmem:[%s459 + $0x160] sm:$0xff] %v3488
        %3617 = vst [vmem:[%s459 + $0x168] sm:$0xff] %v3489
        %3618 = vst [vmem:[%s459 + $0x170] sm:$0xff] %v3490
        %3619 = vst [vmem:[%s459 + $0x178] sm:$0xff] %v3491
        %3620 = vst [vmem:[%s459 + $0x180] sm:$0xff] %v3492
        %3621 = vst [vmem:[%s459 + $0x188] sm:$0xff] %v3493
        %3622 = vst [vmem:[%s459 + $0x190] sm:$0xff] %v3494
        %3623 = vst [vmem:[%s459 + $0x198] sm:$0xff] %v3495
        %3624 = vst [vmem:[%s459 + $0x1a0] sm:$0xff] %v3496
        %3625 = vst [vmem:[%s459 + $0x1a8] sm:$0xff] %v3497
        %3626 = vst [vmem:[%s459 + $0x1b0] sm:$0xff] %v3498
        %3627 = vst [vmem:[%s459 + $0x1b8] sm:$0xff] %v3499
        %3628 = vst [vmem:[%s459 + $0x1c0] sm:$0xff] %v3500
        %3629 = vst [vmem:[%s459 + $0x1c8] sm:$0xff] %v3501
        %3630 = vst [vmem:[%s459 + $0x1d0] sm:$0xff] %v3502
        %3631 = vst [vmem:[%s459 + $0x1d8] sm:$0xff] %v3503
        %3632 = vst [vmem:[%s459 + $0x1e0] sm:$0xff] %v3504
        %3633 = vst [vmem:[%s459 + $0x1e8] sm:$0xff] %v3505
        %3634 = vst [vmem:[%s459 + $0x1f0] sm:$0xff] %v3506
        %3635 = vst [vmem:[%s459 + $0x1f8] sm:$0xff] %v3507
        %s3636 = sand.u32 %s232, 1
        %s3637 = scalar_lea.sflag [#allocation4], %s3636
        %s3638 = sand.u32 %s232, 1
        %s3639 = smul.addr %s3638, 512
        %s3640 = scalar_lea.vmem [#allocation17], %s3639
        // Predicated region
        $region93: #{tpu_custom_call.1} parent=55 // pred_check
          %p3641 = pneg %p242
        $region94: #{tpu_custom_call.1} parent=55 // pred_check_branch
          %3643 = sbr.rel (%p3641) target = $region96
        $region95: #{tpu_custom_call.1} parent=55 // pred_region
          %s3644 = smul.u32 64, %s30
          %s3646 = ssub.s32 8192, 8192
          %3647 = vsyncadd %s3637, %s3646
          %s3648 = smul.addr %s3644, 2
          %s3649 = smul.addr %s3648, 64
          %s3650 = scalar_lea.hbm %s9, %s3649
          %s3651 = sshll.u32 %s3640, 4
          %s3652 = int_to_ptr.vmem [resolvable:$true] %s3651
          %3657 = dma.vmem_to_hbm [thread:$0]  %s3652, 8192, %s3650, %s3637, 128, 128, 8
        $region96: #{tpu_custom_call.1} parent=55 // pred_fallthru
          _
      $region56: #{tpu_custom_call.1} parent=5 // pred_fallthru
        _
      %p3658 = scmp.le.s32.totalorder 2, %s25
      // Predicated region
      $region97: #{tpu_custom_call.1} parent=5 // pred_check
        %p3659 = pneg %p3658
      $region98: #{tpu_custom_call.1} parent=5 // pred_check_branch
        %3661 = sbr.rel (%p3659) target = $region100
      $region99: #{tpu_custom_call.1} parent=5 // pred_region
        %s3662 = ssub.s32 %s25, 2
        // Predicated region
        $region101: #{tpu_custom_call.1} parent=99 // pred_check
          %p3663 = pneg %p248
        $region102: #{tpu_custom_call.1} parent=99 // pred_check_branch
          %3665 = sbr.rel (%p3663) target = $region104
        $region103: #{tpu_custom_call.1} parent=99 // pred_region
          %s3666 = sand.u32 %s233, 1
          %s3667 = scalar_lea.sflag [#allocation4], %s3666
          %s3668 = sand.u32 %s233, 1
          %s3669 = smul.addr %s3668, 512
          %s3670 = scalar_lea.vmem [#allocation17], %s3669
          %3671 = dma.done %s3667, 8192
        $region104: #{tpu_custom_call.1} parent=99 // pred_fallthru
          _
      $region100: #{tpu_custom_call.1} parent=5 // pred_fallthru
        _
    $region6: #{tpu_custom_call.1} parent=1 // loop_footer
      %s29 = sadd.s32 1, %s25
    $region7: #{tpu_custom_call.1} parent=1 // loop_footer_branch
      %24 = sbr.rel target = $region3
    $region8: #{tpu_custom_call.1} parent=1 // loop_exit
      _
    %3672 = vsyncpa [#allocation3], 1
    %s3673 = scalar_lea.sflag [#allocation3], 1
    %3674 = vsyncpa %s3673, 1
    %3675 = vsyncpa [#allocation6], 1
    %3676 = vsyncpa [#allocation9], 1
    %3677 = vsyncpa [#allocation12], 1
    %3678 = vsyncpa [#allocation15], 1
    %3679 = vsyncpa [#allocation4], 1
    %s3680 = scalar_lea.sflag [#allocation4], 1
    %3681 = vsyncpa %s3680, 1

</llo_original>
